<compile_context>
chip_gen: v5e
topology: v5e:2x2
jax: 0.10.0
libtpu: 0.0.40
codegen_flags: <defaults>
</compile_context>

<pallas_src>
import numpy as np
import jax
import jax.numpy as jnp
from jax.experimental import pallas as pl
from jax.experimental.pallas import tpu as pltpu

H = 8
W = 8
CIN = 32            # inplanes
COUT = 32           # planes (== inplanes: downsample=None, stride=1)
CR = COUT // 16     # CBAM channel-gate hidden width
L = W * CIN         # lane-dense row width (256)
EPS = 1e-5

# TODO(synk): on v6e/v7x set CONV_DTYPE = jnp.bfloat16 (operands only; accumulation
# stays f32 via preferred_element_type) for ~2-3x MXU throughput; the 2e-4
# self-check tolerance must then be loosened.
CONV_DTYPE = jnp.float32


def _sigmoid(v):
    # exact reciprocal keeps f32 accuracy while using the EUP path
    return pl.reciprocal(1.0 + jnp.exp(-v), approx=False)


def cso_block_kernel(x_ref, w1m_ref, bn1s_ref, bn1b_ref,
                     w2m_ref, bn2s_ref, bn2b_ref,
                     fc1w_ref, fc1b_ref, fc2w_ref, fc2b_ref,
                     w7m_ref, sbnb_ref,
                     out_ref):
    B = x_ref.shape[0]
    R = B * H

    def shift_rows(rows, dh):
        # rows: (B, H, k) -> array whose row h holds input row h+dh
        # (zero rows where h+dh falls outside the image).
        if dh == 0:
            return rows
        z = jnp.zeros((B, abs(dh), rows.shape[2]), jnp.float32)
        if dh > 0:
            return jnp.concatenate([rows[:, dh:, :], z], axis=1)
        return jnp.concatenate([z, rows[:, :H + dh, :]], axis=1)

    def conv3x3(rows, wm_ref):
        # rows: (B, H, 256) lane-dense (lane = w*C + c).  Vertical taps = row
        # shifts; horizontal taps + channel mixing live in the packed (768, 256)
        # weight matrix -> a single K=768 MXU matmul.
        inp = jnp.concatenate(
            [shift_rows(rows, -1), rows, shift_rows(rows, 1)], axis=2)
        inp = inp.reshape(R, 3 * L)
        return jnp.dot(inp.astype(CONV_DTYPE), wm_ref[...].astype(CONV_DTYPE),
                       preferred_element_type=jnp.float32)            # (R, 256)

    x3 = x_ref[...]                                                    # (B, H, 256)

    # ---- conv1 -> folded BN1 -> ReLU ----
    y1 = jnp.maximum(conv3x3(x3, w1m_ref) * bn1s_ref[...] + bn1b_ref[...], 0.0)

    # ---- conv2 -> folded BN2 ----
    h4 = conv3x3(y1.reshape(B, H, L), w2m_ref) * bn2s_ref[...] + bn2b_ref[...]
    h4_3 = h4.reshape(B, H, L)                                         # (B, H, 256)

    # ---- CBAM channel gate: global avg+max pool -> shared MLP -> sigmoid ----
    sum_h = jnp.sum(h4_3, axis=1)                                      # (B, 256)
    max_h = jnp.max(h4_3, axis=1)                                      # (B, 256)
    avg = sum_h[:, 0:COUT]
    mx = max_h[:, 0:COUT]
    for w in range(1, W):
        sl = slice(w * COUT, (w + 1) * COUT)
        avg = avg + sum_h[:, sl]
        mx = jnp.maximum(mx, max_h[:, sl])
    avg = avg * (1.0 / (H * W))                                        # (B, C)

    both = jnp.concatenate([avg, mx], axis=0)                          # (2B, C)
    z = jnp.maximum(jnp.dot(both, fc1w_ref[...],
                            preferred_element_type=jnp.float32) + fc1b_ref[...], 0.0)
    z = jnp.dot(z, fc2w_ref[...],
                preferred_element_type=jnp.float32) + fc2b_ref[...]    # (2B, C)
    ca = _sigmoid(z[:B] + z[B:])                                       # (B, C)
    ca_row = jnp.concatenate([ca] * W, axis=1)                         # (B, 256)
    h_ca = h4_3 * ca_row[:, None, :]                                   # (B, H, 256)

    # ---- CBAM spatial gate: channel max/mean -> 7x7 conv (one matmul) -> sigmoid ----
    maxs, means = [], []
    for w in range(W):
        g = h_ca[:, :, w * COUT:(w + 1) * COUT]                        # (B, H, 32)
        maxs.append(jnp.max(g, axis=2, keepdims=True))
        means.append(jnp.mean(g, axis=2, keepdims=True))
    max_rows = jnp.concatenate(maxs, axis=2)                           # (B, H, 8)
    mean_rows = jnp.concatenate(means, axis=2)                         # (B, H, 8)

    pieces = []
    for dh in range(-3, 4):                                            # 7 vertical taps
        pieces.append(shift_rows(max_rows, dh))
        pieces.append(shift_rows(mean_rows, dh))
    feat = jnp.concatenate(pieces, axis=2).reshape(R, 7 * 2 * W)       # (R, 112)
    # Packed (112, 256) matrix: horizontal taps + spatial-BN scale folded in,
    # output pre-replicated across the 32 channel lanes of each w position.
    s_gate = _sigmoid(jnp.dot(feat, w7m_ref[...],
                              preferred_element_type=jnp.float32) + sbnb_ref[...])

    # ---- gate, residual add (x re-read late), ReLU, lane-dense store ----
    out = jnp.maximum(h_ca * s_gate.reshape(B, H, L) + x_ref[...], 0.0)
    out_ref[...] = out.astype(out_ref.dtype)


def _pick_b_blk(n, cap=64):
    divs = [d for d in range(1, min(n, cap) + 1) if n % d == 0]
    multi = [d for d in divs if n // d >= 2]     # keep grid >= 2 (v7x megacore)
    return max(multi) if multi else max(divs)


def cso_attention_block(x, p, b_blk=None):
    N = x.shape[0]
    if b_blk is None:
        b_blk = _pick_b_blk(N)
    assert N % b_blk == 0

    x2 = x.reshape(N, H, L)              # free row-major view of NHWC -> lane-dense

    def full(shape):
        nd = len(shape)
        return pl.BlockSpec(shape, lambda *_: (0,) * nd)

    grid_spec = pltpu.PrefetchScalarGridSpec(
        num_scalar_prefetch=0,
        grid=(N // b_blk,),
        in_specs=[
            pl.BlockSpec((b_blk, H, L), lambda n: (n, 0, 0)),   # x block (lane-dense)
            full((3 * L, L)),                                   # packed conv1 weights
            full((1, L)), full((1, L)),                         # bn1 scale/bias (w-tiled)
            full((3 * L, L)),                                   # packed conv2 weights
            full((1, L)), full((1, L)),                         # bn2 scale/bias (w-tiled)
            full((COUT, CR)), full((1, CR)),                    # CBAM MLP fc1
            full((CR, COUT)), full((1, COUT)),                  # CBAM MLP fc2
            full((7 * 2 * W, L)),                               # packed 7x7 spatial weights
            full((1, L)),                                       # spatial BN bias row
        ],
        out_specs=pl.BlockSpec((b_blk, H, L), lambda n: (n, 0, 0)),
    )
    out = pl.pallas_call(
        cso_block_kernel,
        out_shape=jax.ShapeDtypeStruct((N, H, L), jnp.float32),
        grid_spec=grid_spec,
        compiler_params=pltpu.CompilerParams(
            dimension_semantics=("parallel",)),   # batch blocks are independent
    )(x2, p["w1m"], p["bn1s_row"], p["bn1b_row"], p["w2m"], p["bn2s_row"],
      p["bn2b_row"], p["fc1w"], p["fc1b"], p["fc2w"], p["fc2b"],
      p["w7m"], p["sbnb_row"])
    return out.reshape(N, H, W, COUT)


# ---------------------------- weight packing ----------------------------

def _pack_conv3x3(w_hwio):
    """(3,3,Cin,Cout) -> (3*W*Cin, W*Cout); rows = (kh, w_in, ci), cols = (w_out, co)."""
    w = np.asarray(w_hwio)
    cin, cout = w.shape[2], w.shape[3]
    m = np.zeros((3 * W * cin, W * cout), np.float32)
    for kh in range(3):
        for w_out in range(W):
            for kw in range(3):
                w_in = w_out + kw - 1
                if 0 <= w_in < W:
                    r0 = kh * W * cin + w_in * cin
                    c0 = w_out * cout
                    m[r0:r0 + cin, c0:c0 + cout] = w[kh, kw]
    return jnp.asarray(m)


def _pack_spatial7x7(w_hwio, scale):
    """(7,7,2,1) -> (7*2*W, W*COUT); rows = (kh, chan[max/mean], w_in),
    cols = (w_out, co) with the single output replicated across the 32 channel
    lanes; spatial-BN scale folded in."""
    w = np.asarray(w_hwio)[..., 0]                  # (7, 7, 2)
    m = np.zeros((7 * 2 * W, W * COUT), np.float32)
    for kh in range(7):
        for ch in range(2):
            piece = 2 * kh + ch
            for w_out in range(W):
                for kw in range(7):
                    w_in = w_out + kw - 3
                    if 0 <= w_in < W:
                        m[piece * W + w_in, w_out * COUT:(w_out + 1) * COUT] = \
                            w[kh, kw, ch] * scale
    return jnp.asarray(m)


def _fold_bn(gamma, beta, mean, var):
    scale = gamma / jnp.sqrt(var + EPS)
    return scale, beta - mean * scale


def _tile_w(vec):
    # per-channel (C,) -> lane-dense (1, W*C) row (lane index = w*C + c)
    return jnp.tile(vec, (W,)).reshape(1, L)


def make_params(key):
    ks = jax.random.split(key, 16)

    w1 = jax.random.normal(ks[0], (3, 3, CIN, COUT), jnp.float32) / np.sqrt(9.0 * CIN)
    w2 = jax.random.normal(ks[1], (3, 3, COUT, COUT), jnp.float32) / np.sqrt(9.0 * COUT)

    g1 = 1.0 + 0.1 * jax.random.normal(ks[2], (COUT,), jnp.float32)
    b1 = 0.1 * jax.random.normal(ks[3], (COUT,), jnp.float32)
    m1 = 0.1 * jax.random.normal(ks[4], (COUT,), jnp.float32)
    v1 = 1.0 + 0.5 * jax.random.uniform(ks[5], (COUT,), jnp.float32)
    bn1s, bn1b = _fold_bn(g1, b1, m1, v1)

    g2 = 1.0 + 0.1 * jax.random.normal(ks[6], (COUT,), jnp.float32)
    b2 = 0.1 * jax.random.normal(ks[7], (COUT,), jnp.float32)
    m2 = 0.1 * jax.random.normal(ks[8], (COUT,), jnp.float32)
    v2 = 1.0 + 0.5 * jax.random.uniform(ks[9], (COUT,), jnp.float32)
    bn2s, bn2b = _fold_bn(g2, b2, m2, v2)

    fc1w = jax.random.normal(ks[10], (COUT, CR), jnp.float32) / np.sqrt(float(COUT))
    fc1b = 0.1 * jax.random.normal(ks[11], (1, CR), jnp.float32)
    fc2w = jax.random.normal(ks[12], (CR, COUT), jnp.float32) / np.sqrt(float(CR))
    fc2b = 0.1 * jax.random.normal(ks[13], (1, COUT), jnp.float32)

    # spatial 7x7 conv, HWIO, 2 in (channel 0 = max map, 1 = mean map), 1 out
    w7 = 0.2 * jax.random.normal(ks[14], (7, 7, 2, 1), jnp.float32)
    sg, sb, sm, sv = 1.1, 0.05, 0.02, 1.3
    s_scale = sg / float(np.sqrt(sv + EPS))
    s_bias = sb - sm * s_scale

    return {
        # reference (HWIO) weights / plain BN params
        "w1_hwio": w1, "w2_hwio": w2, "w7_hwio": w7,
        "bn1s": bn1s, "bn1b": bn1b, "bn2s": bn2s, "bn2b": bn2b,
        "fc1w": fc1w, "fc1b": fc1b, "fc2w": fc2w, "fc2b": fc2b,
        "sbn": jnp.array([s_scale, s_bias], jnp.float32),
        # kernel-packed weights
        "w1m": _pack_conv3x3(w1), "w2m": _pack_conv3x3(w2),
        "w7m": _pack_spatial7x7(w7, s_scale),
        "bn1s_row": _tile_w(bn1s), "bn1b_row": _tile_w(bn1b),
        "bn2s_row": _tile_w(bn2s), "bn2b_row": _tile_w(bn2b),
        "sbnb_row": jnp.full((1, L), s_bias, jnp.float32),
    }


def reference_forward(x, p):
    dn = ("NHWC", "HWIO", "NHWC")
    y = jax.lax.conv_general_dilated(x, p["w1_hwio"], (1, 1), "SAME", dimension_numbers=dn)
    y = y * p["bn1s"].reshape(1, 1, 1, -1) + p["bn1b"].reshape(1, 1, 1, -1)
    y = jnp.maximum(y, 0.0)
    y = jax.lax.conv_general_dilated(y, p["w2_hwio"], (1, 1), "SAME", dimension_numbers=dn)
    y = y * p["bn2s"].reshape(1, 1, 1, -1) + p["bn2b"].reshape(1, 1, 1, -1)

    avg = jnp.mean(y, axis=(1, 2))
    mx = jnp.max(y, axis=(1, 2))

    def mlp(v):
        z = jnp.maximum(v @ p["fc1w"] + p["fc1b"], 0.0)
        return z @ p["fc2w"] + p["fc2b"]

    ca = jax.nn.sigmoid(mlp(avg) + mlp(mx))
    y = y * ca[:, None, None, :]

    stacked = jnp.concatenate(
        [jnp.max(y, axis=-1, keepdims=True), jnp.mean(y, axis=-1, keepdims=True)], axis=-1)
    s = jax.lax.conv_general_dilated(stacked, p["w7_hwio"], (1, 1), "SAME", dimension_numbers=dn)
    s = jax.nn.sigmoid(s * p["sbn"][0] + p["sbn"][1])
    y = y * s
    return jnp.maximum(y + x, 0.0)


if __name__ == "__main__":
    key = jax.random.PRNGKey(0)
    kx, kp = jax.random.split(key)
    N = 4
    x = jax.random.normal(kx, (N, H, W, CIN), jnp.float32)   # NHWC (PyTorch NCHW -> transposed)
    params = make_params(kp)

    out = jax.block_until_ready(cso_attention_block(x, params))

    ref = reference_forward(x, params)
    assert out.shape == (N, H, W, COUT)
    err = float(jnp.max(jnp.abs(out - ref)))
    assert jnp.allclose(out, ref, atol=2e-4, rtol=2e-4), f"max abs err = {err}"
    print("KERNEL_OK")
</pallas_src>

<mosaic_0001>
module attributes {stable_mosaic.version = 11 : i64} {
  func.func @cso_block_kernel(%arg0: i32, %arg1: memref<2x8x256xf32, #tpu.memory_space<vmem>>, %arg2: memref<768x256xf32, #tpu.memory_space<vmem>>, %arg3: memref<1x256xf32, #tpu.memory_space<vmem>>, %arg4: memref<1x256xf32, #tpu.memory_space<vmem>>, %arg5: memref<768x256xf32, #tpu.memory_space<vmem>>, %arg6: memref<1x256xf32, #tpu.memory_space<vmem>>, %arg7: memref<1x256xf32, #tpu.memory_space<vmem>>, %arg8: memref<32x2xf32, #tpu.memory_space<vmem>>, %arg9: memref<1x2xf32, #tpu.memory_space<vmem>>, %arg10: memref<2x32xf32, #tpu.memory_space<vmem>>, %arg11: memref<1x32xf32, #tpu.memory_space<vmem>>, %arg12: memref<112x256xf32, #tpu.memory_space<vmem>>, %arg13: memref<1x256xf32, #tpu.memory_space<vmem>>, %arg14: memref<2x8x256xf32, #tpu.memory_space<vmem>>) attributes {dimension_semantics = [#tpu.dimension_semantics<parallel>], iteration_bounds = array<i64: 2>, scalar_prefetch = 0 : i64, scratch_operands = 0 : i64, tpu.core_type = #tpu.core_type<tc>, window_params = [{transform_indices = @transform_0, window_bounds = array<i64: 2, 8, 256>}, {pipeline_mode = #tpu.pipeline_mode<synchronous>, transform_indices = @transform_1, window_bounds = array<i64: 768, 256>}, {pipeline_mode = #tpu.pipeline_mode<synchronous>, transform_indices = @transform_2, window_bounds = array<i64: 1, 256>}, {pipeline_mode = #tpu.pipeline_mode<synchronous>, transform_indices = @transform_3, window_bounds = array<i64: 1, 256>}, {pipeline_mode = #tpu.pipeline_mode<synchronous>, transform_indices = @transform_4, window_bounds = array<i64: 768, 256>}, {pipeline_mode = #tpu.pipeline_mode<synchronous>, transform_indices = @transform_5, window_bounds = array<i64: 1, 256>}, {pipeline_mode = #tpu.pipeline_mode<synchronous>, transform_indices = @transform_6, window_bounds = array<i64: 1, 256>}, {pipeline_mode = #tpu.pipeline_mode<synchronous>, transform_indices = @transform_7, window_bounds = array<i64: 32, 2>}, {pipeline_mode = #tpu.pipeline_mode<synchronous>, transform_indices = @transform_8, window_bounds = array<i64: 1, 2>}, {pipeline_mode = #tpu.pipeline_mode<synchronous>, transform_indices = @transform_9, window_bounds = array<i64: 2, 32>}, {pipeline_mode = #tpu.pipeline_mode<synchronous>, transform_indices = @transform_10, window_bounds = array<i64: 1, 32>}, {pipeline_mode = #tpu.pipeline_mode<synchronous>, transform_indices = @transform_11, window_bounds = array<i64: 112, 256>}, {pipeline_mode = #tpu.pipeline_mode<synchronous>, transform_indices = @transform_12, window_bounds = array<i64: 1, 256>}, {transform_indices = @transform_13, window_bounds = array<i64: 2, 8, 256>}]} {
    %c0 = arith.constant 0 : index
    %c0_0 = arith.constant 0 : index
    %c0_1 = arith.constant 0 : index
    %0 = vector.load %arg1[%c0, %c0_0, %c0_1] : memref<2x8x256xf32, #tpu.memory_space<vmem>>, vector<2x8x256xf32>
    %cst = arith.constant 0.000000e+00 : f32
    %1 = vector.broadcast %cst : f32 to vector<2x1x256xf32>
    %2 = vector.extract_strided_slice %0 {offsets = [0, 0, 0], sizes = [2, 7, 256], strides = [1, 1, 1]} : vector<2x8x256xf32> to vector<2x7x256xf32>
    %3 = tpu.concatenate %1, %2 in 1 : vector<2x1x256xf32>, vector<2x7x256xf32> -> vector<2x8x256xf32>
    %cst_2 = arith.constant 0.000000e+00 : f32
    %4 = vector.broadcast %cst_2 : f32 to vector<2x1x256xf32>
    %5 = vector.extract_strided_slice %0 {offsets = [0, 1, 0], sizes = [2, 7, 256], strides = [1, 1, 1]} : vector<2x8x256xf32> to vector<2x7x256xf32>
    %6 = tpu.concatenate %5, %4 in 1 : vector<2x7x256xf32>, vector<2x1x256xf32> -> vector<2x8x256xf32>
    %7 = tpu.concatenate %3, %0, %6 in 2 : vector<2x8x256xf32>, vector<2x8x256xf32>, vector<2x8x256xf32> -> vector<2x8x768xf32>
    %8 = vector.shape_cast %7 : vector<2x8x768xf32> to vector<16x768xf32>
    %c0_3 = arith.constant 0 : index
    %c0_4 = arith.constant 0 : index
    %9 = vector.load %arg2[%c0_3, %c0_4] : memref<768x256xf32, #tpu.memory_space<vmem>>, vector<768x256xf32>
    %cst_5 = arith.constant dense<0.000000e+00> : vector<16x256xf32>
    %10 = tpu.matmul %8, %9, %cst_5 {dimension_numbers = #tpu.dot_dimension_numbers<[1], [0], [0], [1], [0, 0, 1, 1], [], []>} : vector<16x768xf32>, vector<768x256xf32>, vector<16x256xf32> -> vector<16x256xf32>
    %c0_6 = arith.constant 0 : index
    %c0_7 = arith.constant 0 : index
    %11 = vector.load %arg3[%c0_6, %c0_7] : memref<1x256xf32, #tpu.memory_space<vmem>>, vector<1x256xf32>
    %12 = vector.broadcast %11 : vector<1x256xf32> to vector<16x256xf32>
    %13 = arith.mulf %10, %12 : vector<16x256xf32>
    %c0_8 = arith.constant 0 : index
    %c0_9 = arith.constant 0 : index
    %14 = vector.load %arg4[%c0_8, %c0_9] : memref<1x256xf32, #tpu.memory_space<vmem>>, vector<1x256xf32>
    %15 = vector.broadcast %14 : vector<1x256xf32> to vector<16x256xf32>
    %16 = arith.addf %13, %15 : vector<16x256xf32>
    %cst_10 = arith.constant 0.000000e+00 : f32
    %17 = vector.broadcast %cst_10 : f32 to vector<16x256xf32>
    %18 = arith.maximumf %16, %17 : vector<16x256xf32>
    %19 = vector.shape_cast %18 : vector<16x256xf32> to vector<2x8x256xf32>
    %cst_11 = arith.constant 0.000000e+00 : f32
    %20 = vector.broadcast %cst_11 : f32 to vector<2x1x256xf32>
    %21 = vector.extract_strided_slice %19 {offsets = [0, 0, 0], sizes = [2, 7, 256], strides = [1, 1, 1]} : vector<2x8x256xf32> to vector<2x7x256xf32>
    %22 = tpu.concatenate %20, %21 in 1 : vector<2x1x256xf32>, vector<2x7x256xf32> -> vector<2x8x256xf32>
    %cst_12 = arith.constant 0.000000e+00 : f32
    %23 = vector.broadcast %cst_12 : f32 to vector<2x1x256xf32>
    %24 = vector.extract_strided_slice %19 {offsets = [0, 1, 0], sizes = [2, 7, 256], strides = [1, 1, 1]} : vector<2x8x256xf32> to vector<2x7x256xf32>
    %25 = tpu.concatenate %24, %23 in 1 : vector<2x7x256xf32>, vector<2x1x256xf32> -> vector<2x8x256xf32>
    %26 = tpu.concatenate %22, %19, %25 in 2 : vector<2x8x256xf32>, vector<2x8x256xf32>, vector<2x8x256xf32> -> vector<2x8x768xf32>
    %27 = vector.shape_cast %26 : vector<2x8x768xf32> to vector<16x768xf32>
    %c0_13 = arith.constant 0 : index
    %c0_14 = arith.constant 0 : index
    %28 = vector.load %arg5[%c0_13, %c0_14] : memref<768x256xf32, #tpu.memory_space<vmem>>, vector<768x256xf32>
    %cst_15 = arith.constant dense<0.000000e+00> : vector<16x256xf32>
    %29 = tpu.matmul %27, %28, %cst_15 {dimension_numbers = #tpu.dot_dimension_numbers<[1], [0], [0], [1], [0, 0, 1, 1], [], []>} : vector<16x768xf32>, vector<768x256xf32>, vector<16x256xf32> -> vector<16x256xf32>
    %c0_16 = arith.constant 0 : index
    %c0_17 = arith.constant 0 : index
    %30 = vector.load %arg6[%c0_16, %c0_17] : memref<1x256xf32, #tpu.memory_space<vmem>>, vector<1x256xf32>
    %31 = vector.broadcast %30 : vector<1x256xf32> to vector<16x256xf32>
    %32 = arith.mulf %29, %31 : vector<16x256xf32>
    %c0_18 = arith.constant 0 : index
    %c0_19 = arith.constant 0 : index
    %33 = vector.load %arg7[%c0_18, %c0_19] : memref<1x256xf32, #tpu.memory_space<vmem>>, vector<1x256xf32>
    %34 = vector.broadcast %33 : vector<1x256xf32> to vector<16x256xf32>
    %35 = arith.addf %32, %34 : vector<16x256xf32>
    %36 = vector.shape_cast %35 : vector<16x256xf32> to vector<2x8x256xf32>
    %cst_20 = arith.constant dense<0.000000e+00> : vector<2x256xf32>
    %37 = vector.multi_reduction <add>, %36, %cst_20 [1] : vector<2x8x256xf32> to vector<2x256xf32>
    %cst_21 = arith.constant dense<0xFF800000> : vector<2x256xf32>
    %38 = vector.multi_reduction <maximumf>, %36, %cst_21 [1] : vector<2x8x256xf32> to vector<2x256xf32>
    %39 = vector.extract_strided_slice %37 {offsets = [0, 0], sizes = [2, 32], strides = [1, 1]} : vector<2x256xf32> to vector<2x32xf32>
    %40 = vector.extract_strided_slice %38 {offsets = [0, 0], sizes = [2, 32], strides = [1, 1]} : vector<2x256xf32> to vector<2x32xf32>
    %41 = vector.extract_strided_slice %37 {offsets = [0, 32], sizes = [2, 32], strides = [1, 1]} : vector<2x256xf32> to vector<2x32xf32>
    %42 = arith.addf %39, %41 : vector<2x32xf32>
    %43 = vector.extract_strided_slice %38 {offsets = [0, 32], sizes = [2, 32], strides = [1, 1]} : vector<2x256xf32> to vector<2x32xf32>
    %44 = arith.maximumf %40, %43 : vector<2x32xf32>
    %45 = vector.extract_strided_slice %37 {offsets = [0, 64], sizes = [2, 32], strides = [1, 1]} : vector<2x256xf32> to vector<2x32xf32>
    %46 = arith.addf %42, %45 : vector<2x32xf32>
    %47 = vector.extract_strided_slice %38 {offsets = [0, 64], sizes = [2, 32], strides = [1, 1]} : vector<2x256xf32> to vector<2x32xf32>
    %48 = arith.maximumf %44, %47 : vector<2x32xf32>
    %49 = vector.extract_strided_slice %37 {offsets = [0, 96], sizes = [2, 32], strides = [1, 1]} : vector<2x256xf32> to vector<2x32xf32>
    %50 = arith.addf %46, %49 : vector<2x32xf32>
    %51 = vector.extract_strided_slice %38 {offsets = [0, 96], sizes = [2, 32], strides = [1, 1]} : vector<2x256xf32> to vector<2x32xf32>
    %52 = arith.maximumf %48, %51 : vector<2x32xf32>
    %53 = vector.extract_strided_slice %37 {offsets = [0, 128], sizes = [2, 32], strides = [1, 1]} : vector<2x256xf32> to vector<2x32xf32>
    %54 = arith.addf %50, %53 : vector<2x32xf32>
    %55 = vector.extract_strided_slice %38 {offsets = [0, 128], sizes = [2, 32], strides = [1, 1]} : vector<2x256xf32> to vector<2x32xf32>
    %56 = arith.maximumf %52, %55 : vector<2x32xf32>
    %57 = vector.extract_strided_slice %37 {offsets = [0, 160], sizes = [2, 32], strides = [1, 1]} : vector<2x256xf32> to vector<2x32xf32>
    %58 = arith.addf %54, %57 : vector<2x32xf32>
    %59 = vector.extract_strided_slice %38 {offsets = [0, 160], sizes = [2, 32], strides = [1, 1]} : vector<2x256xf32> to vector<2x32xf32>
    %60 = arith.maximumf %56, %59 : vector<2x32xf32>
    %61 = vector.extract_strided_slice %37 {offsets = [0, 192], sizes = [2, 32], strides = [1, 1]} : vector<2x256xf32> to vector<2x32xf32>
    %62 = arith.addf %58, %61 : vector<2x32xf32>
    %63 = vector.extract_strided_slice %38 {offsets = [0, 192], sizes = [2, 32], strides = [1, 1]} : vector<2x256xf32> to vector<2x32xf32>
    %64 = arith.maximumf %60, %63 : vector<2x32xf32>
    %65 = vector.extract_strided_slice %37 {offsets = [0, 224], sizes = [2, 32], strides = [1, 1]} : vector<2x256xf32> to vector<2x32xf32>
    %66 = arith.addf %62, %65 : vector<2x32xf32>
    %67 = vector.extract_strided_slice %38 {offsets = [0, 224], sizes = [2, 32], strides = [1, 1]} : vector<2x256xf32> to vector<2x32xf32>
    %68 = arith.maximumf %64, %67 : vector<2x32xf32>
    %cst_22 = arith.constant 1.562500e-02 : f32
    %69 = vector.broadcast %cst_22 : f32 to vector<2x32xf32>
    %70 = arith.mulf %66, %69 : vector<2x32xf32>
    %71 = tpu.concatenate %70, %68 in 0 : vector<2x32xf32>, vector<2x32xf32> -> vector<4x32xf32>
    %c0_23 = arith.constant 0 : index
    %c0_24 = arith.constant 0 : index
    %72 = vector.load %arg8[%c0_23, %c0_24] : memref<32x2xf32, #tpu.memory_space<vmem>>, vector<32x2xf32>
    %cst_25 = arith.constant dense<0.000000e+00> : vector<4x2xf32>
    %73 = tpu.matmul %71, %72, %cst_25 {dimension_numbers = #tpu.dot_dimension_numbers<[1], [0], [0], [1], [0, 0, 1, 1], [], []>} : vector<4x32xf32>, vector<32x2xf32>, vector<4x2xf32> -> vector<4x2xf32>
    %c0_26 = arith.constant 0 : index
    %c0_27 = arith.constant 0 : index
    %74 = vector.load %arg9[%c0_26, %c0_27] : memref<1x2xf32, #tpu.memory_space<vmem>>, vector<1x2xf32>
    %75 = vector.broadcast %74 : vector<1x2xf32> to vector<4x2xf32>
    %76 = arith.addf %73, %75 : vector<4x2xf32>
    %cst_28 = arith.constant 0.000000e+00 : f32
    %77 = vector.broadcast %cst_28 : f32 to vector<4x2xf32>
    %78 = arith.maximumf %76, %77 : vector<4x2xf32>
    %c0_29 = arith.constant 0 : index
    %c0_30 = arith.constant 0 : index
    %79 = vector.load %arg10[%c0_29, %c0_30] : memref<2x32xf32, #tpu.memory_space<vmem>>, vector<2x32xf32>
    %cst_31 = arith.constant dense<0.000000e+00> : vector<4x32xf32>
    %80 = tpu.matmul %78, %79, %cst_31 {dimension_numbers = #tpu.dot_dimension_numbers<[1], [0], [0], [1], [0, 0, 1, 1], [], []>} : vector<4x2xf32>, vector<2x32xf32>, vector<4x32xf32> -> vector<4x32xf32>
    %c0_32 = arith.constant 0 : index
    %c0_33 = arith.constant 0 : index
    %81 = vector.load %arg11[%c0_32, %c0_33] : memref<1x32xf32, #tpu.memory_space<vmem>>, vector<1x32xf32>
    %82 = vector.broadcast %81 : vector<1x32xf32> to vector<4x32xf32>
    %83 = arith.addf %80, %82 : vector<4x32xf32>
    %84 = vector.extract_strided_slice %83 {offsets = [0, 0], sizes = [2, 32], strides = [1, 1]} : vector<4x32xf32> to vector<2x32xf32>
    %85 = vector.extract_strided_slice %83 {offsets = [2, 0], sizes = [2, 32], strides = [1, 1]} : vector<4x32xf32> to vector<2x32xf32>
    %86 = arith.addf %84, %85 : vector<2x32xf32>
    %cst_34 = arith.constant 0.000000e+00 : f32
    %87 = vector.broadcast %cst_34 : f32 to vector<2x32xf32>
    %88 = arith.subf %87, %86 : vector<2x32xf32>
    %89 = math.exp %88 : vector<2x32xf32>
    %cst_35 = arith.constant 1.000000e+00 : f32
    %90 = vector.broadcast %cst_35 : f32 to vector<2x32xf32>
    %91 = arith.addf %90, %89 : vector<2x32xf32>
    %92 = tpu.reciprocal %91 : vector<2x32xf32> -> vector<2x32xf32>
    %93 = tpu.concatenate %92, %92, %92, %92, %92, %92, %92, %92 in 1 : vector<2x32xf32>, vector<2x32xf32>, vector<2x32xf32>, vector<2x32xf32>, vector<2x32xf32>, vector<2x32xf32>, vector<2x32xf32>, vector<2x32xf32> -> vector<2x256xf32>
    %94 = vector.shape_cast %93 : vector<2x256xf32> to vector<2x1x256xf32>
    %95 = vector.broadcast %94 : vector<2x1x256xf32> to vector<2x8x256xf32>
    %96 = arith.mulf %36, %95 : vector<2x8x256xf32>
    %97 = vector.extract_strided_slice %96 {offsets = [0, 0, 0], sizes = [2, 8, 32], strides = [1, 1, 1]} : vector<2x8x256xf32> to vector<2x8x32xf32>
    %cst_36 = arith.constant dense<0xFF800000> : vector<2x8xf32>
    %98 = vector.multi_reduction <maximumf>, %97, %cst_36 [2] : vector<2x8x32xf32> to vector<2x8xf32>
    %99 = vector.shape_cast %98 : vector<2x8xf32> to vector<2x8x1xf32>
    %cst_37 = arith.constant dense<0.000000e+00> : vector<2x8xf32>
    %100 = vector.multi_reduction <add>, %97, %cst_37 [2] : vector<2x8x32xf32> to vector<2x8xf32>
    %101 = vector.shape_cast %100 : vector<2x8xf32> to vector<2x8x1xf32>
    %cst_38 = arith.constant 3.200000e+01 : f32
    %102 = vector.broadcast %cst_38 : f32 to vector<2x8x1xf32>
    %103 = arith.divf %101, %102 : vector<2x8x1xf32>
    %104 = vector.extract_strided_slice %96 {offsets = [0, 0, 32], sizes = [2, 8, 32], strides = [1, 1, 1]} : vector<2x8x256xf32> to vector<2x8x32xf32>
    %cst_39 = arith.constant dense<0xFF800000> : vector<2x8xf32>
    %105 = vector.multi_reduction <maximumf>, %104, %cst_39 [2] : vector<2x8x32xf32> to vector<2x8xf32>
    %106 = vector.shape_cast %105 : vector<2x8xf32> to vector<2x8x1xf32>
    %cst_40 = arith.constant dense<0.000000e+00> : vector<2x8xf32>
    %107 = vector.multi_reduction <add>, %104, %cst_40 [2] : vector<2x8x32xf32> to vector<2x8xf32>
    %108 = vector.shape_cast %107 : vector<2x8xf32> to vector<2x8x1xf32>
    %cst_41 = arith.constant 3.200000e+01 : f32
    %109 = vector.broadcast %cst_41 : f32 to vector<2x8x1xf32>
    %110 = arith.divf %108, %109 : vector<2x8x1xf32>
    %111 = vector.extract_strided_slice %96 {offsets = [0, 0, 64], sizes = [2, 8, 32], strides = [1, 1, 1]} : vector<2x8x256xf32> to vector<2x8x32xf32>
    %cst_42 = arith.constant dense<0xFF800000> : vector<2x8xf32>
    %112 = vector.multi_reduction <maximumf>, %111, %cst_42 [2] : vector<2x8x32xf32> to vector<2x8xf32>
    %113 = vector.shape_cast %112 : vector<2x8xf32> to vector<2x8x1xf32>
    %cst_43 = arith.constant dense<0.000000e+00> : vector<2x8xf32>
    %114 = vector.multi_reduction <add>, %111, %cst_43 [2] : vector<2x8x32xf32> to vector<2x8xf32>
    %115 = vector.shape_cast %114 : vector<2x8xf32> to vector<2x8x1xf32>
    %cst_44 = arith.constant 3.200000e+01 : f32
    %116 = vector.broadcast %cst_44 : f32 to vector<2x8x1xf32>
    %117 = arith.divf %115, %116 : vector<2x8x1xf32>
    %118 = vector.extract_strided_slice %96 {offsets = [0, 0, 96], sizes = [2, 8, 32], strides = [1, 1, 1]} : vector<2x8x256xf32> to vector<2x8x32xf32>
    %cst_45 = arith.constant dense<0xFF800000> : vector<2x8xf32>
    %119 = vector.multi_reduction <maximumf>, %118, %cst_45 [2] : vector<2x8x32xf32> to vector<2x8xf32>
    %120 = vector.shape_cast %119 : vector<2x8xf32> to vector<2x8x1xf32>
    %cst_46 = arith.constant dense<0.000000e+00> : vector<2x8xf32>
    %121 = vector.multi_reduction <add>, %118, %cst_46 [2] : vector<2x8x32xf32> to vector<2x8xf32>
    %122 = vector.shape_cast %121 : vector<2x8xf32> to vector<2x8x1xf32>
    %cst_47 = arith.constant 3.200000e+01 : f32
    %123 = vector.broadcast %cst_47 : f32 to vector<2x8x1xf32>
    %124 = arith.divf %122, %123 : vector<2x8x1xf32>
    %125 = vector.extract_strided_slice %96 {offsets = [0, 0, 128], sizes = [2, 8, 32], strides = [1, 1, 1]} : vector<2x8x256xf32> to vector<2x8x32xf32>
    %cst_48 = arith.constant dense<0xFF800000> : vector<2x8xf32>
    %126 = vector.multi_reduction <maximumf>, %125, %cst_48 [2] : vector<2x8x32xf32> to vector<2x8xf32>
    %127 = vector.shape_cast %126 : vector<2x8xf32> to vector<2x8x1xf32>
    %cst_49 = arith.constant dense<0.000000e+00> : vector<2x8xf32>
    %128 = vector.multi_reduction <add>, %125, %cst_49 [2] : vector<2x8x32xf32> to vector<2x8xf32>
    %129 = vector.shape_cast %128 : vector<2x8xf32> to vector<2x8x1xf32>
    %cst_50 = arith.constant 3.200000e+01 : f32
    %130 = vector.broadcast %cst_50 : f32 to vector<2x8x1xf32>
    %131 = arith.divf %129, %130 : vector<2x8x1xf32>
    %132 = vector.extract_strided_slice %96 {offsets = [0, 0, 160], sizes = [2, 8, 32], strides = [1, 1, 1]} : vector<2x8x256xf32> to vector<2x8x32xf32>
    %cst_51 = arith.constant dense<0xFF800000> : vector<2x8xf32>
    %133 = vector.multi_reduction <maximumf>, %132, %cst_51 [2] : vector<2x8x32xf32> to vector<2x8xf32>
    %134 = vector.shape_cast %133 : vector<2x8xf32> to vector<2x8x1xf32>
    %cst_52 = arith.constant dense<0.000000e+00> : vector<2x8xf32>
    %135 = vector.multi_reduction <add>, %132, %cst_52 [2] : vector<2x8x32xf32> to vector<2x8xf32>
    %136 = vector.shape_cast %135 : vector<2x8xf32> to vector<2x8x1xf32>
    %cst_53 = arith.constant 3.200000e+01 : f32
    %137 = vector.broadcast %cst_53 : f32 to vector<2x8x1xf32>
    %138 = arith.divf %136, %137 : vector<2x8x1xf32>
    %139 = vector.extract_strided_slice %96 {offsets = [0, 0, 192], sizes = [2, 8, 32], strides = [1, 1, 1]} : vector<2x8x256xf32> to vector<2x8x32xf32>
    %cst_54 = arith.constant dense<0xFF800000> : vector<2x8xf32>
    %140 = vector.multi_reduction <maximumf>, %139, %cst_54 [2] : vector<2x8x32xf32> to vector<2x8xf32>
    %141 = vector.shape_cast %140 : vector<2x8xf32> to vector<2x8x1xf32>
    %cst_55 = arith.constant dense<0.000000e+00> : vector<2x8xf32>
    %142 = vector.multi_reduction <add>, %139, %cst_55 [2] : vector<2x8x32xf32> to vector<2x8xf32>
    %143 = vector.shape_cast %142 : vector<2x8xf32> to vector<2x8x1xf32>
    %cst_56 = arith.constant 3.200000e+01 : f32
    %144 = vector.broadcast %cst_56 : f32 to vector<2x8x1xf32>
    %145 = arith.divf %143, %144 : vector<2x8x1xf32>
    %146 = vector.extract_strided_slice %96 {offsets = [0, 0, 224], sizes = [2, 8, 32], strides = [1, 1, 1]} : vector<2x8x256xf32> to vector<2x8x32xf32>
    %cst_57 = arith.constant dense<0xFF800000> : vector<2x8xf32>
    %147 = vector.multi_reduction <maximumf>, %146, %cst_57 [2] : vector<2x8x32xf32> to vector<2x8xf32>
    %148 = vector.shape_cast %147 : vector<2x8xf32> to vector<2x8x1xf32>
    %cst_58 = arith.constant dense<0.000000e+00> : vector<2x8xf32>
    %149 = vector.multi_reduction <add>, %146, %cst_58 [2] : vector<2x8x32xf32> to vector<2x8xf32>
    %150 = vector.shape_cast %149 : vector<2x8xf32> to vector<2x8x1xf32>
    %cst_59 = arith.constant 3.200000e+01 : f32
    %151 = vector.broadcast %cst_59 : f32 to vector<2x8x1xf32>
    %152 = arith.divf %150, %151 : vector<2x8x1xf32>
    %153 = tpu.concatenate %99, %106, %113, %120, %127, %134, %141, %148 in 2 : vector<2x8x1xf32>, vector<2x8x1xf32>, vector<2x8x1xf32>, vector<2x8x1xf32>, vector<2x8x1xf32>, vector<2x8x1xf32>, vector<2x8x1xf32>, vector<2x8x1xf32> -> vector<2x8x8xf32>
    %154 = tpu.concatenate %103, %110, %117, %124, %131, %138, %145, %152 in 2 : vector<2x8x1xf32>, vector<2x8x1xf32>, vector<2x8x1xf32>, vector<2x8x1xf32>, vector<2x8x1xf32>, vector<2x8x1xf32>, vector<2x8x1xf32>, vector<2x8x1xf32> -> vector<2x8x8xf32>
    %cst_60 = arith.constant 0.000000e+00 : f32
    %155 = vector.broadcast %cst_60 : f32 to vector<2x3x8xf32>
    %156 = vector.extract_strided_slice %153 {offsets = [0, 0, 0], sizes = [2, 5, 8], strides = [1, 1, 1]} : vector<2x8x8xf32> to vector<2x5x8xf32>
    %157 = tpu.concatenate %155, %156 in 1 : vector<2x3x8xf32>, vector<2x5x8xf32> -> vector<2x8x8xf32>
    %cst_61 = arith.constant 0.000000e+00 : f32
    %158 = vector.broadcast %cst_61 : f32 to vector<2x3x8xf32>
    %159 = vector.extract_strided_slice %154 {offsets = [0, 0, 0], sizes = [2, 5, 8], strides = [1, 1, 1]} : vector<2x8x8xf32> to vector<2x5x8xf32>
    %160 = tpu.concatenate %158, %159 in 1 : vector<2x3x8xf32>, vector<2x5x8xf32> -> vector<2x8x8xf32>
    %cst_62 = arith.constant 0.000000e+00 : f32
    %161 = vector.broadcast %cst_62 : f32 to vector<2x2x8xf32>
    %162 = vector.extract_strided_slice %153 {offsets = [0, 0, 0], sizes = [2, 6, 8], strides = [1, 1, 1]} : vector<2x8x8xf32> to vector<2x6x8xf32>
    %163 = tpu.concatenate %161, %162 in 1 : vector<2x2x8xf32>, vector<2x6x8xf32> -> vector<2x8x8xf32>
    %cst_63 = arith.constant 0.000000e+00 : f32
    %164 = vector.broadcast %cst_63 : f32 to vector<2x2x8xf32>
    %165 = vector.extract_strided_slice %154 {offsets = [0, 0, 0], sizes = [2, 6, 8], strides = [1, 1, 1]} : vector<2x8x8xf32> to vector<2x6x8xf32>
    %166 = tpu.concatenate %164, %165 in 1 : vector<2x2x8xf32>, vector<2x6x8xf32> -> vector<2x8x8xf32>
    %cst_64 = arith.constant 0.000000e+00 : f32
    %167 = vector.broadcast %cst_64 : f32 to vector<2x1x8xf32>
    %168 = vector.extract_strided_slice %153 {offsets = [0, 0, 0], sizes = [2, 7, 8], strides = [1, 1, 1]} : vector<2x8x8xf32> to vector<2x7x8xf32>
    %169 = tpu.concatenate %167, %168 in 1 : vector<2x1x8xf32>, vector<2x7x8xf32> -> vector<2x8x8xf32>
    %cst_65 = arith.constant 0.000000e+00 : f32
    %170 = vector.broadcast %cst_65 : f32 to vector<2x1x8xf32>
    %171 = vector.extract_strided_slice %154 {offsets = [0, 0, 0], sizes = [2, 7, 8], strides = [1, 1, 1]} : vector<2x8x8xf32> to vector<2x7x8xf32>
    %172 = tpu.concatenate %170, %171 in 1 : vector<2x1x8xf32>, vector<2x7x8xf32> -> vector<2x8x8xf32>
    %cst_66 = arith.constant 0.000000e+00 : f32
    %173 = vector.broadcast %cst_66 : f32 to vector<2x1x8xf32>
    %174 = vector.extract_strided_slice %153 {offsets = [0, 1, 0], sizes = [2, 7, 8], strides = [1, 1, 1]} : vector<2x8x8xf32> to vector<2x7x8xf32>
    %175 = tpu.concatenate %174, %173 in 1 : vector<2x7x8xf32>, vector<2x1x8xf32> -> vector<2x8x8xf32>
    %cst_67 = arith.constant 0.000000e+00 : f32
    %176 = vector.broadcast %cst_67 : f32 to vector<2x1x8xf32>
    %177 = vector.extract_strided_slice %154 {offsets = [0, 1, 0], sizes = [2, 7, 8], strides = [1, 1, 1]} : vector<2x8x8xf32> to vector<2x7x8xf32>
    %178 = tpu.concatenate %177, %176 in 1 : vector<2x7x8xf32>, vector<2x1x8xf32> -> vector<2x8x8xf32>
    %cst_68 = arith.constant 0.000000e+00 : f32
    %179 = vector.broadcast %cst_68 : f32 to vector<2x2x8xf32>
    %180 = vector.extract_strided_slice %153 {offsets = [0, 2, 0], sizes = [2, 6, 8], strides = [1, 1, 1]} : vector<2x8x8xf32> to vector<2x6x8xf32>
    %181 = tpu.concatenate %180, %179 in 1 : vector<2x6x8xf32>, vector<2x2x8xf32> -> vector<2x8x8xf32>
    %cst_69 = arith.constant 0.000000e+00 : f32
    %182 = vector.broadcast %cst_69 : f32 to vector<2x2x8xf32>
    %183 = vector.extract_strided_slice %154 {offsets = [0, 2, 0], sizes = [2, 6, 8], strides = [1, 1, 1]} : vector<2x8x8xf32> to vector<2x6x8xf32>
    %184 = tpu.concatenate %183, %182 in 1 : vector<2x6x8xf32>, vector<2x2x8xf32> -> vector<2x8x8xf32>
    %cst_70 = arith.constant 0.000000e+00 : f32
    %185 = vector.broadcast %cst_70 : f32 to vector<2x3x8xf32>
    %186 = vector.extract_strided_slice %153 {offsets = [0, 3, 0], sizes = [2, 5, 8], strides = [1, 1, 1]} : vector<2x8x8xf32> to vector<2x5x8xf32>
    %187 = tpu.concatenate %186, %185 in 1 : vector<2x5x8xf32>, vector<2x3x8xf32> -> vector<2x8x8xf32>
    %cst_71 = arith.constant 0.000000e+00 : f32
    %188 = vector.broadcast %cst_71 : f32 to vector<2x3x8xf32>
    %189 = vector.extract_strided_slice %154 {offsets = [0, 3, 0], sizes = [2, 5, 8], strides = [1, 1, 1]} : vector<2x8x8xf32> to vector<2x5x8xf32>
    %190 = tpu.concatenate %189, %188 in 1 : vector<2x5x8xf32>, vector<2x3x8xf32> -> vector<2x8x8xf32>
    %191 = tpu.concatenate %157, %160, %163, %166, %169, %172, %153, %154, %175, %178, %181, %184, %187, %190 in 2 : vector<2x8x8xf32>, vector<2x8x8xf32>, vector<2x8x8xf32>, vector<2x8x8xf32>, vector<2x8x8xf32>, vector<2x8x8xf32>, vector<2x8x8xf32>, vector<2x8x8xf32>, vector<2x8x8xf32>, vector<2x8x8xf32>, vector<2x8x8xf32>, vector<2x8x8xf32>, vector<2x8x8xf32>, vector<2x8x8xf32> -> vector<2x8x112xf32>
    %192 = vector.shape_cast %191 : vector<2x8x112xf32> to vector<16x112xf32>
    %c0_72 = arith.constant 0 : index
    %c0_73 = arith.constant 0 : index
    %193 = vector.load %arg12[%c0_72, %c0_73] : memref<112x256xf32, #tpu.memory_space<vmem>>, vector<112x256xf32>
    %cst_74 = arith.constant dense<0.000000e+00> : vector<16x256xf32>
    %194 = tpu.matmul %192, %193, %cst_74 {dimension_numbers = #tpu.dot_dimension_numbers<[1], [0], [0], [1], [0, 0, 1, 1], [], []>} : vector<16x112xf32>, vector<112x256xf32>, vector<16x256xf32> -> vector<16x256xf32>
    %c0_75 = arith.constant 0 : index
    %c0_76 = arith.constant 0 : index
    %195 = vector.load %arg13[%c0_75, %c0_76] : memref<1x256xf32, #tpu.memory_space<vmem>>, vector<1x256xf32>
    %196 = vector.broadcast %195 : vector<1x256xf32> to vector<16x256xf32>
    %197 = arith.addf %194, %196 : vector<16x256xf32>
    %cst_77 = arith.constant 0.000000e+00 : f32
    %198 = vector.broadcast %cst_77 : f32 to vector<16x256xf32>
    %199 = arith.subf %198, %197 : vector<16x256xf32>
    %200 = math.exp %199 : vector<16x256xf32>
    %cst_78 = arith.constant 1.000000e+00 : f32
    %201 = vector.broadcast %cst_78 : f32 to vector<16x256xf32>
    %202 = arith.addf %201, %200 : vector<16x256xf32>
    %203 = tpu.reciprocal %202 : vector<16x256xf32> -> vector<16x256xf32>
    %204 = vector.shape_cast %203 : vector<16x256xf32> to vector<2x8x256xf32>
    %205 = arith.mulf %96, %204 : vector<2x8x256xf32>
    %c0_79 = arith.constant 0 : index
    %c0_80 = arith.constant 0 : index
    %c0_81 = arith.constant 0 : index
    %206 = vector.load %arg1[%c0_79, %c0_80, %c0_81] : memref<2x8x256xf32, #tpu.memory_space<vmem>>, vector<2x8x256xf32>
    %207 = arith.addf %205, %206 : vector<2x8x256xf32>
    %cst_82 = arith.constant 0.000000e+00 : f32
    %208 = vector.broadcast %cst_82 : f32 to vector<2x8x256xf32>
    %209 = arith.maximumf %207, %208 : vector<2x8x256xf32>
    %c0_83 = arith.constant 0 : index
    %c0_84 = arith.constant 0 : index
    %c0_85 = arith.constant 0 : index
    %210 = vector.load %arg14[%c0_83, %c0_84, %c0_85] : memref<2x8x256xf32, #tpu.memory_space<vmem>>, vector<2x8x256xf32>
    tpu.vector_store %arg14[%c0_83, %c0_84, %c0_85], %209 {strides = array<i32>} : memref<2x8x256xf32, #tpu.memory_space<vmem>>, vector<2x8x256xf32>,
    return
  }
  func.func @transform_0(%arg0: i32) -> (i32, i32, i32) {
    %c0_i32 = arith.constant 0 : i32
    %c0_i32_0 = arith.constant 0 : i32
    %c0_i32_1 = arith.constant 0 : i32
    return %arg0, %c0_i32, %c0_i32_0 : i32, i32, i32
  }
  func.func @transform_1(%arg0: i32) -> (i32, i32) {
    %c0_i32 = arith.constant 0 : i32
    %c0_i32_0 = arith.constant 0 : i32
    %c0_i32_1 = arith.constant 0 : i32
    return %c0_i32, %c0_i32_0 : i32, i32
  }
  func.func @transform_2(%arg0: i32) -> (i32, i32) {
    %c0_i32 = arith.constant 0 : i32
    %c0_i32_0 = arith.constant 0 : i32
    %c0_i32_1 = arith.constant 0 : i32
    return %c0_i32, %c0_i32_0 : i32, i32
  }
  func.func @transform_3(%arg0: i32) -> (i32, i32) {
    %c0_i32 = arith.constant 0 : i32
    %c0_i32_0 = arith.constant 0 : i32
    %c0_i32_1 = arith.constant 0 : i32
    return %c0_i32, %c0_i32_0 : i32, i32
  }
  func.func @transform_4(%arg0: i32) -> (i32, i32) {
    %c0_i32 = arith.constant 0 : i32
    %c0_i32_0 = arith.constant 0 : i32
    %c0_i32_1 = arith.constant 0 : i32
    return %c0_i32, %c0_i32_0 : i32, i32
  }
  func.func @transform_5(%arg0: i32) -> (i32, i32) {
    %c0_i32 = arith.constant 0 : i32
    %c0_i32_0 = arith.constant 0 : i32
    %c0_i32_1 = arith.constant 0 : i32
    return %c0_i32, %c0_i32_0 : i32, i32
  }
  func.func @transform_6(%arg0: i32) -> (i32, i32) {
    %c0_i32 = arith.constant 0 : i32
    %c0_i32_0 = arith.constant 0 : i32
    %c0_i32_1 = arith.constant 0 : i32
    return %c0_i32, %c0_i32_0 : i32, i32
  }
  func.func @transform_7(%arg0: i32) -> (i32, i32) {
    %c0_i32 = arith.constant 0 : i32
    %c0_i32_0 = arith.constant 0 : i32
    %c0_i32_1 = arith.constant 0 : i32
    return %c0_i32, %c0_i32_0 : i32, i32
  }
  func.func @transform_8(%arg0: i32) -> (i32, i32) {
    %c0_i32 = arith.constant 0 : i32
    %c0_i32_0 = arith.constant 0 : i32
    %c0_i32_1 = arith.constant 0 : i32
    return %c0_i32, %c0_i32_0 : i32, i32
  }
  func.func @transform_9(%arg0: i32) -> (i32, i32) {
    %c0_i32 = arith.constant 0 : i32
    %c0_i32_0 = arith.constant 0 : i32
    %c0_i32_1 = arith.constant 0 : i32
    return %c0_i32, %c0_i32_0 : i32, i32
  }
  func.func @transform_10(%arg0: i32) -> (i32, i32) {
    %c0_i32 = arith.constant 0 : i32
    %c0_i32_0 = arith.constant 0 : i32
    %c0_i32_1 = arith.constant 0 : i32
    return %c0_i32, %c0_i32_0 : i32, i32
  }
  func.func @transform_11(%arg0: i32) -> (i32, i32) {
    %c0_i32 = arith.constant 0 : i32
    %c0_i32_0 = arith.constant 0 : i32
    %c0_i32_1 = arith.constant 0 : i32
    return %c0_i32, %c0_i32_0 : i32, i32
  }
  func.func @transform_12(%arg0: i32) -> (i32, i32) {
    %c0_i32 = arith.constant 0 : i32
    %c0_i32_0 = arith.constant 0 : i32
    %c0_i32_1 = arith.constant 0 : i32
    return %c0_i32, %c0_i32_0 : i32, i32
  }
  func.func @transform_13(%arg0: i32) -> (i32, i32, i32) {
    %c0_i32 = arith.constant 0 : i32
    %c0_i32_0 = arith.constant 0 : i32
    %c0_i32_1 = arith.constant 0 : i32
    return %arg0, %c0_i32, %c0_i32_0 : i32, i32, i32
  }
}

</mosaic_0001>

<llo_original>
// kernel: tpu_custom_call.1
$region0: #{tpu_custom_call.1}
  #allocation0 [shape = 'u32[]', space=smem, size = 0x4, offset = 0x4, fixed_abs, tag = 'smem constant byte address 0x4 - core index']
  #allocation1 [shape = 'u32[72,128]{1,0:T(1,128)}', space=vmem, size = 0x9000, scoped, tag = 'internal scratch']
  %s0 = inlined_call_operand.hbm [shape: f32[4,8,256], index: 0, kind: input, shape index: {}]
  %s1 = inlined_call_operand.hbm [shape: f32[768,256], index: 1, kind: input, shape index: {}]
  %s2 = inlined_call_operand.vmem [shape: f32[1,256], index: 2, kind: input, shape index: {}]
  %s3 = inlined_call_operand.vmem [shape: f32[1,256], index: 3, kind: input, shape index: {}]
  %s4 = inlined_call_operand.hbm [shape: f32[768,256], index: 4, kind: input, shape index: {}]
  %s5 = inlined_call_operand.vmem [shape: f32[1,256], index: 5, kind: input, shape index: {}]
  %s6 = inlined_call_operand.vmem [shape: f32[1,256], index: 6, kind: input, shape index: {}]
  %s7 = inlined_call_operand.vmem [shape: f32[32,2], index: 7, kind: input, shape index: {}]
  %s8 = inlined_call_operand.vmem [shape: f32[1,2], index: 8, kind: input, shape index: {}]
  %s9 = inlined_call_operand.vmem [shape: f32[2,32], index: 9, kind: input, shape index: {}]
  %s10 = inlined_call_operand.vmem [shape: f32[1,32], index: 10, kind: input, shape index: {}]
  %s11 = inlined_call_operand.hbm [shape: f32[112,256], index: 11, kind: input, shape index: {}]
  %s12 = inlined_call_operand.vmem [shape: f32[1,256], index: 12, kind: input, shape index: {}]
  %s13 = inlined_call_operand.hbm [shape: f32[4,8,256], index: 13, kind: output, shape index: {}]
  %s14 = sld [smem:[#allocation0]]
  $region101: #{tpu_custom_call.1} parent=0
    _
  %s16 = ssub.s32 1, %s14
  %s17 = scalar_select 0, %s16, %s14
  $region1: #{tpu_custom_call.1} parent=0
    #allocation2 [shape = 'u8[32768]{0}', space=vmem, size = 0x8000, scoped, tag = 'input window, operand 0']
    #allocation3 [shape = 's32[2]{0}', space=sflag, size = 0x8, scoped, tag = 'scoped memory for tpu_custom_call.1']
    #allocation4 [shape = 's32[2]{0}', space=sflag, size = 0x8, scoped, tag = 'scoped memory for tpu_custom_call.1']
    #allocation5 [shape = 'u8[786432]{0}', space=vmem, size = 0xc0000, scoped, tag = 'input window, operand 1, single buffered']
    #allocation6 [shape = 's32[1]{0}', space=sflag, size = 0x4, scoped, tag = 'scoped memory for tpu_custom_call.1']
    #allocation7 [shape = 'u8[786432]{0}', space=vmem, size = 0xc0000, scoped, tag = 'input window, operand 4, single buffered']
    #allocation8 [shape = 'u8[114688]{0}', space=vmem, size = 0x1c000, scoped, tag = 'input window, operand 11, single buffered']
    #allocation9 [shape = 's32[1]{0}', space=sflag, size = 0x4, scoped, tag = 'scoped memory for tpu_custom_call.1']
    #allocation10 [shape = 'u8[32768]{0}', space=vmem, size = 0x8000, scoped, tag = 'output window, operand 0']
    %18 = vsyncpa [#allocation3], 0
    %s19 = scalar_lea.sflag [#allocation3], 1
    %20 = vsyncpa %s19, 0
    %21 = vsyncpa [#allocation6], 0
    %22 = vsyncpa [#allocation9], 0
    %23 = vsyncpa [#allocation4], 0
    %s24 = scalar_lea.sflag [#allocation4], 1
    %25 = vsyncpa %s24, 0
    loop: start=0, step=1, limit=4
    $region2: #{tpu_custom_call.1} parent=1 // loop_pre_header
      _
    $region3: #{tpu_custom_call.1} parent=1 // loop_header
      %s27 = sphi 0, %s31
      %p28 = scmp.ge.s32.totalorder %s27, 4
      %s37 = sphi 0, %s39
      %s40 = sphi 0, %s37
      %s41 = sphi 0, %s40
      %s57 = sphi 0, %s41
      %s61 = sphi 0, %s61
      %s63 = sphi 0, %s61
      %s64 = sphi 0, %s63
      %s78 = sphi 0, %s64
      %s82 = sphi 0, %s82
      %s84 = sphi 0, %s82
      %s85 = sphi 0, %s84
      %s99 = sphi 0, %s85
      %s103 = sphi 0, %s103
      %s105 = sphi 0, %s103
      %s106 = sphi 0, %s105
      %s120 = sphi 0, %s106
      %s124 = sphi 0, %s124
      %s126 = sphi 0, %s124
      %s127 = sphi 0, %s126
      %s141 = sphi 0, %s127
      %s145 = sphi 0, %s145
      %s147 = sphi 0, %s145
      %s148 = sphi 0, %s147
      %s162 = sphi 0, %s148
      %s166 = sphi 0, %s166
      %s168 = sphi 0, %s166
      %s169 = sphi 0, %s168
      %s183 = sphi 0, %s169
      %s187 = sphi 0, %s187
      %s189 = sphi 0, %s187
      %s190 = sphi 0, %s189
      %s204 = sphi 0, %s190
      %s208 = sphi 0, %s208
      %s210 = sphi 0, %s208
      %s211 = sphi 0, %s210
      %s225 = sphi 0, %s211
      %s229 = sphi 0, %s229
      %s231 = sphi 0, %s229
      %s232 = sphi 0, %s231
      %s246 = sphi 0, %s232
      %s250 = sphi 0, %s250
      %s252 = sphi 0, %s250
      %s253 = sphi 0, %s252
      %s267 = sphi 0, %s253
      %s271 = sphi 0, %s271
      %s273 = sphi 0, %s271
      %s274 = sphi 0, %s273
      %s288 = sphi 0, %s274
      %s292 = sphi 0, %s292
      %s294 = sphi 0, %s292
      %s295 = sphi 0, %s294
      %s309 = sphi 0, %s295
      %s315 = sphi 0, %s317
      %s318 = sphi 0, %s315
      %s319 = sphi 0, %s318
      %s335 = sphi 0, %s319
    $region4: #{tpu_custom_call.1} parent=1 // loop_header_branch
      %30 = sbr.rel (%p28) target = $region8
    $region5: #{tpu_custom_call.1} parent=1 // loop_body
      %s32 = ssub.s32 %s27, 1
      %s33 = ssub.s32 %s27, 2
      %s34 = sadd.s32 %s27, 1
      %s35 = ssub.s32 %s27, %s34
      %p36 = scmp.eq.s32.totalorder %s35, 0
      %s38 = sadd.s32 %s37, 1
      %s39 = scalar_select %p36, %s37, %s38
      %p42 = pneg %p36
      %p43 = scmp.eq.s32.totalorder %s27, 1
      %p44 = por %p42, %p43
      %p45 = scmp.ne.s32.totalorder %s37, %s40
      %p46 = scmp.eq.s32.totalorder %s27, 0
      %p47 = por %p45, %p46
      %p48 = scmp.ne.s32.totalorder %s37, %s40
      %p49 = scmp.eq.s32.totalorder %s32, 1
      %p50 = por %p48, %p49
      %p51 = scmp.ne.s32.totalorder %s40, %s41
      %p52 = scmp.eq.s32.totalorder %s32, 0
      %p53 = por %p51, %p52
      %p54 = scmp.ne.s32.totalorder %s40, %s41
      %p55 = scmp.eq.s32.totalorder %s33, 1
      %p56 = por %p54, %p55
      %p58 = scmp.ne.s32.totalorder %s41, %s57
      %p59 = scmp.eq.s32.totalorder %s33, 0
      %p60 = por %p58, %p59
      %s62 = sadd.s32 %s61, 1
      %p65 = scmp.eq.s32.totalorder %s27, 1
      %p66 = scmp.ne.s32.totalorder %s61, %s63
      %p67 = scmp.eq.s32.totalorder %s27, 0
      %p68 = por %p66, %p67
      %p69 = scmp.ne.s32.totalorder %s61, %s63
      %p70 = scmp.eq.s32.totalorder %s32, 1
      %p71 = por %p69, %p70
      %p72 = scmp.ne.s32.totalorder %s63, %s64
      %p73 = scmp.eq.s32.totalorder %s32, 0
      %p74 = por %p72, %p73
      %p75 = scmp.ne.s32.totalorder %s63, %s64
      %p76 = scmp.eq.s32.totalorder %s33, 1
      %p77 = por %p75, %p76
      %p79 = scmp.ne.s32.totalorder %s64, %s78
      %p80 = scmp.eq.s32.totalorder %s33, 0
      %p81 = por %p79, %p80
      %s83 = sadd.s32 %s82, 1
      %p86 = scmp.eq.s32.totalorder %s27, 1
      %p87 = scmp.ne.s32.totalorder %s82, %s84
      %p88 = scmp.eq.s32.totalorder %s27, 0
      %p89 = por %p87, %p88
      %p90 = scmp.ne.s32.totalorder %s82, %s84
      %p91 = scmp.eq.s32.totalorder %s32, 1
      %p92 = por %p90, %p91
      %p93 = scmp.ne.s32.totalorder %s84, %s85
      %p94 = scmp.eq.s32.totalorder %s32, 0
      %p95 = por %p93, %p94
      %p96 = scmp.ne.s32.totalorder %s84, %s85
      %p97 = scmp.eq.s32.totalorder %s33, 1
      %p98 = por %p96, %p97
      %p100 = scmp.ne.s32.totalorder %s85, %s99
      %p101 = scmp.eq.s32.totalorder %s33, 0
      %p102 = por %p100, %p101
      %s104 = sadd.s32 %s103, 1
      %p107 = scmp.eq.s32.totalorder %s27, 1
      %p108 = scmp.ne.s32.totalorder %s103, %s105
      %p109 = scmp.eq.s32.totalorder %s27, 0
      %p110 = por %p108, %p109
      %p111 = scmp.ne.s32.totalorder %s103, %s105
      %p112 = scmp.eq.s32.totalorder %s32, 1
      %p113 = por %p111, %p112
      %p114 = scmp.ne.s32.totalorder %s105, %s106
      %p115 = scmp.eq.s32.totalorder %s32, 0
      %p116 = por %p114, %p115
      %p117 = scmp.ne.s32.totalorder %s105, %s106
      %p118 = scmp.eq.s32.totalorder %s33, 1
      %p119 = por %p117, %p118
      %p121 = scmp.ne.s32.totalorder %s106, %s120
      %p122 = scmp.eq.s32.totalorder %s33, 0
      %p123 = por %p121, %p122
      %s125 = sadd.s32 %s124, 1
      %p128 = scmp.eq.s32.totalorder %s27, 1
      %p129 = scmp.ne.s32.totalorder %s124, %s126
      %p130 = scmp.eq.s32.totalorder %s27, 0
      %p131 = por %p129, %p130
      %p132 = scmp.ne.s32.totalorder %s124, %s126
      %p133 = scmp.eq.s32.totalorder %s32, 1
      %p134 = por %p132, %p133
      %p135 = scmp.ne.s32.totalorder %s126, %s127
      %p136 = scmp.eq.s32.totalorder %s32, 0
      %p137 = por %p135, %p136
      %p138 = scmp.ne.s32.totalorder %s126, %s127
      %p139 = scmp.eq.s32.totalorder %s33, 1
      %p140 = por %p138, %p139
      %p142 = scmp.ne.s32.totalorder %s127, %s141
      %p143 = scmp.eq.s32.totalorder %s33, 0
      %p144 = por %p142, %p143
      %s146 = sadd.s32 %s145, 1
      %p149 = scmp.eq.s32.totalorder %s27, 1
      %p150 = scmp.ne.s32.totalorder %s145, %s147
      %p151 = scmp.eq.s32.totalorder %s27, 0
      %p152 = por %p150, %p151
      %p153 = scmp.ne.s32.totalorder %s145, %s147
      %p154 = scmp.eq.s32.totalorder %s32, 1
      %p155 = por %p153, %p154
      %p156 = scmp.ne.s32.totalorder %s147, %s148
      %p157 = scmp.eq.s32.totalorder %s32, 0
      %p158 = por %p156, %p157
      %p159 = scmp.ne.s32.totalorder %s147, %s148
      %p160 = scmp.eq.s32.totalorder %s33, 1
      %p161 = por %p159, %p160
      %p163 = scmp.ne.s32.totalorder %s148, %s162
      %p164 = scmp.eq.s32.totalorder %s33, 0
      %p165 = por %p163, %p164
      %s167 = sadd.s32 %s166, 1
      %p170 = scmp.eq.s32.totalorder %s27, 1
      %p171 = scmp.ne.s32.totalorder %s166, %s168
      %p172 = scmp.eq.s32.totalorder %s27, 0
      %p173 = por %p171, %p172
      %p174 = scmp.ne.s32.totalorder %s166, %s168
      %p175 = scmp.eq.s32.totalorder %s32, 1
      %p176 = por %p174, %p175
      %p177 = scmp.ne.s32.totalorder %s168, %s169
      %p178 = scmp.eq.s32.totalorder %s32, 0
      %p179 = por %p177, %p178
      %p180 = scmp.ne.s32.totalorder %s168, %s169
      %p181 = scmp.eq.s32.totalorder %s33, 1
      %p182 = por %p180, %p181
      %p184 = scmp.ne.s32.totalorder %s169, %s183
      %p185 = scmp.eq.s32.totalorder %s33, 0
      %p186 = por %p184, %p185
      %s188 = sadd.s32 %s187, 1
      %p191 = scmp.eq.s32.totalorder %s27, 1
      %p192 = scmp.ne.s32.totalorder %s187, %s189
      %p193 = scmp.eq.s32.totalorder %s27, 0
      %p194 = por %p192, %p193
      %p195 = scmp.ne.s32.totalorder %s187, %s189
      %p196 = scmp.eq.s32.totalorder %s32, 1
      %p197 = por %p195, %p196
      %p198 = scmp.ne.s32.totalorder %s189, %s190
      %p199 = scmp.eq.s32.totalorder %s32, 0
      %p200 = por %p198, %p199
      %p201 = scmp.ne.s32.totalorder %s189, %s190
      %p202 = scmp.eq.s32.totalorder %s33, 1
      %p203 = por %p201, %p202
      %p205 = scmp.ne.s32.totalorder %s190, %s204
      %p206 = scmp.eq.s32.totalorder %s33, 0
      %p207 = por %p205, %p206
      %s209 = sadd.s32 %s208, 1
      %p212 = scmp.eq.s32.totalorder %s27, 1
      %p213 = scmp.ne.s32.totalorder %s208, %s210
      %p214 = scmp.eq.s32.totalorder %s27, 0
      %p215 = por %p213, %p214
      %p216 = scmp.ne.s32.totalorder %s208, %s210
      %p217 = scmp.eq.s32.totalorder %s32, 1
      %p218 = por %p216, %p217
      %p219 = scmp.ne.s32.totalorder %s210, %s211
      %p220 = scmp.eq.s32.totalorder %s32, 0
      %p221 = por %p219, %p220
      %p222 = scmp.ne.s32.totalorder %s210, %s211
      %p223 = scmp.eq.s32.totalorder %s33, 1
      %p224 = por %p222, %p223
      %p226 = scmp.ne.s32.totalorder %s211, %s225
      %p227 = scmp.eq.s32.totalorder %s33, 0
      %p228 = por %p226, %p227
      %s230 = sadd.s32 %s229, 1
      %p233 = scmp.eq.s32.totalorder %s27, 1
      %p234 = scmp.ne.s32.totalorder %s229, %s231
      %p235 = scmp.eq.s32.totalorder %s27, 0
      %p236 = por %p234, %p235
      %p237 = scmp.ne.s32.totalorder %s229, %s231
      %p238 = scmp.eq.s32.totalorder %s32, 1
      %p239 = por %p237, %p238
      %p240 = scmp.ne.s32.totalorder %s231, %s232
      %p241 = scmp.eq.s32.totalorder %s32, 0
      %p242 = por %p240, %p241
      %p243 = scmp.ne.s32.totalorder %s231, %s232
      %p244 = scmp.eq.s32.totalorder %s33, 1
      %p245 = por %p243, %p244
      %p247 = scmp.ne.s32.totalorder %s232, %s246
      %p248 = scmp.eq.s32.totalorder %s33, 0
      %p249 = por %p247, %p248
      %s251 = sadd.s32 %s250, 1
      %p254 = scmp.eq.s32.totalorder %s27, 1
      %p255 = scmp.ne.s32.totalorder %s250, %s252
      %p256 = scmp.eq.s32.totalorder %s27, 0
      %p257 = por %p255, %p256
      %p258 = scmp.ne.s32.totalorder %s250, %s252
      %p259 = scmp.eq.s32.totalorder %s32, 1
      %p260 = por %p258, %p259
      %p261 = scmp.ne.s32.totalorder %s252, %s253
      %p262 = scmp.eq.s32.totalorder %s32, 0
      %p263 = por %p261, %p262
      %p264 = scmp.ne.s32.totalorder %s252, %s253
      %p265 = scmp.eq.s32.totalorder %s33, 1
      %p266 = por %p264, %p265
      %p268 = scmp.ne.s32.totalorder %s253, %s267
      %p269 = scmp.eq.s32.totalorder %s33, 0
      %p270 = por %p268, %p269
      %s272 = sadd.s32 %s271, 1
      %p275 = scmp.eq.s32.totalorder %s27, 1
      %p276 = scmp.ne.s32.totalorder %s271, %s273
      %p277 = scmp.eq.s32.totalorder %s27, 0
      %p278 = por %p276, %p277
      %p279 = scmp.ne.s32.totalorder %s271, %s273
      %p280 = scmp.eq.s32.totalorder %s32, 1
      %p281 = por %p279, %p280
      %p282 = scmp.ne.s32.totalorder %s273, %s274
      %p283 = scmp.eq.s32.totalorder %s32, 0
      %p284 = por %p282, %p283
      %p285 = scmp.ne.s32.totalorder %s273, %s274
      %p286 = scmp.eq.s32.totalorder %s33, 1
      %p287 = por %p285, %p286
      %p289 = scmp.ne.s32.totalorder %s274, %s288
      %p290 = scmp.eq.s32.totalorder %s33, 0
      %p291 = por %p289, %p290
      %s293 = sadd.s32 %s292, 1
      %p296 = scmp.eq.s32.totalorder %s27, 1
      %p297 = scmp.ne.s32.totalorder %s292, %s294
      %p298 = scmp.eq.s32.totalorder %s27, 0
      %p299 = por %p297, %p298
      %p300 = scmp.ne.s32.totalorder %s292, %s294
      %p301 = scmp.eq.s32.totalorder %s32, 1
      %p302 = por %p300, %p301
      %p303 = scmp.ne.s32.totalorder %s294, %s295
      %p304 = scmp.eq.s32.totalorder %s32, 0
      %p305 = por %p303, %p304
      %p306 = scmp.ne.s32.totalorder %s294, %s295
      %p307 = scmp.eq.s32.totalorder %s33, 1
      %p308 = por %p306, %p307
      %p310 = scmp.ne.s32.totalorder %s295, %s309
      %p311 = scmp.eq.s32.totalorder %s33, 0
      %p312 = por %p310, %p311
      %s313 = ssub.s32 %s27, %s34
      %p314 = scmp.eq.s32.totalorder %s313, 0
      %s316 = sadd.s32 %s315, 1
      %s317 = scalar_select %p314, %s315, %s316
      %p320 = pneg %p314
      %p321 = scmp.eq.s32.totalorder %s27, 1
      %p322 = por %p320, %p321
      %p323 = scmp.ne.s32.totalorder %s315, %s318
      %p324 = scmp.eq.s32.totalorder %s27, 0
      %p325 = por %p323, %p324
      %p326 = scmp.ne.s32.totalorder %s315, %s318
      %p327 = scmp.eq.s32.totalorder %s32, 1
      %p328 = por %p326, %p327
      %p329 = scmp.ne.s32.totalorder %s318, %s319
      %p330 = scmp.eq.s32.totalorder %s32, 0
      %p331 = por %p329, %p330
      %p332 = scmp.ne.s32.totalorder %s318, %s319
      %p333 = scmp.eq.s32.totalorder %s33, 1
      %p334 = por %p332, %p333
      %p336 = scmp.ne.s32.totalorder %s319, %s335
      %p337 = scmp.eq.s32.totalorder %s33, 0
      %p338 = por %p336, %p337
      %p339 = scmp.le.s32.totalorder 1, %s27
      %p340 = scmp.lt.s32.totalorder %s27, 3
      %p341 = pnand %p339, %p340
      %p342 = pneg %p341
      // Predicated region
      $region9: #{tpu_custom_call.1} parent=5 // pred_check
        _
      $region10: #{tpu_custom_call.1} parent=5 // pred_check_branch
        %344 = sbr.rel (%p341) target = $region12
      $region11: #{tpu_custom_call.1} parent=5 // pred_region
        %s345 = ssub.s32 %s27, 1
        // Predicated region
        $region13: #{tpu_custom_call.1} parent=11 // pred_check
          %p346 = pneg %p74
        $region14: #{tpu_custom_call.1} parent=11 // pred_check_branch
          %348 = sbr.rel (%p346) target = $region16
        $region15: #{tpu_custom_call.1} parent=11 // pred_region
          %350 = vsyncadd [#allocation6], 0
          %s351 = sshll.u32 %s1, 4
          %s352 = int_to_ptr.hbm [resolvable:$true] %s351
          %s353 = sshll.u32 [#allocation5], 4
          %s354 = int_to_ptr.vmem [resolvable:$true] %s353
          %359 = dma.hbm_to_vmem [thread:$0]  %s352, 24576, %s354, [#allocation6], 256, 256, 16
        $region16: #{tpu_custom_call.1} parent=11 // pred_fallthru
          _
        // Predicated region
        $region17: #{tpu_custom_call.1} parent=11 // pred_check
          %p360 = pneg %p95
        $region18: #{tpu_custom_call.1} parent=11 // pred_check_branch
          %362 = sbr.rel (%p360) target = $region20
        $region19: #{tpu_custom_call.1} parent=11 // pred_region
          _
        $region20: #{tpu_custom_call.1} parent=11 // pred_fallthru
          _
        // Predicated region
        $region21: #{tpu_custom_call.1} parent=11 // pred_check
          %p363 = pneg %p116
        $region22: #{tpu_custom_call.1} parent=11 // pred_check_branch
          %365 = sbr.rel (%p363) target = $region24
        $region23: #{tpu_custom_call.1} parent=11 // pred_region
          _
        $region24: #{tpu_custom_call.1} parent=11 // pred_fallthru
          _
        // Predicated region
        $region25: #{tpu_custom_call.1} parent=11 // pred_check
          %p366 = pneg %p137
        $region26: #{tpu_custom_call.1} parent=11 // pred_check_branch
          %368 = sbr.rel (%p366) target = $region28
        $region27: #{tpu_custom_call.1} parent=11 // pred_region
          %370 = vsyncadd [#allocation6], 0
          %s371 = sshll.u32 %s4, 4
          %s372 = int_to_ptr.hbm [resolvable:$true] %s371
          %s373 = sshll.u32 [#allocation7], 4
          %s374 = int_to_ptr.vmem [resolvable:$true] %s373
          %379 = dma.hbm_to_vmem [thread:$0]  %s372, 24576, %s374, [#allocation6], 256, 256, 16
        $region28: #{tpu_custom_call.1} parent=11 // pred_fallthru
          _
        // Predicated region
        $region29: #{tpu_custom_call.1} parent=11 // pred_check
          %p380 = pneg %p158
        $region30: #{tpu_custom_call.1} parent=11 // pred_check_branch
          %382 = sbr.rel (%p380) target = $region32
        $region31: #{tpu_custom_call.1} parent=11 // pred_region
          _
        $region32: #{tpu_custom_call.1} parent=11 // pred_fallthru
          _
        // Predicated region
        $region33: #{tpu_custom_call.1} parent=11 // pred_check
          %p383 = pneg %p179
        $region34: #{tpu_custom_call.1} parent=11 // pred_check_branch
          %385 = sbr.rel (%p383) target = $region36
        $region35: #{tpu_custom_call.1} parent=11 // pred_region
          _
        $region36: #{tpu_custom_call.1} parent=11 // pred_fallthru
          _
        // Predicated region
        $region37: #{tpu_custom_call.1} parent=11 // pred_check
          %p386 = pneg %p200
        $region38: #{tpu_custom_call.1} parent=11 // pred_check_branch
          %388 = sbr.rel (%p386) target = $region40
        $region39: #{tpu_custom_call.1} parent=11 // pred_region
          _
        $region40: #{tpu_custom_call.1} parent=11 // pred_fallthru
          _
        // Predicated region
        $region41: #{tpu_custom_call.1} parent=11 // pred_check
          %p389 = pneg %p221
        $region42: #{tpu_custom_call.1} parent=11 // pred_check_branch
          %391 = sbr.rel (%p389) target = $region44
        $region43: #{tpu_custom_call.1} parent=11 // pred_region
          _
        $region44: #{tpu_custom_call.1} parent=11 // pred_fallthru
          _
        // Predicated region
        $region45: #{tpu_custom_call.1} parent=11 // pred_check
          %p392 = pneg %p242
        $region46: #{tpu_custom_call.1} parent=11 // pred_check_branch
          %394 = sbr.rel (%p392) target = $region48
        $region47: #{tpu_custom_call.1} parent=11 // pred_region
          _
        $region48: #{tpu_custom_call.1} parent=11 // pred_fallthru
          _
        // Predicated region
        $region49: #{tpu_custom_call.1} parent=11 // pred_check
          %p395 = pneg %p263
        $region50: #{tpu_custom_call.1} parent=11 // pred_check_branch
          %397 = sbr.rel (%p395) target = $region52
        $region51: #{tpu_custom_call.1} parent=11 // pred_region
          _
        $region52: #{tpu_custom_call.1} parent=11 // pred_fallthru
          _
        // Predicated region
        $region53: #{tpu_custom_call.1} parent=11 // pred_check
          %p398 = pneg %p284
        $region54: #{tpu_custom_call.1} parent=11 // pred_check_branch
          %400 = sbr.rel (%p398) target = $region56
        $region55: #{tpu_custom_call.1} parent=11 // pred_region
          %402 = vsyncadd [#allocation9], 0
          %s403 = sshll.u32 %s11, 4
          %s404 = int_to_ptr.hbm [resolvable:$true] %s403
          %s405 = sshll.u32 [#allocation8], 4
          %s406 = int_to_ptr.vmem [resolvable:$true] %s405
          %411 = dma.hbm_to_vmem [thread:$0]  %s404, 3584, %s406, [#allocation9], 256, 256, 16
        $region56: #{tpu_custom_call.1} parent=11 // pred_fallthru
          _
        // Predicated region
        $region57: #{tpu_custom_call.1} parent=11 // pred_check
          %p412 = pneg %p305
        $region58: #{tpu_custom_call.1} parent=11 // pred_check_branch
          %414 = sbr.rel (%p412) target = $region60
        $region59: #{tpu_custom_call.1} parent=11 // pred_region
          _
        $region60: #{tpu_custom_call.1} parent=11 // pred_fallthru
          _
      $region12: #{tpu_custom_call.1} parent=5 // pred_fallthru
        _
      %p415 = scmp.lt.s32.totalorder %s27, 2
      // Predicated region
      $region61: #{tpu_custom_call.1} parent=5 // pred_check
        %p416 = pneg %p415
      $region62: #{tpu_custom_call.1} parent=5 // pred_check_branch
        %418 = sbr.rel (%p416) target = $region64
      $region63: #{tpu_custom_call.1} parent=5 // pred_region
        // Predicated region
        $region65: #{tpu_custom_call.1} parent=63 // pred_check
          %p419 = pneg %p47
        $region66: #{tpu_custom_call.1} parent=63 // pred_check_branch
          %421 = sbr.rel (%p419) target = $region68
        $region67: #{tpu_custom_call.1} parent=63 // pred_region
          %s422 = sand.u32 %s37, 1
          %s423 = scalar_lea.sflag [#allocation3], %s422
          %s424 = sand.u32 %s37, 1
          %s425 = smul.addr %s424, 32
          %s426 = scalar_lea.vmem [#allocation2], %s425
          %s427 = smul.u32 2, %s27
          %429 = vsyncadd %s423, 0
          %s430 = smul.addr %s427, 2
          %s431 = smul.addr %s430, 8
          %s432 = scalar_lea.hbm %s0, %s431
          %s433 = sshll.u32 %s432, 4
          %s434 = int_to_ptr.hbm [resolvable:$true] %s433
          %s435 = sshll.u32 %s426, 4
          %s436 = int_to_ptr.vmem [resolvable:$true] %s435
          %441 = dma.hbm_to_vmem [thread:$0]  %s434, 512, %s436, %s423, 256, 256, 16
        $region68: #{tpu_custom_call.1} parent=63 // pred_fallthru
          _
      $region64: #{tpu_custom_call.1} parent=5 // pred_fallthru
        _
      %p442 = scmp.le.s32.totalorder 1, %s27
      %p443 = scmp.lt.s32.totalorder %s27, 3
      %p444 = pnand %p442, %p443
      %p445 = pneg %p444
      // Predicated region
      $region69: #{tpu_custom_call.1} parent=5 // pred_check
        _
      $region70: #{tpu_custom_call.1} parent=5 // pred_check_branch
        %447 = sbr.rel (%p444) target = $region72
      $region71: #{tpu_custom_call.1} parent=5 // pred_region
        %s448 = ssub.s32 %s27, 1
        %s449 = sand.u32 %s40, 1
        %s450 = scalar_lea.sflag [#allocation3], %s449
        %s451 = sand.u32 %s40, 1
        %s452 = smul.addr %s451, 32
        %s453 = scalar_lea.vmem [#allocation2], %s452
        // Predicated region
        $region73: #{tpu_custom_call.1} parent=71 // pred_check
          %p454 = pneg %p53
        $region74: #{tpu_custom_call.1} parent=71 // pred_check_branch
          %456 = sbr.rel (%p454) target = $region76
        $region75: #{tpu_custom_call.1} parent=71 // pred_region
          %458 = dma.done %s450, 512
        $region76: #{tpu_custom_call.1} parent=71 // pred_fallthru
          _
        // Predicated region
        $region77: #{tpu_custom_call.1} parent=71 // pred_check
          %p459 = pneg %p74
        $region78: #{tpu_custom_call.1} parent=71 // pred_check_branch
          %461 = sbr.rel (%p459) target = $region80
        $region79: #{tpu_custom_call.1} parent=71 // pred_region
          %463 = dma.done [#allocation6], 24576
        $region80: #{tpu_custom_call.1} parent=71 // pred_fallthru
          _
        // Predicated region
        $region81: #{tpu_custom_call.1} parent=71 // pred_check
          %p464 = pneg %p137
        $region82: #{tpu_custom_call.1} parent=71 // pred_check_branch
          %466 = sbr.rel (%p464) target = $region84
        $region83: #{tpu_custom_call.1} parent=71 // pred_region
          %468 = dma.done [#allocation6], 24576
        $region84: #{tpu_custom_call.1} parent=71 // pred_fallthru
          _
        // Predicated region
        $region85: #{tpu_custom_call.1} parent=71 // pred_check
          %p469 = pneg %p284
        $region86: #{tpu_custom_call.1} parent=71 // pred_check_branch
          %471 = sbr.rel (%p469) target = $region88
        $region87: #{tpu_custom_call.1} parent=71 // pred_region
          %473 = dma.done [#allocation9], 3584
        $region88: #{tpu_custom_call.1} parent=71 // pred_fallthru
          _
        %s474 = sand.u32 %s40, 1
        %s475 = scalar_lea.sflag [#allocation3], %s474
        %s476 = sand.u32 %s40, 1
        %s477 = smul.addr %s476, 32
        %s478 = scalar_lea.vmem [#allocation2], %s477
        %p479 = pneg %p53
        %p480 = pneg %p50
        %p481 = pneg %p74
        %p482 = pneg %p71
        %p483 = pneg %p95
        %p484 = pneg %p92
        %p485 = pneg %p116
        %p486 = pneg %p113
        %p487 = pneg %p137
        %p488 = pneg %p134
        %p489 = pneg %p158
        %p490 = pneg %p155
        %p491 = pneg %p179
        %p492 = pneg %p176
        %p493 = pneg %p200
        %p494 = pneg %p197
        %p495 = pneg %p221
        %p496 = pneg %p218
        %p497 = pneg %p242
        %p498 = pneg %p239
        %p499 = pneg %p263
        %p500 = pneg %p260
        %p501 = pneg %p284
        %p502 = pneg %p281
        %p503 = pneg %p305
        %p504 = pneg %p302
        %p505 = pneg %p331
        %p506 = pneg %p328
        %s507 = sand.u32 %s318, 1
        %s508 = scalar_lea.sflag [#allocation4], %s507
        %s509 = sand.u32 %s318, 1
        %s510 = smul.addr %s509, 32
        %s511 = scalar_lea.vmem [#allocation10], %s510
        %s512 = smul.u32 2, %s32
        %s513 = smul.u32 2, %s32
        %v514 = vld [vmem:[%s453] sm:$0xff]
        %v515 = vld [vmem:[%s453 + $0x8] sm:$0xff]
        %v516 = vld [vmem:[%s453 + $0x10] sm:$0xff]
        %v517 = vld [vmem:[%s453 + $0x18] sm:$0xff]
        %v522 = vrot.slane %v514, 7
        %v523 = vrot.slane %v515, 7
        %v524 = vrot.slane %v516, 7
        %v525 = vrot.slane %v517, 7
        %vm530 = vcmask 1040384
        %v531 = vsel %vm530, 0.0, %v522
        %v532 = vsel %vm530, 0.0, %v523
        %v533 = vsel %vm530, 0.0, %v524
        %v534 = vsel %vm530, 0.0, %v525
        %v535 = vrot.slane %v514, 1
        %v536 = vrot.slane %v515, 1
        %v537 = vrot.slane %v516, 1
        %v538 = vrot.slane %v517, 1
        %vm543 = vcmask 1046528
        %v544 = vsel %vm543, %v535, 0.0
        %v545 = vsel %vm543, %v536, 0.0
        %v546 = vsel %vm543, %v537, 0.0
        %v547 = vsel %vm543, %v538, 0.0
        %v548 = vld [vmem:[#allocation5] sm:$0xff]
        %v549 = vld [vmem:[#allocation5 + $0x8] sm:$0xff]
        %v550 = vld [vmem:[#allocation5 + $0x10] sm:$0xff]
        %v551 = vld [vmem:[#allocation5 + $0x18] sm:$0xff]
        %v552 = vld [vmem:[#allocation5 + $0x20] sm:$0xff]
        %v553 = vld [vmem:[#allocation5 + $0x28] sm:$0xff]
        %v554 = vld [vmem:[#allocation5 + $0x30] sm:$0xff]
        %v555 = vld [vmem:[#allocation5 + $0x38] sm:$0xff]
        %v556 = vld [vmem:[#allocation5 + $0x40] sm:$0xff]
        %v557 = vld [vmem:[#allocation5 + $0x48] sm:$0xff]
        %v558 = vld [vmem:[#allocation5 + $0x50] sm:$0xff]
        %v559 = vld [vmem:[#allocation5 + $0x58] sm:$0xff]
        %v560 = vld [vmem:[#allocation5 + $0x60] sm:$0xff]
        %v561 = vld [vmem:[#allocation5 + $0x68] sm:$0xff]
        %v562 = vld [vmem:[#allocation5 + $0x70] sm:$0xff]
        %v563 = vld [vmem:[#allocation5 + $0x78] sm:$0xff]
        %v564 = vld [vmem:[#allocation5 + $0x80] sm:$0xff]
        %v565 = vld [vmem:[#allocation5 + $0x88] sm:$0xff]
        %v566 = vld [vmem:[#allocation5 + $0x90] sm:$0xff]
        %v567 = vld [vmem:[#allocation5 + $0x98] sm:$0xff]
        %v568 = vld [vmem:[#allocation5 + $0xa0] sm:$0xff]
        %v569 = vld [vmem:[#allocation5 + $0xa8] sm:$0xff]
        %v570 = vld [vmem:[#allocation5 + $0xb0] sm:$0xff]
        %v571 = vld [vmem:[#allocation5 + $0xb8] sm:$0xff]
        %v572 = vld [vmem:[#allocation5 + $0xc0] sm:$0xff]
        %v573 = vld [vmem:[#allocation5 + $0xc8] sm:$0xff]
        %v574 = vld [vmem:[#allocation5 + $0xd0] sm:$0xff]
        %v575 = vld [vmem:[#allocation5 + $0xd8] sm:$0xff]
        %v576 = vld [vmem:[#allocation5 + $0xe0] sm:$0xff]
        %v577 = vld [vmem:[#allocation5 + $0xe8] sm:$0xff]
        %v578 = vld [vmem:[#allocation5 + $0xf0] sm:$0xff]
        %v579 = vld [vmem:[#allocation5 + $0xf8] sm:$0xff]
        %v580 = vld [vmem:[#allocation5 + $0x100] sm:$0xff]
        %v581 = vld [vmem:[#allocation5 + $0x108] sm:$0xff]
        %v582 = vld [vmem:[#allocation5 + $0x110] sm:$0xff]
        %v583 = vld [vmem:[#allocation5 + $0x118] sm:$0xff]
        %v584 = vld [vmem:[#allocation5 + $0x120] sm:$0xff]
        %v585 = vld [vmem:[#allocation5 + $0x128] sm:$0xff]
        %v586 = vld [vmem:[#allocation5 + $0x130] sm:$0xff]
        %v587 = vld [vmem:[#allocation5 + $0x138] sm:$0xff]
        %v588 = vld [vmem:[#allocation5 + $0x140] sm:$0xff]
        %v589 = vld [vmem:[#allocation5 + $0x148] sm:$0xff]
        %v590 = vld [vmem:[#allocation5 + $0x150] sm:$0xff]
        %v591 = vld [vmem:[#allocation5 + $0x158] sm:$0xff]
        %v592 = vld [vmem:[#allocation5 + $0x160] sm:$0xff]
        %v593 = vld [vmem:[#allocation5 + $0x168] sm:$0xff]
        %v594 = vld [vmem:[#allocation5 + $0x170] sm:$0xff]
        %v595 = vld [vmem:[#allocation5 + $0x178] sm:$0xff]
        %v596 = vld [vmem:[#allocation5 + $0x180] sm:$0xff]
        %v597 = vld [vmem:[#allocation5 + $0x188] sm:$0xff]
        %v598 = vld [vmem:[#allocation5 + $0x190] sm:$0xff]
        %v599 = vld [vmem:[#allocation5 + $0x198] sm:$0xff]
        %v600 = vld [vmem:[#allocation5 + $0x1a0] sm:$0xff]
        %v601 = vld [vmem:[#allocation5 + $0x1a8] sm:$0xff]
        %v602 = vld [vmem:[#allocation5 + $0x1b0] sm:$0xff]
        %v603 = vld [vmem:[#allocation5 + $0x1b8] sm:$0xff]
        %v604 = vld [vmem:[#allocation5 + $0x1c0] sm:$0xff]
        %v605 = vld [vmem:[#allocation5 + $0x1c8] sm:$0xff]
        %v606 = vld [vmem:[#allocation5 + $0x1d0] sm:$0xff]
        %v607 = vld [vmem:[#allocation5 + $0x1d8] sm:$0xff]
        %v608 = vld [vmem:[#allocation5 + $0x1e0] sm:$0xff]
        %v609 = vld [vmem:[#allocation5 + $0x1e8] sm:$0xff]
        %v610 = vld [vmem:[#allocation5 + $0x1f0] sm:$0xff]
        %v611 = vld [vmem:[#allocation5 + $0x1f8] sm:$0xff]
        %v612 = vld [vmem:[#allocation5 + $0x200] sm:$0xff]
        %v613 = vld [vmem:[#allocation5 + $0x208] sm:$0xff]
        %v614 = vld [vmem:[#allocation5 + $0x210] sm:$0xff]
        %v615 = vld [vmem:[#allocation5 + $0x218] sm:$0xff]
        %v616 = vld [vmem:[#allocation5 + $0x220] sm:$0xff]
        %v617 = vld [vmem:[#allocation5 + $0x228] sm:$0xff]
        %v618 = vld [vmem:[#allocation5 + $0x230] sm:$0xff]
        %v619 = vld [vmem:[#allocation5 + $0x238] sm:$0xff]
        %v620 = vld [vmem:[#allocation5 + $0x240] sm:$0xff]
        %v621 = vld [vmem:[#allocation5 + $0x248] sm:$0xff]
        %v622 = vld [vmem:[#allocation5 + $0x250] sm:$0xff]
        %v623 = vld [vmem:[#allocation5 + $0x258] sm:$0xff]
        %v624 = vld [vmem:[#allocation5 + $0x260] sm:$0xff]
        %v625 = vld [vmem:[#allocation5 + $0x268] sm:$0xff]
        %v626 = vld [vmem:[#allocation5 + $0x270] sm:$0xff]
        %v627 = vld [vmem:[#allocation5 + $0x278] sm:$0xff]
        %v628 = vld [vmem:[#allocation5 + $0x280] sm:$0xff]
        %v629 = vld [vmem:[#allocation5 + $0x288] sm:$0xff]
        %v630 = vld [vmem:[#allocation5 + $0x290] sm:$0xff]
        %v631 = vld [vmem:[#allocation5 + $0x298] sm:$0xff]
        %v632 = vld [vmem:[#allocation5 + $0x2a0] sm:$0xff]
        %v633 = vld [vmem:[#allocation5 + $0x2a8] sm:$0xff]
        %v634 = vld [vmem:[#allocation5 + $0x2b0] sm:$0xff]
        %v635 = vld [vmem:[#allocation5 + $0x2b8] sm:$0xff]
        %v636 = vld [vmem:[#allocation5 + $0x2c0] sm:$0xff]
        %v637 = vld [vmem:[#allocation5 + $0x2c8] sm:$0xff]
        %v638 = vld [vmem:[#allocation5 + $0x2d0] sm:$0xff]
        %v639 = vld [vmem:[#allocation5 + $0x2d8] sm:$0xff]
        %v640 = vld [vmem:[#allocation5 + $0x2e0] sm:$0xff]
        %v641 = vld [vmem:[#allocation5 + $0x2e8] sm:$0xff]
        %v642 = vld [vmem:[#allocation5 + $0x2f0] sm:$0xff]
        %v643 = vld [vmem:[#allocation5 + $0x2f8] sm:$0xff]
        %v644 = vld [vmem:[#allocation5 + $0x300] sm:$0xff]
        %v645 = vld [vmem:[#allocation5 + $0x308] sm:$0xff]
        %v646 = vld [vmem:[#allocation5 + $0x310] sm:$0xff]
        %v647 = vld [vmem:[#allocation5 + $0x318] sm:$0xff]
        %v648 = vld [vmem:[#allocation5 + $0x320] sm:$0xff]
        %v649 = vld [vmem:[#allocation5 + $0x328] sm:$0xff]
        %v650 = vld [vmem:[#allocation5 + $0x330] sm:$0xff]
        %v651 = vld [vmem:[#allocation5 + $0x338] sm:$0xff]
        %v652 = vld [vmem:[#allocation5 + $0x340] sm:$0xff]
        %v653 = vld [vmem:[#allocation5 + $0x348] sm:$0xff]
        %v654 = vld [vmem:[#allocation5 + $0x350] sm:$0xff]
        %v655 = vld [vmem:[#allocation5 + $0x358] sm:$0xff]
        %v656 = vld [vmem:[#allocation5 + $0x360] sm:$0xff]
        %v657 = vld [vmem:[#allocation5 + $0x368] sm:$0xff]
        %v658 = vld [vmem:[#allocation5 + $0x370] sm:$0xff]
        %v659 = vld [vmem:[#allocation5 + $0x378] sm:$0xff]
        %v660 = vld [vmem:[#allocation5 + $0x380] sm:$0xff]
        %v661 = vld [vmem:[#allocation5 + $0x388] sm:$0xff]
        %v662 = vld [vmem:[#allocation5 + $0x390] sm:$0xff]
        %v663 = vld [vmem:[#allocation5 + $0x398] sm:$0xff]
        %v664 = vld [vmem:[#allocation5 + $0x3a0] sm:$0xff]
        %v665 = vld [vmem:[#allocation5 + $0x3a8] sm:$0xff]
        %v666 = vld [vmem:[#allocation5 + $0x3b0] sm:$0xff]
        %v667 = vld [vmem:[#allocation5 + $0x3b8] sm:$0xff]
        %v668 = vld [vmem:[#allocation5 + $0x3c0] sm:$0xff]
        %v669 = vld [vmem:[#allocation5 + $0x3c8] sm:$0xff]
        %v670 = vld [vmem:[#allocation5 + $0x3d0] sm:$0xff]
        %v671 = vld [vmem:[#allocation5 + $0x3d8] sm:$0xff]
        %v672 = vld [vmem:[#allocation5 + $0x3e0] sm:$0xff]
        %v673 = vld [vmem:[#allocation5 + $0x3e8] sm:$0xff]
        %v674 = vld [vmem:[#allocation5 + $0x3f0] sm:$0xff]
        %v675 = vld [vmem:[#allocation5 + $0x3f8] sm:$0xff]
        %v676 = vld [vmem:[#allocation5 + $0x400] sm:$0xff]
        %v677 = vld [vmem:[#allocation5 + $0x408] sm:$0xff]
        %v678 = vld [vmem:[#allocation5 + $0x410] sm:$0xff]
        %v679 = vld [vmem:[#allocation5 + $0x418] sm:$0xff]
        %v680 = vld [vmem:[#allocation5 + $0x420] sm:$0xff]
        %v681 = vld [vmem:[#allocation5 + $0x428] sm:$0xff]
        %v682 = vld [vmem:[#allocation5 + $0x430] sm:$0xff]
        %v683 = vld [vmem:[#allocation5 + $0x438] sm:$0xff]
        %v684 = vld [vmem:[#allocation5 + $0x440] sm:$0xff]
        %v685 = vld [vmem:[#allocation5 + $0x448] sm:$0xff]
        %v686 = vld [vmem:[#allocation5 + $0x450] sm:$0xff]
        %v687 = vld [vmem:[#allocation5 + $0x458] sm:$0xff]
        %v688 = vld [vmem:[#allocation5 + $0x460] sm:$0xff]
        %v689 = vld [vmem:[#allocation5 + $0x468] sm:$0xff]
        %v690 = vld [vmem:[#allocation5 + $0x470] sm:$0xff]
        %v691 = vld [vmem:[#allocation5 + $0x478] sm:$0xff]
        %v692 = vld [vmem:[#allocation5 + $0x480] sm:$0xff]
        %v693 = vld [vmem:[#allocation5 + $0x488] sm:$0xff]
        %v694 = vld [vmem:[#allocation5 + $0x490] sm:$0xff]
        %v695 = vld [vmem:[#allocation5 + $0x498] sm:$0xff]
        %v696 = vld [vmem:[#allocation5 + $0x4a0] sm:$0xff]
        %v697 = vld [vmem:[#allocation5 + $0x4a8] sm:$0xff]
        %v698 = vld [vmem:[#allocation5 + $0x4b0] sm:$0xff]
        %v699 = vld [vmem:[#allocation5 + $0x4b8] sm:$0xff]
        %v700 = vld [vmem:[#allocation5 + $0x4c0] sm:$0xff]
        %v701 = vld [vmem:[#allocation5 + $0x4c8] sm:$0xff]
        %v702 = vld [vmem:[#allocation5 + $0x4d0] sm:$0xff]
        %v703 = vld [vmem:[#allocation5 + $0x4d8] sm:$0xff]
        %v704 = vld [vmem:[#allocation5 + $0x4e0] sm:$0xff]
        %v705 = vld [vmem:[#allocation5 + $0x4e8] sm:$0xff]
        %v706 = vld [vmem:[#allocation5 + $0x4f0] sm:$0xff]
        %v707 = vld [vmem:[#allocation5 + $0x4f8] sm:$0xff]
        %v708 = vld [vmem:[#allocation5 + $0x500] sm:$0xff]
        %v709 = vld [vmem:[#allocation5 + $0x508] sm:$0xff]
        %v710 = vld [vmem:[#allocation5 + $0x510] sm:$0xff]
        %v711 = vld [vmem:[#allocation5 + $0x518] sm:$0xff]
        %v712 = vld [vmem:[#allocation5 + $0x520] sm:$0xff]
        %v713 = vld [vmem:[#allocation5 + $0x528] sm:$0xff]
        %v714 = vld [vmem:[#allocation5 + $0x530] sm:$0xff]
        %v715 = vld [vmem:[#allocation5 + $0x538] sm:$0xff]
        %v716 = vld [vmem:[#allocation5 + $0x540] sm:$0xff]
        %v717 = vld [vmem:[#allocation5 + $0x548] sm:$0xff]
        %v718 = vld [vmem:[#allocation5 + $0x550] sm:$0xff]
        %v719 = vld [vmem:[#allocation5 + $0x558] sm:$0xff]
        %v720 = vld [vmem:[#allocation5 + $0x560] sm:$0xff]
        %v721 = vld [vmem:[#allocation5 + $0x568] sm:$0xff]
        %v722 = vld [vmem:[#allocation5 + $0x570] sm:$0xff]
        %v723 = vld [vmem:[#allocation5 + $0x578] sm:$0xff]
        %v724 = vld [vmem:[#allocation5 + $0x580] sm:$0xff]
        %v725 = vld [vmem:[#allocation5 + $0x588] sm:$0xff]
        %v726 = vld [vmem:[#allocation5 + $0x590] sm:$0xff]
        %v727 = vld [vmem:[#allocation5 + $0x598] sm:$0xff]
        %v728 = vld [vmem:[#allocation5 + $0x5a0] sm:$0xff]
        %v729 = vld [vmem:[#allocation5 + $0x5a8] sm:$0xff]
        %v730 = vld [vmem:[#allocation5 + $0x5b0] sm:$0xff]
        %v731 = vld [vmem:[#allocation5 + $0x5b8] sm:$0xff]
        %v732 = vld [vmem:[#allocation5 + $0x5c0] sm:$0xff]
        %v733 = vld [vmem:[#allocation5 + $0x5c8] sm:$0xff]
        %v734 = vld [vmem:[#allocation5 + $0x5d0] sm:$0xff]
        %v735 = vld [vmem:[#allocation5 + $0x5d8] sm:$0xff]
        %v736 = vld [vmem:[#allocation5 + $0x5e0] sm:$0xff]
        %v737 = vld [vmem:[#allocation5 + $0x5e8] sm:$0xff]
        %v738 = vld [vmem:[#allocation5 + $0x5f0] sm:$0xff]
        %v739 = vld [vmem:[#allocation5 + $0x5f8] sm:$0xff]
        %740 = vmatpush.msra.mxu0 %v578
        %741 = vmatpush.msra.mxu0 %v576
        %742 = vmatpush.msra.mxu0 %v574
        %743 = vmatpush.msra.mxu0 %v572
        %744 = vmatpush.msra.mxu0 %v570
        %745 = vmatpush.msra.mxu0 %v568
        %746 = vmatpush.msra.mxu0 %v566
        %747 = vmatpush.msra.mxu0 %v564
        %748 = vmatpush.msra.mxu0 %v562
        %749 = vmatpush.msra.mxu0 %v560
        %750 = vmatpush.msra.mxu0 %v558
        %751 = vmatpush.msra.mxu0 %v556
        %752 = vmatpush.msra.mxu0 %v554
        %753 = vmatpush.msra.mxu0 %v552
        %754 = vmatpush.msra.mxu0 %v550
        %755 = vmatpush.msra.mxu0 %v548
        %756 = vmatmul.f32.gmra.mxu0 %v531
        %v757 = vpop.f32.mrf.mxu0
        %v758 = vadd.f32 0.0, %v757
        %759 = vmatmul.f32.gmra.mxu0 %v533
        %v760 = vpop.f32.mrf.mxu0
        %v761 = vadd.f32 0.0, %v760
        %762 = vdwg.mxu0
        %763 = vmatpush.msra.mxu0 %v610
        %764 = vmatpush.msra.mxu0 %v608
        %765 = vmatpush.msra.mxu0 %v606
        %766 = vmatpush.msra.mxu0 %v604
        %767 = vmatpush.msra.mxu0 %v602
        %768 = vmatpush.msra.mxu0 %v600
        %769 = vmatpush.msra.mxu0 %v598
        %770 = vmatpush.msra.mxu0 %v596
        %771 = vmatpush.msra.mxu0 %v594
        %772 = vmatpush.msra.mxu0 %v592
        %773 = vmatpush.msra.mxu0 %v590
        %774 = vmatpush.msra.mxu0 %v588
        %775 = vmatpush.msra.mxu0 %v586
        %776 = vmatpush.msra.mxu0 %v584
        %777 = vmatpush.msra.mxu0 %v582
        %778 = vmatpush.msra.mxu0 %v580
        %779 = vmatmul.f32.gmra.mxu0 %v532
        %v780 = vpop.f32.mrf.mxu0
        %v781 = vadd.f32 %v758, %v780
        %782 = vmatmul.f32.gmra.mxu0 %v534
        %v783 = vpop.f32.mrf.mxu0
        %v784 = vadd.f32 %v761, %v783
        %785 = vdwg.mxu0
        %786 = vmatpush.msra.mxu0 %v642
        %787 = vmatpush.msra.mxu0 %v640
        %788 = vmatpush.msra.mxu0 %v638
        %789 = vmatpush.msra.mxu0 %v636
        %790 = vmatpush.msra.mxu0 %v634
        %791 = vmatpush.msra.mxu0 %v632
        %792 = vmatpush.msra.mxu0 %v630
        %793 = vmatpush.msra.mxu0 %v628
        %794 = vmatpush.msra.mxu0 %v626
        %795 = vmatpush.msra.mxu0 %v624
        %796 = vmatpush.msra.mxu0 %v622
        %797 = vmatpush.msra.mxu0 %v620
        %798 = vmatpush.msra.mxu0 %v618
        %799 = vmatpush.msra.mxu0 %v616
        %800 = vmatpush.msra.mxu0 %v614
        %801 = vmatpush.msra.mxu0 %v612
        %802 = vmatmul.f32.gmra.mxu0 %v514
        %v803 = vpop.f32.mrf.mxu0
        %v804 = vadd.f32 %v781, %v803
        %805 = vmatmul.f32.gmra.mxu0 %v516
        %v806 = vpop.f32.mrf.mxu0
        %v807 = vadd.f32 %v784, %v806
        %808 = vdwg.mxu0
        %809 = vmatpush.msra.mxu0 %v674
        %810 = vmatpush.msra.mxu0 %v672
        %811 = vmatpush.msra.mxu0 %v670
        %812 = vmatpush.msra.mxu0 %v668
        %813 = vmatpush.msra.mxu0 %v666
        %814 = vmatpush.msra.mxu0 %v664
        %815 = vmatpush.msra.mxu0 %v662
        %816 = vmatpush.msra.mxu0 %v660
        %817 = vmatpush.msra.mxu0 %v658
        %818 = vmatpush.msra.mxu0 %v656
        %819 = vmatpush.msra.mxu0 %v654
        %820 = vmatpush.msra.mxu0 %v652
        %821 = vmatpush.msra.mxu0 %v650
        %822 = vmatpush.msra.mxu0 %v648
        %823 = vmatpush.msra.mxu0 %v646
        %824 = vmatpush.msra.mxu0 %v644
        %825 = vmatmul.f32.gmra.mxu0 %v515
        %v826 = vpop.f32.mrf.mxu0
        %v827 = vadd.f32 %v804, %v826
        %828 = vmatmul.f32.gmra.mxu0 %v517
        %v829 = vpop.f32.mrf.mxu0
        %v830 = vadd.f32 %v807, %v829
        %831 = vdwg.mxu0
        %832 = vmatpush.msra.mxu0 %v706
        %833 = vmatpush.msra.mxu0 %v704
        %834 = vmatpush.msra.mxu0 %v702
        %835 = vmatpush.msra.mxu0 %v700
        %836 = vmatpush.msra.mxu0 %v698
        %837 = vmatpush.msra.mxu0 %v696
        %838 = vmatpush.msra.mxu0 %v694
        %839 = vmatpush.msra.mxu0 %v692
        %840 = vmatpush.msra.mxu0 %v690
        %841 = vmatpush.msra.mxu0 %v688
        %842 = vmatpush.msra.mxu0 %v686
        %843 = vmatpush.msra.mxu0 %v684
        %844 = vmatpush.msra.mxu0 %v682
        %845 = vmatpush.msra.mxu0 %v680
        %846 = vmatpush.msra.mxu0 %v678
        %847 = vmatpush.msra.mxu0 %v676
        %848 = vmatmul.f32.gmra.mxu0 %v544
        %v849 = vpop.f32.mrf.mxu0
        %v850 = vadd.f32 %v827, %v849
        %851 = vmatmul.f32.gmra.mxu0 %v546
        %v852 = vpop.f32.mrf.mxu0
        %v853 = vadd.f32 %v830, %v852
        %854 = vdwg.mxu0
        %855 = vmatpush.msra.mxu0 %v738
        %856 = vmatpush.msra.mxu0 %v736
        %857 = vmatpush.msra.mxu0 %v734
        %858 = vmatpush.msra.mxu0 %v732
        %859 = vmatpush.msra.mxu0 %v730
        %860 = vmatpush.msra.mxu0 %v728
        %861 = vmatpush.msra.mxu0 %v726
        %862 = vmatpush.msra.mxu0 %v724
        %863 = vmatpush.msra.mxu0 %v722
        %864 = vmatpush.msra.mxu0 %v720
        %865 = vmatpush.msra.mxu0 %v718
        %866 = vmatpush.msra.mxu0 %v716
        %867 = vmatpush.msra.mxu0 %v714
        %868 = vmatpush.msra.mxu0 %v712
        %869 = vmatpush.msra.mxu0 %v710
        %870 = vmatpush.msra.mxu0 %v708
        %871 = vmatmul.f32.gmra.mxu0 %v545
        %v872 = vpop.f32.mrf.mxu0
        %v873 = vadd.f32 %v850, %v872
        %874 = vmatmul.f32.gmra.mxu0 %v547
        %v875 = vpop.f32.mrf.mxu0
        %v876 = vadd.f32 %v853, %v875
        %877 = vdwg.mxu0
        %878 = vmatpush.msra.mxu0 %v579
        %879 = vmatpush.msra.mxu0 %v577
        %880 = vmatpush.msra.mxu0 %v575
        %881 = vmatpush.msra.mxu0 %v573
        %882 = vmatpush.msra.mxu0 %v571
        %883 = vmatpush.msra.mxu0 %v569
        %884 = vmatpush.msra.mxu0 %v567
        %885 = vmatpush.msra.mxu0 %v565
        %886 = vmatpush.msra.mxu0 %v563
        %887 = vmatpush.msra.mxu0 %v561
        %888 = vmatpush.msra.mxu0 %v559
        %889 = vmatpush.msra.mxu0 %v557
        %890 = vmatpush.msra.mxu0 %v555
        %891 = vmatpush.msra.mxu0 %v553
        %892 = vmatpush.msra.mxu0 %v551
        %893 = vmatpush.msra.mxu0 %v549
        %894 = vmatmul.f32.gmra.mxu0 %v531
        %v895 = vpop.f32.mrf.mxu0
        %v896 = vadd.f32 0.0, %v895
        %897 = vmatmul.f32.gmra.mxu0 %v533
        %v898 = vpop.f32.mrf.mxu0
        %v899 = vadd.f32 0.0, %v898
        %900 = vdwg.mxu0
        %901 = vmatpush.msra.mxu0 %v611
        %902 = vmatpush.msra.mxu0 %v609
        %903 = vmatpush.msra.mxu0 %v607
        %904 = vmatpush.msra.mxu0 %v605
        %905 = vmatpush.msra.mxu0 %v603
        %906 = vmatpush.msra.mxu0 %v601
        %907 = vmatpush.msra.mxu0 %v599
        %908 = vmatpush.msra.mxu0 %v597
        %909 = vmatpush.msra.mxu0 %v595
        %910 = vmatpush.msra.mxu0 %v593
        %911 = vmatpush.msra.mxu0 %v591
        %912 = vmatpush.msra.mxu0 %v589
        %913 = vmatpush.msra.mxu0 %v587
        %914 = vmatpush.msra.mxu0 %v585
        %915 = vmatpush.msra.mxu0 %v583
        %916 = vmatpush.msra.mxu0 %v581
        %917 = vmatmul.f32.gmra.mxu0 %v532
        %v918 = vpop.f32.mrf.mxu0
        %v919 = vadd.f32 %v896, %v918
        %920 = vmatmul.f32.gmra.mxu0 %v534
        %v921 = vpop.f32.mrf.mxu0
        %v922 = vadd.f32 %v899, %v921
        %923 = vdwg.mxu0
        %924 = vmatpush.msra.mxu0 %v643
        %925 = vmatpush.msra.mxu0 %v641
        %926 = vmatpush.msra.mxu0 %v639
        %927 = vmatpush.msra.mxu0 %v637
        %928 = vmatpush.msra.mxu0 %v635
        %929 = vmatpush.msra.mxu0 %v633
        %930 = vmatpush.msra.mxu0 %v631
        %931 = vmatpush.msra.mxu0 %v629
        %932 = vmatpush.msra.mxu0 %v627
        %933 = vmatpush.msra.mxu0 %v625
        %934 = vmatpush.msra.mxu0 %v623
        %935 = vmatpush.msra.mxu0 %v621
        %936 = vmatpush.msra.mxu0 %v619
        %937 = vmatpush.msra.mxu0 %v617
        %938 = vmatpush.msra.mxu0 %v615
        %939 = vmatpush.msra.mxu0 %v613
        %940 = vmatmul.f32.gmra.mxu0 %v514
        %v941 = vpop.f32.mrf.mxu0
        %v942 = vadd.f32 %v919, %v941
        %943 = vmatmul.f32.gmra.mxu0 %v516
        %v944 = vpop.f32.mrf.mxu0
        %v945 = vadd.f32 %v922, %v944
        %946 = vdwg.mxu0
        %947 = vmatpush.msra.mxu0 %v675
        %948 = vmatpush.msra.mxu0 %v673
        %949 = vmatpush.msra.mxu0 %v671
        %950 = vmatpush.msra.mxu0 %v669
        %951 = vmatpush.msra.mxu0 %v667
        %952 = vmatpush.msra.mxu0 %v665
        %953 = vmatpush.msra.mxu0 %v663
        %954 = vmatpush.msra.mxu0 %v661
        %955 = vmatpush.msra.mxu0 %v659
        %956 = vmatpush.msra.mxu0 %v657
        %957 = vmatpush.msra.mxu0 %v655
        %958 = vmatpush.msra.mxu0 %v653
        %959 = vmatpush.msra.mxu0 %v651
        %960 = vmatpush.msra.mxu0 %v649
        %961 = vmatpush.msra.mxu0 %v647
        %962 = vmatpush.msra.mxu0 %v645
        %963 = vmatmul.f32.gmra.mxu0 %v515
        %v964 = vpop.f32.mrf.mxu0
        %v965 = vadd.f32 %v942, %v964
        %966 = vmatmul.f32.gmra.mxu0 %v517
        %v967 = vpop.f32.mrf.mxu0
        %v968 = vadd.f32 %v945, %v967
        %969 = vdwg.mxu0
        %970 = vmatpush.msra.mxu0 %v707
        %971 = vmatpush.msra.mxu0 %v705
        %972 = vmatpush.msra.mxu0 %v703
        %973 = vmatpush.msra.mxu0 %v701
        %974 = vmatpush.msra.mxu0 %v699
        %975 = vmatpush.msra.mxu0 %v697
        %976 = vmatpush.msra.mxu0 %v695
        %977 = vmatpush.msra.mxu0 %v693
        %978 = vmatpush.msra.mxu0 %v691
        %979 = vmatpush.msra.mxu0 %v689
        %980 = vmatpush.msra.mxu0 %v687
        %981 = vmatpush.msra.mxu0 %v685
        %982 = vmatpush.msra.mxu0 %v683
        %983 = vmatpush.msra.mxu0 %v681
        %984 = vmatpush.msra.mxu0 %v679
        %985 = vmatpush.msra.mxu0 %v677
        %986 = vmatmul.f32.gmra.mxu0 %v544
        %v987 = vpop.f32.mrf.mxu0
        %v988 = vadd.f32 %v965, %v987
        %989 = vmatmul.f32.gmra.mxu0 %v546
        %v990 = vpop.f32.mrf.mxu0
        %v991 = vadd.f32 %v968, %v990
        %992 = vdwg.mxu0
        %993 = vmatpush.msra.mxu0 %v739
        %994 = vmatpush.msra.mxu0 %v737
        %995 = vmatpush.msra.mxu0 %v735
        %996 = vmatpush.msra.mxu0 %v733
        %997 = vmatpush.msra.mxu0 %v731
        %998 = vmatpush.msra.mxu0 %v729
        %999 = vmatpush.msra.mxu0 %v727
        %1000 = vmatpush.msra.mxu0 %v725
        %1001 = vmatpush.msra.mxu0 %v723
        %1002 = vmatpush.msra.mxu0 %v721
        %1003 = vmatpush.msra.mxu0 %v719
        %1004 = vmatpush.msra.mxu0 %v717
        %1005 = vmatpush.msra.mxu0 %v715
        %1006 = vmatpush.msra.mxu0 %v713
        %1007 = vmatpush.msra.mxu0 %v711
        %1008 = vmatpush.msra.mxu0 %v709
        %1009 = vmatmul.f32.gmra.mxu0 %v545
        %v1010 = vpop.f32.mrf.mxu0
        %v1011 = vadd.f32 %v988, %v1010
        %1012 = vmatmul.f32.gmra.mxu0 %v547
        %v1013 = vpop.f32.mrf.mxu0
        %v1014 = vadd.f32 %v991, %v1013
        %1015 = vdwg.mxu0
        %v1016 = vld [vmem:[%s2] sm:$0x3]
        %v1018 = vperm.slane %v1016, 0
        %v1019 = vperm.slane %v1016, 1
        %v1022 = vmul.f32 %v873, %v1018
        %v1023 = vmul.f32 %v1011, %v1019
        %v1024 = vmul.f32 %v876, %v1018
        %v1025 = vmul.f32 %v1014, %v1019
        %v1026 = vld [vmem:[%s3] sm:$0x3]
        %v1028 = vperm.slane %v1026, 0
        %v1029 = vperm.slane %v1026, 1
        %v1032 = vadd.f32 %v1022, %v1028
        %v1033 = vadd.f32 %v1023, %v1029
        %v1034 = vadd.f32 %v1024, %v1028
        %v1035 = vadd.f32 %v1025, %v1029
        %v1036 = vmax.f32 %v1032, 0.0
        %v1037 = vmax.f32 %v1033, 0.0
        %v1038 = vmax.f32 %v1034, 0.0
        %v1039 = vmax.f32 %v1035, 0.0
        %v1044 = vrot.slane %v1036, 7
        %v1045 = vrot.slane %v1037, 7
        %v1046 = vrot.slane %v1038, 7
        %v1047 = vrot.slane %v1039, 7
        %v1052 = vsel %vm530, 0.0, %v1044
        %v1053 = vsel %vm530, 0.0, %v1045
        %v1054 = vsel %vm530, 0.0, %v1046
        %v1055 = vsel %vm530, 0.0, %v1047
        %v1056 = vrot.slane %v1036, 1
        %v1057 = vrot.slane %v1037, 1
        %v1058 = vrot.slane %v1038, 1
        %v1059 = vrot.slane %v1039, 1
        %v1064 = vsel %vm543, %v1056, 0.0
        %v1065 = vsel %vm543, %v1057, 0.0
        %v1066 = vsel %vm543, %v1058, 0.0
        %v1067 = vsel %vm543, %v1059, 0.0
        %v1068 = vld [vmem:[#allocation7] sm:$0xff]
        %v1069 = vld [vmem:[#allocation7 + $0x8] sm:$0xff]
        %v1070 = vld [vmem:[#allocation7 + $0x10] sm:$0xff]
        %v1071 = vld [vmem:[#allocation7 + $0x18] sm:$0xff]
        %v1072 = vld [vmem:[#allocation7 + $0x20] sm:$0xff]
        %v1073 = vld [vmem:[#allocation7 + $0x28] sm:$0xff]
        %v1074 = vld [vmem:[#allocation7 + $0x30] sm:$0xff]
        %v1075 = vld [vmem:[#allocation7 + $0x38] sm:$0xff]
        %v1076 = vld [vmem:[#allocation7 + $0x40] sm:$0xff]
        %v1077 = vld [vmem:[#allocation7 + $0x48] sm:$0xff]
        %v1078 = vld [vmem:[#allocation7 + $0x50] sm:$0xff]
        %v1079 = vld [vmem:[#allocation7 + $0x58] sm:$0xff]
        %v1080 = vld [vmem:[#allocation7 + $0x60] sm:$0xff]
        %v1081 = vld [vmem:[#allocation7 + $0x68] sm:$0xff]
        %v1082 = vld [vmem:[#allocation7 + $0x70] sm:$0xff]
        %v1083 = vld [vmem:[#allocation7 + $0x78] sm:$0xff]
        %v1084 = vld [vmem:[#allocation7 + $0x80] sm:$0xff]
        %v1085 = vld [vmem:[#allocation7 + $0x88] sm:$0xff]
        %v1086 = vld [vmem:[#allocation7 + $0x90] sm:$0xff]
        %v1087 = vld [vmem:[#allocation7 + $0x98] sm:$0xff]
        %v1088 = vld [vmem:[#allocation7 + $0xa0] sm:$0xff]
        %v1089 = vld [vmem:[#allocation7 + $0xa8] sm:$0xff]
        %v1090 = vld [vmem:[#allocation7 + $0xb0] sm:$0xff]
        %v1091 = vld [vmem:[#allocation7 + $0xb8] sm:$0xff]
        %v1092 = vld [vmem:[#allocation7 + $0xc0] sm:$0xff]
        %v1093 = vld [vmem:[#allocation7 + $0xc8] sm:$0xff]
        %v1094 = vld [vmem:[#allocation7 + $0xd0] sm:$0xff]
        %v1095 = vld [vmem:[#allocation7 + $0xd8] sm:$0xff]
        %v1096 = vld [vmem:[#allocation7 + $0xe0] sm:$0xff]
        %v1097 = vld [vmem:[#allocation7 + $0xe8] sm:$0xff]
        %v1098 = vld [vmem:[#allocation7 + $0xf0] sm:$0xff]
        %v1099 = vld [vmem:[#allocation7 + $0xf8] sm:$0xff]
        %v1100 = vld [vmem:[#allocation7 + $0x100] sm:$0xff]
        %v1101 = vld [vmem:[#allocation7 + $0x108] sm:$0xff]
        %v1102 = vld [vmem:[#allocation7 + $0x110] sm:$0xff]
        %v1103 = vld [vmem:[#allocation7 + $0x118] sm:$0xff]
        %v1104 = vld [vmem:[#allocation7 + $0x120] sm:$0xff]
        %v1105 = vld [vmem:[#allocation7 + $0x128] sm:$0xff]
        %v1106 = vld [vmem:[#allocation7 + $0x130] sm:$0xff]
        %v1107 = vld [vmem:[#allocation7 + $0x138] sm:$0xff]
        %v1108 = vld [vmem:[#allocation7 + $0x140] sm:$0xff]
        %v1109 = vld [vmem:[#allocation7 + $0x148] sm:$0xff]
        %v1110 = vld [vmem:[#allocation7 + $0x150] sm:$0xff]
        %v1111 = vld [vmem:[#allocation7 + $0x158] sm:$0xff]
        %v1112 = vld [vmem:[#allocation7 + $0x160] sm:$0xff]
        %v1113 = vld [vmem:[#allocation7 + $0x168] sm:$0xff]
        %v1114 = vld [vmem:[#allocation7 + $0x170] sm:$0xff]
        %v1115 = vld [vmem:[#allocation7 + $0x178] sm:$0xff]
        %v1116 = vld [vmem:[#allocation7 + $0x180] sm:$0xff]
        %v1117 = vld [vmem:[#allocation7 + $0x188] sm:$0xff]
        %v1118 = vld [vmem:[#allocation7 + $0x190] sm:$0xff]
        %v1119 = vld [vmem:[#allocation7 + $0x198] sm:$0xff]
        %v1120 = vld [vmem:[#allocation7 + $0x1a0] sm:$0xff]
        %v1121 = vld [vmem:[#allocation7 + $0x1a8] sm:$0xff]
        %v1122 = vld [vmem:[#allocation7 + $0x1b0] sm:$0xff]
        %v1123 = vld [vmem:[#allocation7 + $0x1b8] sm:$0xff]
        %v1124 = vld [vmem:[#allocation7 + $0x1c0] sm:$0xff]
        %v1125 = vld [vmem:[#allocation7 + $0x1c8] sm:$0xff]
        %v1126 = vld [vmem:[#allocation7 + $0x1d0] sm:$0xff]
        %v1127 = vld [vmem:[#allocation7 + $0x1d8] sm:$0xff]
        %v1128 = vld [vmem:[#allocation7 + $0x1e0] sm:$0xff]
        %v1129 = vld [vmem:[#allocation7 + $0x1e8] sm:$0xff]
        %v1130 = vld [vmem:[#allocation7 + $0x1f0] sm:$0xff]
        %v1131 = vld [vmem:[#allocation7 + $0x1f8] sm:$0xff]
        %v1132 = vld [vmem:[#allocation7 + $0x200] sm:$0xff]
        %v1133 = vld [vmem:[#allocation7 + $0x208] sm:$0xff]
        %v1134 = vld [vmem:[#allocation7 + $0x210] sm:$0xff]
        %v1135 = vld [vmem:[#allocation7 + $0x218] sm:$0xff]
        %v1136 = vld [vmem:[#allocation7 + $0x220] sm:$0xff]
        %v1137 = vld [vmem:[#allocation7 + $0x228] sm:$0xff]
        %v1138 = vld [vmem:[#allocation7 + $0x230] sm:$0xff]
        %v1139 = vld [vmem:[#allocation7 + $0x238] sm:$0xff]
        %v1140 = vld [vmem:[#allocation7 + $0x240] sm:$0xff]
        %v1141 = vld [vmem:[#allocation7 + $0x248] sm:$0xff]
        %v1142 = vld [vmem:[#allocation7 + $0x250] sm:$0xff]
        %v1143 = vld [vmem:[#allocation7 + $0x258] sm:$0xff]
        %v1144 = vld [vmem:[#allocation7 + $0x260] sm:$0xff]
        %v1145 = vld [vmem:[#allocation7 + $0x268] sm:$0xff]
        %v1146 = vld [vmem:[#allocation7 + $0x270] sm:$0xff]
        %v1147 = vld [vmem:[#allocation7 + $0x278] sm:$0xff]
        %v1148 = vld [vmem:[#allocation7 + $0x280] sm:$0xff]
        %v1149 = vld [vmem:[#allocation7 + $0x288] sm:$0xff]
        %v1150 = vld [vmem:[#allocation7 + $0x290] sm:$0xff]
        %v1151 = vld [vmem:[#allocation7 + $0x298] sm:$0xff]
        %v1152 = vld [vmem:[#allocation7 + $0x2a0] sm:$0xff]
        %v1153 = vld [vmem:[#allocation7 + $0x2a8] sm:$0xff]
        %v1154 = vld [vmem:[#allocation7 + $0x2b0] sm:$0xff]
        %v1155 = vld [vmem:[#allocation7 + $0x2b8] sm:$0xff]
        %v1156 = vld [vmem:[#allocation7 + $0x2c0] sm:$0xff]
        %v1157 = vld [vmem:[#allocation7 + $0x2c8] sm:$0xff]
        %v1158 = vld [vmem:[#allocation7 + $0x2d0] sm:$0xff]
        %v1159 = vld [vmem:[#allocation7 + $0x2d8] sm:$0xff]
        %v1160 = vld [vmem:[#allocation7 + $0x2e0] sm:$0xff]
        %v1161 = vld [vmem:[#allocation7 + $0x2e8] sm:$0xff]
        %v1162 = vld [vmem:[#allocation7 + $0x2f0] sm:$0xff]
        %v1163 = vld [vmem:[#allocation7 + $0x2f8] sm:$0xff]
        %v1164 = vld [vmem:[#allocation7 + $0x300] sm:$0xff]
        %v1165 = vld [vmem:[#allocation7 + $0x308] sm:$0xff]
        %v1166 = vld [vmem:[#allocation7 + $0x310] sm:$0xff]
        %v1167 = vld [vmem:[#allocation7 + $0x318] sm:$0xff]
        %v1168 = vld [vmem:[#allocation7 + $0x320] sm:$0xff]
        %v1169 = vld [vmem:[#allocation7 + $0x328] sm:$0xff]
        %v1170 = vld [vmem:[#allocation7 + $0x330] sm:$0xff]
        %v1171 = vld [vmem:[#allocation7 + $0x338] sm:$0xff]
        %v1172 = vld [vmem:[#allocation7 + $0x340] sm:$0xff]
        %v1173 = vld [vmem:[#allocation7 + $0x348] sm:$0xff]
        %v1174 = vld [vmem:[#allocation7 + $0x350] sm:$0xff]
        %v1175 = vld [vmem:[#allocation7 + $0x358] sm:$0xff]
        %v1176 = vld [vmem:[#allocation7 + $0x360] sm:$0xff]
        %v1177 = vld [vmem:[#allocation7 + $0x368] sm:$0xff]
        %v1178 = vld [vmem:[#allocation7 + $0x370] sm:$0xff]
        %v1179 = vld [vmem:[#allocation7 + $0x378] sm:$0xff]
        %v1180 = vld [vmem:[#allocation7 + $0x380] sm:$0xff]
        %v1181 = vld [vmem:[#allocation7 + $0x388] sm:$0xff]
        %v1182 = vld [vmem:[#allocation7 + $0x390] sm:$0xff]
        %v1183 = vld [vmem:[#allocation7 + $0x398] sm:$0xff]
        %v1184 = vld [vmem:[#allocation7 + $0x3a0] sm:$0xff]
        %v1185 = vld [vmem:[#allocation7 + $0x3a8] sm:$0xff]
        %v1186 = vld [vmem:[#allocation7 + $0x3b0] sm:$0xff]
        %v1187 = vld [vmem:[#allocation7 + $0x3b8] sm:$0xff]
        %v1188 = vld [vmem:[#allocation7 + $0x3c0] sm:$0xff]
        %v1189 = vld [vmem:[#allocation7 + $0x3c8] sm:$0xff]
        %v1190 = vld [vmem:[#allocation7 + $0x3d0] sm:$0xff]
        %v1191 = vld [vmem:[#allocation7 + $0x3d8] sm:$0xff]
        %v1192 = vld [vmem:[#allocation7 + $0x3e0] sm:$0xff]
        %v1193 = vld [vmem:[#allocation7 + $0x3e8] sm:$0xff]
        %v1194 = vld [vmem:[#allocation7 + $0x3f0] sm:$0xff]
        %v1195 = vld [vmem:[#allocation7 + $0x3f8] sm:$0xff]
        %v1196 = vld [vmem:[#allocation7 + $0x400] sm:$0xff]
        %v1197 = vld [vmem:[#allocation7 + $0x408] sm:$0xff]
        %v1198 = vld [vmem:[#allocation7 + $0x410] sm:$0xff]
        %v1199 = vld [vmem:[#allocation7 + $0x418] sm:$0xff]
        %v1200 = vld [vmem:[#allocation7 + $0x420] sm:$0xff]
        %v1201 = vld [vmem:[#allocation7 + $0x428] sm:$0xff]
        %v1202 = vld [vmem:[#allocation7 + $0x430] sm:$0xff]
        %v1203 = vld [vmem:[#allocation7 + $0x438] sm:$0xff]
        %v1204 = vld [vmem:[#allocation7 + $0x440] sm:$0xff]
        %v1205 = vld [vmem:[#allocation7 + $0x448] sm:$0xff]
        %v1206 = vld [vmem:[#allocation7 + $0x450] sm:$0xff]
        %v1207 = vld [vmem:[#allocation7 + $0x458] sm:$0xff]
        %v1208 = vld [vmem:[#allocation7 + $0x460] sm:$0xff]
        %v1209 = vld [vmem:[#allocation7 + $0x468] sm:$0xff]
        %v1210 = vld [vmem:[#allocation7 + $0x470] sm:$0xff]
        %v1211 = vld [vmem:[#allocation7 + $0x478] sm:$0xff]
        %v1212 = vld [vmem:[#allocation7 + $0x480] sm:$0xff]
        %v1213 = vld [vmem:[#allocation7 + $0x488] sm:$0xff]
        %v1214 = vld [vmem:[#allocation7 + $0x490] sm:$0xff]
        %v1215 = vld [vmem:[#allocation7 + $0x498] sm:$0xff]
        %v1216 = vld [vmem:[#allocation7 + $0x4a0] sm:$0xff]
        %v1217 = vld [vmem:[#allocation7 + $0x4a8] sm:$0xff]
        %v1218 = vld [vmem:[#allocation7 + $0x4b0] sm:$0xff]
        %v1219 = vld [vmem:[#allocation7 + $0x4b8] sm:$0xff]
        %v1220 = vld [vmem:[#allocation7 + $0x4c0] sm:$0xff]
        %v1221 = vld [vmem:[#allocation7 + $0x4c8] sm:$0xff]
        %v1222 = vld [vmem:[#allocation7 + $0x4d0] sm:$0xff]
        %v1223 = vld [vmem:[#allocation7 + $0x4d8] sm:$0xff]
        %v1224 = vld [vmem:[#allocation7 + $0x4e0] sm:$0xff]
        %v1225 = vld [vmem:[#allocation7 + $0x4e8] sm:$0xff]
        %v1226 = vld [vmem:[#allocation7 + $0x4f0] sm:$0xff]
        %v1227 = vld [vmem:[#allocation7 + $0x4f8] sm:$0xff]
        %v1228 = vld [vmem:[#allocation7 + $0x500] sm:$0xff]
        %v1229 = vld [vmem:[#allocation7 + $0x508] sm:$0xff]
        %v1230 = vld [vmem:[#allocation7 + $0x510] sm:$0xff]
        %v1231 = vld [vmem:[#allocation7 + $0x518] sm:$0xff]
        %v1232 = vld [vmem:[#allocation7 + $0x520] sm:$0xff]
        %v1233 = vld [vmem:[#allocation7 + $0x528] sm:$0xff]
        %v1234 = vld [vmem:[#allocation7 + $0x530] sm:$0xff]
        %v1235 = vld [vmem:[#allocation7 + $0x538] sm:$0xff]
        %v1236 = vld [vmem:[#allocation7 + $0x540] sm:$0xff]
        %v1237 = vld [vmem:[#allocation7 + $0x548] sm:$0xff]
        %v1238 = vld [vmem:[#allocation7 + $0x550] sm:$0xff]
        %v1239 = vld [vmem:[#allocation7 + $0x558] sm:$0xff]
        %v1240 = vld [vmem:[#allocation7 + $0x560] sm:$0xff]
        %v1241 = vld [vmem:[#allocation7 + $0x568] sm:$0xff]
        %v1242 = vld [vmem:[#allocation7 + $0x570] sm:$0xff]
        %v1243 = vld [vmem:[#allocation7 + $0x578] sm:$0xff]
        %v1244 = vld [vmem:[#allocation7 + $0x580] sm:$0xff]
        %v1245 = vld [vmem:[#allocation7 + $0x588] sm:$0xff]
        %v1246 = vld [vmem:[#allocation7 + $0x590] sm:$0xff]
        %v1247 = vld [vmem:[#allocation7 + $0x598] sm:$0xff]
        %v1248 = vld [vmem:[#allocation7 + $0x5a0] sm:$0xff]
        %v1249 = vld [vmem:[#allocation7 + $0x5a8] sm:$0xff]
        %v1250 = vld [vmem:[#allocation7 + $0x5b0] sm:$0xff]
        %v1251 = vld [vmem:[#allocation7 + $0x5b8] sm:$0xff]
        %v1252 = vld [vmem:[#allocation7 + $0x5c0] sm:$0xff]
        %v1253 = vld [vmem:[#allocation7 + $0x5c8] sm:$0xff]
        %v1254 = vld [vmem:[#allocation7 + $0x5d0] sm:$0xff]
        %v1255 = vld [vmem:[#allocation7 + $0x5d8] sm:$0xff]
        %v1256 = vld [vmem:[#allocation7 + $0x5e0] sm:$0xff]
        %v1257 = vld [vmem:[#allocation7 + $0x5e8] sm:$0xff]
        %v1258 = vld [vmem:[#allocation7 + $0x5f0] sm:$0xff]
        %v1259 = vld [vmem:[#allocation7 + $0x5f8] sm:$0xff]
        %1260 = vmatpush.msra.mxu0 %v1098
        %1261 = vmatpush.msra.mxu0 %v1096
        %1262 = vmatpush.msra.mxu0 %v1094
        %1263 = vmatpush.msra.mxu0 %v1092
        %1264 = vmatpush.msra.mxu0 %v1090
        %1265 = vmatpush.msra.mxu0 %v1088
        %1266 = vmatpush.msra.mxu0 %v1086
        %1267 = vmatpush.msra.mxu0 %v1084
        %1268 = vmatpush.msra.mxu0 %v1082
        %1269 = vmatpush.msra.mxu0 %v1080
        %1270 = vmatpush.msra.mxu0 %v1078
        %1271 = vmatpush.msra.mxu0 %v1076
        %1272 = vmatpush.msra.mxu0 %v1074
        %1273 = vmatpush.msra.mxu0 %v1072
        %1274 = vmatpush.msra.mxu0 %v1070
        %1275 = vmatpush.msra.mxu0 %v1068
        %1276 = vmatmul.f32.gmra.mxu0 %v1052
        %v1277 = vpop.f32.mrf.mxu0
        %v1278 = vadd.f32 0.0, %v1277
        %1279 = vmatmul.f32.gmra.mxu0 %v1054
        %v1280 = vpop.f32.mrf.mxu0
        %v1281 = vadd.f32 0.0, %v1280
        %1282 = vdwg.mxu0
        %1283 = vmatpush.msra.mxu0 %v1130
        %1284 = vmatpush.msra.mxu0 %v1128
        %1285 = vmatpush.msra.mxu0 %v1126
        %1286 = vmatpush.msra.mxu0 %v1124
        %1287 = vmatpush.msra.mxu0 %v1122
        %1288 = vmatpush.msra.mxu0 %v1120
        %1289 = vmatpush.msra.mxu0 %v1118
        %1290 = vmatpush.msra.mxu0 %v1116
        %1291 = vmatpush.msra.mxu0 %v1114
        %1292 = vmatpush.msra.mxu0 %v1112
        %1293 = vmatpush.msra.mxu0 %v1110
        %1294 = vmatpush.msra.mxu0 %v1108
        %1295 = vmatpush.msra.mxu0 %v1106
        %1296 = vmatpush.msra.mxu0 %v1104
        %1297 = vmatpush.msra.mxu0 %v1102
        %1298 = vmatpush.msra.mxu0 %v1100
        %1299 = vmatmul.f32.gmra.mxu0 %v1053
        %v1300 = vpop.f32.mrf.mxu0
        %v1301 = vadd.f32 %v1278, %v1300
        %1302 = vmatmul.f32.gmra.mxu0 %v1055
        %v1303 = vpop.f32.mrf.mxu0
        %v1304 = vadd.f32 %v1281, %v1303
        %1305 = vdwg.mxu0
        %1306 = vmatpush.msra.mxu0 %v1162
        %1307 = vmatpush.msra.mxu0 %v1160
        %1308 = vmatpush.msra.mxu0 %v1158
        %1309 = vmatpush.msra.mxu0 %v1156
        %1310 = vmatpush.msra.mxu0 %v1154
        %1311 = vmatpush.msra.mxu0 %v1152
        %1312 = vmatpush.msra.mxu0 %v1150
        %1313 = vmatpush.msra.mxu0 %v1148
        %1314 = vmatpush.msra.mxu0 %v1146
        %1315 = vmatpush.msra.mxu0 %v1144
        %1316 = vmatpush.msra.mxu0 %v1142
        %1317 = vmatpush.msra.mxu0 %v1140
        %1318 = vmatpush.msra.mxu0 %v1138
        %1319 = vmatpush.msra.mxu0 %v1136
        %1320 = vmatpush.msra.mxu0 %v1134
        %1321 = vmatpush.msra.mxu0 %v1132
        %1322 = vmatmul.f32.gmra.mxu0 %v1036
        %v1323 = vpop.f32.mrf.mxu0
        %v1324 = vadd.f32 %v1301, %v1323
        %1325 = vmatmul.f32.gmra.mxu0 %v1038
        %v1326 = vpop.f32.mrf.mxu0
        %v1327 = vadd.f32 %v1304, %v1326
        %1328 = vdwg.mxu0
        %1329 = vmatpush.msra.mxu0 %v1194
        %1330 = vmatpush.msra.mxu0 %v1192
        %1331 = vmatpush.msra.mxu0 %v1190
        %1332 = vmatpush.msra.mxu0 %v1188
        %1333 = vmatpush.msra.mxu0 %v1186
        %1334 = vmatpush.msra.mxu0 %v1184
        %1335 = vmatpush.msra.mxu0 %v1182
        %1336 = vmatpush.msra.mxu0 %v1180
        %1337 = vmatpush.msra.mxu0 %v1178
        %1338 = vmatpush.msra.mxu0 %v1176
        %1339 = vmatpush.msra.mxu0 %v1174
        %1340 = vmatpush.msra.mxu0 %v1172
        %1341 = vmatpush.msra.mxu0 %v1170
        %1342 = vmatpush.msra.mxu0 %v1168
        %1343 = vmatpush.msra.mxu0 %v1166
        %1344 = vmatpush.msra.mxu0 %v1164
        %1345 = vmatmul.f32.gmra.mxu0 %v1037
        %v1346 = vpop.f32.mrf.mxu0
        %v1347 = vadd.f32 %v1324, %v1346
        %1348 = vmatmul.f32.gmra.mxu0 %v1039
        %v1349 = vpop.f32.mrf.mxu0
        %v1350 = vadd.f32 %v1327, %v1349
        %1351 = vdwg.mxu0
        %1352 = vmatpush.msra.mxu0 %v1226
        %1353 = vmatpush.msra.mxu0 %v1224
        %1354 = vmatpush.msra.mxu0 %v1222
        %1355 = vmatpush.msra.mxu0 %v1220
        %1356 = vmatpush.msra.mxu0 %v1218
        %1357 = vmatpush.msra.mxu0 %v1216
        %1358 = vmatpush.msra.mxu0 %v1214
        %1359 = vmatpush.msra.mxu0 %v1212
        %1360 = vmatpush.msra.mxu0 %v1210
        %1361 = vmatpush.msra.mxu0 %v1208
        %1362 = vmatpush.msra.mxu0 %v1206
        %1363 = vmatpush.msra.mxu0 %v1204
        %1364 = vmatpush.msra.mxu0 %v1202
        %1365 = vmatpush.msra.mxu0 %v1200
        %1366 = vmatpush.msra.mxu0 %v1198
        %1367 = vmatpush.msra.mxu0 %v1196
        %1368 = vmatmul.f32.gmra.mxu0 %v1064
        %v1369 = vpop.f32.mrf.mxu0
        %v1370 = vadd.f32 %v1347, %v1369
        %1371 = vmatmul.f32.gmra.mxu0 %v1066
        %v1372 = vpop.f32.mrf.mxu0
        %v1373 = vadd.f32 %v1350, %v1372
        %1374 = vdwg.mxu0
        %1375 = vmatpush.msra.mxu0 %v1258
        %1376 = vmatpush.msra.mxu0 %v1256
        %1377 = vmatpush.msra.mxu0 %v1254
        %1378 = vmatpush.msra.mxu0 %v1252
        %1379 = vmatpush.msra.mxu0 %v1250
        %1380 = vmatpush.msra.mxu0 %v1248
        %1381 = vmatpush.msra.mxu0 %v1246
        %1382 = vmatpush.msra.mxu0 %v1244
        %1383 = vmatpush.msra.mxu0 %v1242
        %1384 = vmatpush.msra.mxu0 %v1240
        %1385 = vmatpush.msra.mxu0 %v1238
        %1386 = vmatpush.msra.mxu0 %v1236
        %1387 = vmatpush.msra.mxu0 %v1234
        %1388 = vmatpush.msra.mxu0 %v1232
        %1389 = vmatpush.msra.mxu0 %v1230
        %1390 = vmatpush.msra.mxu0 %v1228
        %1391 = vmatmul.f32.gmra.mxu0 %v1065
        %v1392 = vpop.f32.mrf.mxu0
        %v1393 = vadd.f32 %v1370, %v1392
        %1394 = vmatmul.f32.gmra.mxu0 %v1067
        %v1395 = vpop.f32.mrf.mxu0
        %v1396 = vadd.f32 %v1373, %v1395
        %1397 = vdwg.mxu0
        %1398 = vmatpush.msra.mxu0 %v1099
        %1399 = vmatpush.msra.mxu0 %v1097
        %1400 = vmatpush.msra.mxu0 %v1095
        %1401 = vmatpush.msra.mxu0 %v1093
        %1402 = vmatpush.msra.mxu0 %v1091
        %1403 = vmatpush.msra.mxu0 %v1089
        %1404 = vmatpush.msra.mxu0 %v1087
        %1405 = vmatpush.msra.mxu0 %v1085
        %1406 = vmatpush.msra.mxu0 %v1083
        %1407 = vmatpush.msra.mxu0 %v1081
        %1408 = vmatpush.msra.mxu0 %v1079
        %1409 = vmatpush.msra.mxu0 %v1077
        %1410 = vmatpush.msra.mxu0 %v1075
        %1411 = vmatpush.msra.mxu0 %v1073
        %1412 = vmatpush.msra.mxu0 %v1071
        %1413 = vmatpush.msra.mxu0 %v1069
        %1414 = vmatmul.f32.gmra.mxu0 %v1052
        %v1415 = vpop.f32.mrf.mxu0
        %v1416 = vadd.f32 0.0, %v1415
        %1417 = vmatmul.f32.gmra.mxu0 %v1054
        %v1418 = vpop.f32.mrf.mxu0
        %v1419 = vadd.f32 0.0, %v1418
        %1420 = vdwg.mxu0
        %1421 = vmatpush.msra.mxu0 %v1131
        %1422 = vmatpush.msra.mxu0 %v1129
        %1423 = vmatpush.msra.mxu0 %v1127
        %1424 = vmatpush.msra.mxu0 %v1125
        %1425 = vmatpush.msra.mxu0 %v1123
        %1426 = vmatpush.msra.mxu0 %v1121
        %1427 = vmatpush.msra.mxu0 %v1119
        %1428 = vmatpush.msra.mxu0 %v1117
        %1429 = vmatpush.msra.mxu0 %v1115
        %1430 = vmatpush.msra.mxu0 %v1113
        %1431 = vmatpush.msra.mxu0 %v1111
        %1432 = vmatpush.msra.mxu0 %v1109
        %1433 = vmatpush.msra.mxu0 %v1107
        %1434 = vmatpush.msra.mxu0 %v1105
        %1435 = vmatpush.msra.mxu0 %v1103
        %1436 = vmatpush.msra.mxu0 %v1101
        %1437 = vmatmul.f32.gmra.mxu0 %v1053
        %v1438 = vpop.f32.mrf.mxu0
        %v1439 = vadd.f32 %v1416, %v1438
        %1440 = vmatmul.f32.gmra.mxu0 %v1055
        %v1441 = vpop.f32.mrf.mxu0
        %v1442 = vadd.f32 %v1419, %v1441
        %1443 = vdwg.mxu0
        %1444 = vmatpush.msra.mxu0 %v1163
        %1445 = vmatpush.msra.mxu0 %v1161
        %1446 = vmatpush.msra.mxu0 %v1159
        %1447 = vmatpush.msra.mxu0 %v1157
        %1448 = vmatpush.msra.mxu0 %v1155
        %1449 = vmatpush.msra.mxu0 %v1153
        %1450 = vmatpush.msra.mxu0 %v1151
        %1451 = vmatpush.msra.mxu0 %v1149
        %1452 = vmatpush.msra.mxu0 %v1147
        %1453 = vmatpush.msra.mxu0 %v1145
        %1454 = vmatpush.msra.mxu0 %v1143
        %1455 = vmatpush.msra.mxu0 %v1141
        %1456 = vmatpush.msra.mxu0 %v1139
        %1457 = vmatpush.msra.mxu0 %v1137
        %1458 = vmatpush.msra.mxu0 %v1135
        %1459 = vmatpush.msra.mxu0 %v1133
        %1460 = vmatmul.f32.gmra.mxu0 %v1036
        %v1461 = vpop.f32.mrf.mxu0
        %v1462 = vadd.f32 %v1439, %v1461
        %1463 = vmatmul.f32.gmra.mxu0 %v1038
        %v1464 = vpop.f32.mrf.mxu0
        %v1465 = vadd.f32 %v1442, %v1464
        %1466 = vdwg.mxu0
        %1467 = vmatpush.msra.mxu0 %v1195
        %1468 = vmatpush.msra.mxu0 %v1193
        %1469 = vmatpush.msra.mxu0 %v1191
        %1470 = vmatpush.msra.mxu0 %v1189
        %1471 = vmatpush.msra.mxu0 %v1187
        %1472 = vmatpush.msra.mxu0 %v1185
        %1473 = vmatpush.msra.mxu0 %v1183
        %1474 = vmatpush.msra.mxu0 %v1181
        %1475 = vmatpush.msra.mxu0 %v1179
        %1476 = vmatpush.msra.mxu0 %v1177
        %1477 = vmatpush.msra.mxu0 %v1175
        %1478 = vmatpush.msra.mxu0 %v1173
        %1479 = vmatpush.msra.mxu0 %v1171
        %1480 = vmatpush.msra.mxu0 %v1169
        %1481 = vmatpush.msra.mxu0 %v1167
        %1482 = vmatpush.msra.mxu0 %v1165
        %1483 = vmatmul.f32.gmra.mxu0 %v1037
        %v1484 = vpop.f32.mrf.mxu0
        %v1485 = vadd.f32 %v1462, %v1484
        %1486 = vmatmul.f32.gmra.mxu0 %v1039
        %v1487 = vpop.f32.mrf.mxu0
        %v1488 = vadd.f32 %v1465, %v1487
        %1489 = vdwg.mxu0
        %1490 = vmatpush.msra.mxu0 %v1227
        %1491 = vmatpush.msra.mxu0 %v1225
        %1492 = vmatpush.msra.mxu0 %v1223
        %1493 = vmatpush.msra.mxu0 %v1221
        %1494 = vmatpush.msra.mxu0 %v1219
        %1495 = vmatpush.msra.mxu0 %v1217
        %1496 = vmatpush.msra.mxu0 %v1215
        %1497 = vmatpush.msra.mxu0 %v1213
        %1498 = vmatpush.msra.mxu0 %v1211
        %1499 = vmatpush.msra.mxu0 %v1209
        %1500 = vmatpush.msra.mxu0 %v1207
        %1501 = vmatpush.msra.mxu0 %v1205
        %1502 = vmatpush.msra.mxu0 %v1203
        %1503 = vmatpush.msra.mxu0 %v1201
        %1504 = vmatpush.msra.mxu0 %v1199
        %1505 = vmatpush.msra.mxu0 %v1197
        %1506 = vmatmul.f32.gmra.mxu0 %v1064
        %v1507 = vpop.f32.mrf.mxu0
        %v1508 = vadd.f32 %v1485, %v1507
        %1509 = vmatmul.f32.gmra.mxu0 %v1066
        %v1510 = vpop.f32.mrf.mxu0
        %v1511 = vadd.f32 %v1488, %v1510
        %1512 = vdwg.mxu0
        %1513 = vmatpush.msra.mxu0 %v1259
        %1514 = vmatpush.msra.mxu0 %v1257
        %1515 = vmatpush.msra.mxu0 %v1255
        %1516 = vmatpush.msra.mxu0 %v1253
        %1517 = vmatpush.msra.mxu0 %v1251
        %1518 = vmatpush.msra.mxu0 %v1249
        %1519 = vmatpush.msra.mxu0 %v1247
        %1520 = vmatpush.msra.mxu0 %v1245
        %1521 = vmatpush.msra.mxu0 %v1243
        %1522 = vmatpush.msra.mxu0 %v1241
        %1523 = vmatpush.msra.mxu0 %v1239
        %1524 = vmatpush.msra.mxu0 %v1237
        %1525 = vmatpush.msra.mxu0 %v1235
        %1526 = vmatpush.msra.mxu0 %v1233
        %1527 = vmatpush.msra.mxu0 %v1231
        %1528 = vmatpush.msra.mxu0 %v1229
        %1529 = vmatmul.f32.gmra.mxu0 %v1065
        %v1530 = vpop.f32.mrf.mxu0
        %v1531 = vadd.f32 %v1508, %v1530
        %1532 = vmatmul.f32.gmra.mxu0 %v1067
        %v1533 = vpop.f32.mrf.mxu0
        %v1534 = vadd.f32 %v1511, %v1533
        %1535 = vdwg.mxu0
        %v1536 = vld [vmem:[%s5] sm:$0x3]
        %v1538 = vperm.slane %v1536, 0
        %v1539 = vperm.slane %v1536, 1
        %v1542 = vmul.f32 %v1393, %v1538
        %v1543 = vmul.f32 %v1531, %v1539
        %v1544 = vmul.f32 %v1396, %v1538
        %v1545 = vmul.f32 %v1534, %v1539
        %v1546 = vld [vmem:[%s6] sm:$0x3]
        %v1548 = vperm.slane %v1546, 0
        %v1549 = vperm.slane %v1546, 1
        %v1552 = vadd.f32 %v1542, %v1548
        %v1553 = vadd.f32 %v1543, %v1549
        %v1554 = vadd.f32 %v1544, %v1548
        %v1555 = vadd.f32 %v1545, %v1549
        %v1556 = vrot.slane %v1552, 4
        %v1557 = vadd.f32 %v1552, %v1556
        %v1558 = vrot.slane %v1557, 2
        %v1559 = vadd.f32 %v1557, %v1558
        %v1560 = vrot.slane %v1559, 1
        %v1561 = vadd.f32 %v1559, %v1560
        %v1562 = vrot.slane %v1553, 4
        %v1563 = vadd.f32 %v1553, %v1562
        %v1564 = vrot.slane %v1563, 2
        %v1565 = vadd.f32 %v1563, %v1564
        %v1566 = vrot.slane %v1565, 1
        %v1567 = vadd.f32 %v1565, %v1566
        %v1568 = vrot.slane %v1554, 4
        %v1569 = vadd.f32 %v1554, %v1568
        %v1570 = vrot.slane %v1569, 2
        %v1571 = vadd.f32 %v1569, %v1570
        %v1572 = vrot.slane %v1571, 1
        %v1573 = vadd.f32 %v1571, %v1572
        %v1574 = vrot.slane %v1555, 4
        %v1575 = vadd.f32 %v1555, %v1574
        %v1576 = vrot.slane %v1575, 2
        %v1577 = vadd.f32 %v1575, %v1576
        %v1578 = vrot.slane %v1577, 1
        %v1579 = vadd.f32 %v1577, %v1578
        %v1580 = vrot.slane %v1552, 4
        %v1581 = vmax.f32 %v1552, %v1580
        %v1582 = vrot.slane %v1581, 2
        %v1583 = vmax.f32 %v1581, %v1582
        %v1584 = vrot.slane %v1583, 1
        %v1585 = vmax.f32 %v1583, %v1584
        %v1586 = vrot.slane %v1553, 4
        %v1587 = vmax.f32 %v1553, %v1586
        %v1588 = vrot.slane %v1587, 2
        %v1589 = vmax.f32 %v1587, %v1588
        %v1590 = vrot.slane %v1589, 1
        %v1591 = vmax.f32 %v1589, %v1590
        %v1592 = vrot.slane %v1554, 4
        %v1593 = vmax.f32 %v1554, %v1592
        %v1594 = vrot.slane %v1593, 2
        %v1595 = vmax.f32 %v1593, %v1594
        %v1596 = vrot.slane %v1595, 1
        %v1597 = vmax.f32 %v1595, %v1596
        %v1598 = vrot.slane %v1555, 4
        %v1599 = vmax.f32 %v1555, %v1598
        %v1600 = vrot.slane %v1599, 2
        %v1601 = vmax.f32 %v1599, %v1600
        %v1602 = vrot.slane %v1601, 1
        %v1603 = vmax.f32 %v1601, %v1602
        %1606 = vrot.lane.b32.xlu0 %v1561, 96
        %v1607 = vpop.permute.xlu0 %1606
        %1608 = vrot.lane.b32.xlu0 %v1573, 96
        %v1609 = vpop.permute.xlu0 %1608
        %v1612 = vadd.f32 %v1561, %v1607
        %v1613 = vadd.f32 %v1573, %v1609
        %1616 = vrot.lane.b32.xlu0 %v1585, 96
        %v1617 = vpop.permute.xlu0 %1616
        %1618 = vrot.lane.b32.xlu0 %v1597, 96
        %v1619 = vpop.permute.xlu0 %1618
        %v1622 = vmax.f32 %v1585, %v1617
        %v1623 = vmax.f32 %v1597, %v1619
        %1624 = vrot.lane.b32.xlu0 %v1561, 64
        %v1625 = vpop.permute.xlu0 %1624
        %1626 = vrot.lane.b32.xlu0 %v1573, 64
        %v1627 = vpop.permute.xlu0 %1626
        %v1630 = vadd.f32 %v1612, %v1625
        %v1631 = vadd.f32 %v1613, %v1627
        %1632 = vrot.lane.b32.xlu0 %v1585, 64
        %v1633 = vpop.permute.xlu0 %1632
        %1634 = vrot.lane.b32.xlu0 %v1597, 64
        %v1635 = vpop.permute.xlu0 %1634
        %v1638 = vmax.f32 %v1622, %v1633
        %v1639 = vmax.f32 %v1623, %v1635
        %1640 = vrot.lane.b32.xlu0 %v1561, 32
        %v1641 = vpop.permute.xlu0 %1640
        %1642 = vrot.lane.b32.xlu0 %v1573, 32
        %v1643 = vpop.permute.xlu0 %1642
        %v1646 = vadd.f32 %v1630, %v1641
        %v1647 = vadd.f32 %v1631, %v1643
        %1648 = vrot.lane.b32.xlu0 %v1585, 32
        %v1649 = vpop.permute.xlu0 %1648
        %1650 = vrot.lane.b32.xlu0 %v1597, 32
        %v1651 = vpop.permute.xlu0 %1650
        %v1654 = vmax.f32 %v1638, %v1649
        %v1655 = vmax.f32 %v1639, %v1651
        %v1656 = vadd.f32 %v1646, %v1567
        %v1657 = vadd.f32 %v1647, %v1579
        %v1658 = vmax.f32 %v1654, %v1591
        %v1659 = vmax.f32 %v1655, %v1603
        %1662 = vrot.lane.b32.xlu0 %v1567, 96
        %v1663 = vpop.permute.xlu0 %1662
        %1664 = vrot.lane.b32.xlu0 %v1579, 96
        %v1665 = vpop.permute.xlu0 %1664
        %v1668 = vadd.f32 %v1656, %v1663
        %v1669 = vadd.f32 %v1657, %v1665
        %1672 = vrot.lane.b32.xlu0 %v1591, 96
        %v1673 = vpop.permute.xlu0 %1672
        %1674 = vrot.lane.b32.xlu0 %v1603, 96
        %v1675 = vpop.permute.xlu0 %1674
        %v1678 = vmax.f32 %v1658, %v1673
        %v1679 = vmax.f32 %v1659, %v1675
        %1680 = vrot.lane.b32.xlu0 %v1567, 64
        %v1681 = vpop.permute.xlu0 %1680
        %1682 = vrot.lane.b32.xlu0 %v1579, 64
        %v1683 = vpop.permute.xlu0 %1682
        %v1686 = vadd.f32 %v1668, %v1681
        %v1687 = vadd.f32 %v1669, %v1683
        %1688 = vrot.lane.b32.xlu0 %v1591, 64
        %v1689 = vpop.permute.xlu0 %1688
        %1690 = vrot.lane.b32.xlu0 %v1603, 64
        %v1691 = vpop.permute.xlu0 %1690
        %v1694 = vmax.f32 %v1678, %v1689
        %v1695 = vmax.f32 %v1679, %v1691
        %1696 = vrot.lane.b32.xlu0 %v1567, 32
        %v1697 = vpop.permute.xlu0 %1696
        %1698 = vrot.lane.b32.xlu0 %v1579, 32
        %v1699 = vpop.permute.xlu0 %1698
        %v1702 = vadd.f32 %v1686, %v1697
        %v1703 = vadd.f32 %v1687, %v1699
        %1704 = vrot.lane.b32.xlu0 %v1591, 32
        %v1705 = vpop.permute.xlu0 %1704
        %1706 = vrot.lane.b32.xlu0 %v1603, 32
        %v1707 = vpop.permute.xlu0 %1706
        %v1710 = vmax.f32 %v1694, %v1705
        %v1711 = vmax.f32 %v1695, %v1707
        %v1712 = vmul.f32 %v1702, 0.015625
        %v1713 = vmul.f32 %v1703, 0.015625
        %v1716 = vrot.slane %v1713, 7
        %vm1717 = vcmask 1041409
        %v1718 = vsel %vm1717, %v1716, %v1712
        %v1722 = vrot.slane %v1710, 6
        %v1723 = vrot.slane %v1711, 5
        %vm1724 = vcmask 1043459
        %v1725 = vsel %vm1724, %v1723, %v1722
        %vm1727 = vcmask 1041408
        %v1728 = vsel %vm1727, %v1718, %v1725
        %v1729 = vld [vmem:[%s7] sm:$0xff]
        %v1730 = vld [vmem:[%s7 + $0x8] sm:$0xff]
        %v1731 = vld [vmem:[%s7 + $0x10] sm:$0xff]
        %v1732 = vld [vmem:[%s7 + $0x18] sm:$0xff]
        %v1733 = vld [vmem:[%s8] sm:$0x1]
        %v1735 = vperm.slane %v1733, 0
        %vm1737 = vcmask 261120
        %v1739 = vsel %vm1737, %v1728, 0
        %1741 = vmatpush.msra.mxu0 0.0
        %1742 = vmatpush.msra.mxu0 0.0
        %1743 = vmatpush.msra.mxu0 0.0
        %1744 = vmatpush.msra.mxu0 0.0
        %1745 = vmatpush.msra.mxu0 0.0
        %1746 = vmatpush.msra.mxu0 0.0
        %1747 = vmatpush.msra.mxu0 0.0
        %1748 = vmatpush.msra.mxu0 0.0
        %1749 = vmatpush.msra.mxu0 0.0
        %1750 = vmatpush.msra.mxu0 0.0
        %1751 = vmatpush.msra.mxu0 0.0
        %1752 = vmatpush.msra.mxu0 0.0
        %1753 = vmatpush.msra.mxu0 %v1732
        %1754 = vmatpush.msra.mxu0 %v1731
        %1755 = vmatpush.msra.mxu0 %v1730
        %1756 = vmatpush.msra.mxu0 %v1729
        %1757 = vmatmul.f32.gmra.mxu0 %v1739
        %v1758 = vpop.f32.mrf.mxu0
        %v1759 = vadd.f32 %v1735, %v1758
        %1760 = vdwg.mxu0
        %v1761 = vmax.f32 %v1759, 0.0
        %v1762 = vld [vmem:[%s9] sm:$0x3]
        %v1763 = vld [vmem:[%s10] sm:$0x1]
        %v1765 = vperm.slane %v1763, 0
        %vm1767 = vcmask 15360
        %v1769 = vsel %vm1767, %v1761, 0
        %v1772 = vsel %vm1727, %v1762, 0
        %1774 = vmatpush.msra.mxu0 0.0
        %1775 = vmatpush.msra.mxu0 0.0
        %1776 = vmatpush.msra.mxu0 0.0
        %1777 = vmatpush.msra.mxu0 0.0
        %1778 = vmatpush.msra.mxu0 0.0
        %1779 = vmatpush.msra.mxu0 0.0
        %1780 = vmatpush.msra.mxu0 0.0
        %1781 = vmatpush.msra.mxu0 0.0
        %1782 = vmatpush.msra.mxu0 0.0
        %1783 = vmatpush.msra.mxu0 0.0
        %1784 = vmatpush.msra.mxu0 0.0
        %1785 = vmatpush.msra.mxu0 0.0
        %1786 = vmatpush.msra.mxu0 0.0
        %1787 = vmatpush.msra.mxu0 0.0
        %1788 = vmatpush.msra.mxu0 0.0
        %1789 = vmatpush.msra.mxu0 %v1772
        %1790 = vmatmul.f32.gmra.mxu0 %v1769
        %v1791 = vpop.f32.mrf.mxu0
        %v1792 = vadd.f32 %v1765, %v1791
        %1793 = vdwg.mxu0
        %v1795 = vrot.slane %v1792, 2
        %v1797 = vadd.f32 %v1792, %v1795
        %v1798 = vsub.f32 0.0, %v1797
        %v1799 = vmul.f32 %v1798, 1.442695
        %v1800 = vpow.pop %v1799
        %v1801 = vadd.f32 %v1800, 1.0
        %v1802 = vrcp.pop %v1801
        %v1803 = vmul.f32 %v1801, %v1802
        %v1804 = vsub.f32 1.0, %v1803
        %v1805 = vmul.f32 %v1802, %v1804
        %v1806 = vadd.f32 %v1802, %v1805
        %vm1807 = vweird.f32 %v1801
        %vm1808 = vweird.f32 %v1802
        %vm1809 = vmor %vm1807, %vm1808
        %v1810 = vsel %vm1809, %v1802, %v1806
        %v1811 = vand.u32 2147483647, %v1801
        %vm1812 = vcmp.eq.f32.partialorder %v1811, 8.507059e+37
        %v1813 = vand.u32 %v1801, 2147483648
        %v1814 = vor.u32 1.1754944e-38, %v1813
        %v1815 = vsel %vm1812, %v1814, %v1810
        %1817 = vrot.lane.b32.xlu0 %v1815, 32
        %v1818 = vpop.permute.xlu0 %1817
        %1820 = vrot.lane.b32.xlu0 %v1815, 64
        %v1821 = vpop.permute.xlu0 %1820
        %1823 = vrot.lane.b32.xlu0 %v1815, 96
        %v1824 = vpop.permute.xlu0 %1823
        %v1826 = vsel %vm1737, %v1815, %v1818
        %vm1827 = vcmask 523264
        %v1828 = vsel %vm1827, %v1826, %v1821
        %vm1829 = vcmask 785408
        %v1830 = vsel %vm1829, %v1828, %v1824
        %v1832 = vrot.slane %v1830, 7
        %v1833 = vsel %vm530, %v1830, %v1832
        %v1834 = vsel %vm1717, %v1830, %v1832
        %v1835 = vrot.slane %v1834, 1
        %v1836 = vperm.slane %v1833, 0
        %v1837 = vperm.slane %v1833, 1
        %v1838 = vperm.slane %v1835, 0
        %v1839 = vperm.slane %v1835, 1
        %v1844 = vmul.f32 %v1552, %v1836
        %v1845 = vmul.f32 %v1553, %v1837
        %v1846 = vmul.f32 %v1554, %v1838
        %v1847 = vmul.f32 %v1555, %v1839
        %v1848 = vsel %vm1737, %v1844, -inf
        %1849 = vmax.xlane.f32.xlu0 %v1848
        %v1850 = vpop.xlane.xlu0 %1849
        %v1851 = vsel %vm1737, %v1846, -inf
        %1852 = vmax.xlane.f32.xlu0 %v1851
        %v1853 = vpop.xlane.xlu0 %1852
        %v1854 = vsel %vm1737, %v1844, 0.0
        %1855 = vadd.xlane.f32.xlu0 %v1854
        %v1856 = vpop.xlane.xlu0 %1855
        %v1857 = vsel %vm1737, %v1846, 0.0
        %1858 = vadd.xlane.f32.xlu0 %v1857
        %v1859 = vpop.xlane.xlu0 %1858
        %v1860 = vrcp.pop 32.0
        %v1861 = vmul.f32 32.0, %v1860
        %v1862 = vsub.f32 1.0, %v1861
        %v1863 = vmul.f32 %v1860, %v1862
        %v1864 = vadd.f32 %v1860, %v1863
        %vm1865 = vweird.f32 %v1860
        %v1866 = vsel %vm1865, %v1860, %v1864
        %v1867 = vmul.f32 %v1856, %v1866
        %v1868 = vmul.f32 %v1859, %v1866
        %vm1869 = vcmask 523520
        %v1870 = vsel %vm1869, %v1844, -inf
        %1871 = vmax.xlane.f32.xlu0 %v1870
        %v1872 = vpop.xlane.xlu0 %1871
        %v1873 = vsel %vm1869, %v1846, -inf
        %1874 = vmax.xlane.f32.xlu0 %v1873
        %v1875 = vpop.xlane.xlu0 %1874
        %1878 = vrot.lane.b32.xlu0 %v1844, 96
        %v1879 = vpop.permute.xlu0 %1878
        %1880 = vrot.lane.b32.xlu0 %v1846, 96
        %v1881 = vpop.permute.xlu0 %1880
        %v1884 = vsel %vm1737, %v1879, 0.0
        %1885 = vadd.xlane.f32.xlu0 %v1884
        %v1886 = vpop.xlane.xlu0 %1885
        %v1887 = vsel %vm1737, %v1881, 0.0
        %1888 = vadd.xlane.f32.xlu0 %v1887
        %v1889 = vpop.xlane.xlu0 %1888
        %v1890 = vmul.f32 %v1886, %v1866
        %v1891 = vmul.f32 %v1889, %v1866
        %vm1892 = vcmask 785920
        %v1893 = vsel %vm1892, %v1844, -inf
        %1894 = vmax.xlane.f32.xlu0 %v1893
        %v1895 = vpop.xlane.xlu0 %1894
        %v1896 = vsel %vm1892, %v1846, -inf
        %1897 = vmax.xlane.f32.xlu0 %v1896
        %v1898 = vpop.xlane.xlu0 %1897
        %1899 = vrot.lane.b32.xlu0 %v1844, 64
        %v1900 = vpop.permute.xlu0 %1899
        %1901 = vrot.lane.b32.xlu0 %v1846, 64
        %v1902 = vpop.permute.xlu0 %1901
        %v1905 = vsel %vm1737, %v1900, 0.0
        %1906 = vadd.xlane.f32.xlu0 %v1905
        %v1907 = vpop.xlane.xlu0 %1906
        %v1908 = vsel %vm1737, %v1902, 0.0
        %1909 = vadd.xlane.f32.xlu0 %v1908
        %v1910 = vpop.xlane.xlu0 %1909
        %v1911 = vmul.f32 %v1907, %v1866
        %v1912 = vmul.f32 %v1910, %v1866
        %vm1913 = vcmask 1048320
        %v1914 = vsel %vm1913, %v1844, -inf
        %1915 = vmax.xlane.f32.xlu0 %v1914
        %v1916 = vpop.xlane.xlu0 %1915
        %v1917 = vsel %vm1913, %v1846, -inf
        %1918 = vmax.xlane.f32.xlu0 %v1917
        %v1919 = vpop.xlane.xlu0 %1918
        %1920 = vrot.lane.b32.xlu0 %v1844, 32
        %v1921 = vpop.permute.xlu0 %1920
        %1922 = vrot.lane.b32.xlu0 %v1846, 32
        %v1923 = vpop.permute.xlu0 %1922
        %v1926 = vsel %vm1737, %v1921, 0.0
        %1927 = vadd.xlane.f32.xlu0 %v1926
        %v1928 = vpop.xlane.xlu0 %1927
        %v1929 = vsel %vm1737, %v1923, 0.0
        %1930 = vadd.xlane.f32.xlu0 %v1929
        %v1931 = vpop.xlane.xlu0 %1930
        %v1932 = vmul.f32 %v1928, %v1866
        %v1933 = vmul.f32 %v1931, %v1866
        %v1934 = vsel %vm1737, %v1845, -inf
        %1935 = vmax.xlane.f32.xlu0 %v1934
        %v1936 = vpop.xlane.xlu0 %1935
        %v1937 = vsel %vm1737, %v1847, -inf
        %1938 = vmax.xlane.f32.xlu0 %v1937
        %v1939 = vpop.xlane.xlu0 %1938
        %v1940 = vsel %vm1737, %v1845, 0.0
        %1941 = vadd.xlane.f32.xlu0 %v1940
        %v1942 = vpop.xlane.xlu0 %1941
        %v1943 = vsel %vm1737, %v1847, 0.0
        %1944 = vadd.xlane.f32.xlu0 %v1943
        %v1945 = vpop.xlane.xlu0 %1944
        %v1946 = vmul.f32 %v1942, %v1866
        %v1947 = vmul.f32 %v1945, %v1866
        %v1948 = vsel %vm1869, %v1845, -inf
        %1949 = vmax.xlane.f32.xlu0 %v1948
        %v1950 = vpop.xlane.xlu0 %1949
        %v1951 = vsel %vm1869, %v1847, -inf
        %1952 = vmax.xlane.f32.xlu0 %v1951
        %v1953 = vpop.xlane.xlu0 %1952
        %1956 = vrot.lane.b32.xlu0 %v1845, 96
        %v1957 = vpop.permute.xlu0 %1956
        %1958 = vrot.lane.b32.xlu0 %v1847, 96
        %v1959 = vpop.permute.xlu0 %1958
        %v1962 = vsel %vm1737, %v1957, 0.0
        %1963 = vadd.xlane.f32.xlu0 %v1962
        %v1964 = vpop.xlane.xlu0 %1963
        %v1965 = vsel %vm1737, %v1959, 0.0
        %1966 = vadd.xlane.f32.xlu0 %v1965
        %v1967 = vpop.xlane.xlu0 %1966
        %v1968 = vmul.f32 %v1964, %v1866
        %v1969 = vmul.f32 %v1967, %v1866
        %v1970 = vsel %vm1892, %v1845, -inf
        %1971 = vmax.xlane.f32.xlu0 %v1970
        %v1972 = vpop.xlane.xlu0 %1971
        %v1973 = vsel %vm1892, %v1847, -inf
        %1974 = vmax.xlane.f32.xlu0 %v1973
        %v1975 = vpop.xlane.xlu0 %1974
        %1976 = vrot.lane.b32.xlu0 %v1845, 64
        %v1977 = vpop.permute.xlu0 %1976
        %1978 = vrot.lane.b32.xlu0 %v1847, 64
        %v1979 = vpop.permute.xlu0 %1978
        %v1982 = vsel %vm1737, %v1977, 0.0
        %1983 = vadd.xlane.f32.xlu0 %v1982
        %v1984 = vpop.xlane.xlu0 %1983
        %v1985 = vsel %vm1737, %v1979, 0.0
        %1986 = vadd.xlane.f32.xlu0 %v1985
        %v1987 = vpop.xlane.xlu0 %1986
        %v1988 = vmul.f32 %v1984, %v1866
        %v1989 = vmul.f32 %v1987, %v1866
        %v1990 = vsel %vm1913, %v1845, -inf
        %1991 = vmax.xlane.f32.xlu0 %v1990
        %v1992 = vpop.xlane.xlu0 %1991
        %v1993 = vsel %vm1913, %v1847, -inf
        %1994 = vmax.xlane.f32.xlu0 %v1993
        %v1995 = vpop.xlane.xlu0 %1994
        %1996 = vrot.lane.b32.xlu0 %v1845, 32
        %v1997 = vpop.permute.xlu0 %1996
        %1998 = vrot.lane.b32.xlu0 %v1847, 32
        %v1999 = vpop.permute.xlu0 %1998
        %v2002 = vsel %vm1737, %v1997, 0.0
        %2003 = vadd.xlane.f32.xlu0 %v2002
        %v2004 = vpop.xlane.xlu0 %2003
        %v2005 = vsel %vm1737, %v1999, 0.0
        %2006 = vadd.xlane.f32.xlu0 %v2005
        %v2007 = vpop.xlane.xlu0 %2006
        %v2008 = vmul.f32 %v2004, %v1866
        %v2009 = vmul.f32 %v2007, %v1866
        %vm2010 = vcmask 7168
        %v2011 = vsel %vm2010, %v1850, %v1872
        %v2012 = vsel %vm2010, %v1853, %v1875
        %v2013 = vsel %vm1767, %v2011, %v1895
        %v2014 = vsel %vm1767, %v2012, %v1898
        %vm2015 = vcmask 23552
        %v2016 = vsel %vm2015, %v2013, %v1916
        %v2017 = vsel %vm2015, %v2014, %v1919
        %vm2018 = vcmask 31744
        %v2019 = vsel %vm2018, %v2016, %v1936
        %v2020 = vsel %vm2018, %v2017, %v1939
        %vm2021 = vcmask 39936
        %v2022 = vsel %vm2021, %v2019, %v1950
        %v2023 = vsel %vm2021, %v2020, %v1953
        %vm2024 = vcmask 48128
        %v2025 = vsel %vm2024, %v2022, %v1972
        %v2026 = vsel %vm2024, %v2023, %v1975
        %vm2027 = vcmask 56320
        %v2028 = vsel %vm2027, %v2025, %v1992
        %v2029 = vsel %vm2027, %v2026, %v1995
        %v2030 = vsel %vm2010, %v1867, %v1890
        %v2031 = vsel %vm2010, %v1868, %v1891
        %v2032 = vsel %vm1767, %v2030, %v1911
        %v2033 = vsel %vm1767, %v2031, %v1912
        %v2034 = vsel %vm2015, %v2032, %v1932
        %v2035 = vsel %vm2015, %v2033, %v1933
        %v2036 = vsel %vm2018, %v2034, %v1946
        %v2037 = vsel %vm2018, %v2035, %v1947
        %v2038 = vsel %vm2021, %v2036, %v1968
        %v2039 = vsel %vm2021, %v2037, %v1969
        %v2040 = vsel %vm2024, %v2038, %v1988
        %v2041 = vsel %vm2024, %v2039, %v1989
        %v2042 = vsel %vm2027, %v2040, %v2008
        %v2043 = vsel %vm2027, %v2041, %v2009
        %v2046 = vrot.slane %v2028, 5
        %v2047 = vrot.slane %v2029, 5
        %vm2050 = vcmask 1042432
        %v2051 = vsel %vm2050, 0.0, %v2046
        %v2052 = vsel %vm2050, 0.0, %v2047
        %v2055 = vrot.slane %v2042, 5
        %v2056 = vrot.slane %v2043, 5
        %v2059 = vsel %vm2050, 0.0, %v2055
        %v2060 = vsel %vm2050, 0.0, %v2056
        %v2061 = vrot.slane %v2028, 6
        %v2062 = vrot.slane %v2029, 6
        %v2065 = vsel %vm1727, 0.0, %v2061
        %v2066 = vsel %vm1727, 0.0, %v2062
        %v2067 = vrot.slane %v2042, 6
        %v2068 = vrot.slane %v2043, 6
        %v2071 = vsel %vm1727, 0.0, %v2067
        %v2072 = vsel %vm1727, 0.0, %v2068
        %v2073 = vrot.slane %v2028, 7
        %v2074 = vrot.slane %v2029, 7
        %v2077 = vsel %vm530, 0.0, %v2073
        %v2078 = vsel %vm530, 0.0, %v2074
        %v2079 = vrot.slane %v2042, 7
        %v2080 = vrot.slane %v2043, 7
        %v2083 = vsel %vm530, 0.0, %v2079
        %v2084 = vsel %vm530, 0.0, %v2080
        %v2085 = vrot.slane %v2028, 1
        %v2086 = vrot.slane %v2029, 1
        %v2089 = vsel %vm543, %v2085, 0.0
        %v2090 = vsel %vm543, %v2086, 0.0
        %v2091 = vrot.slane %v2042, 1
        %v2092 = vrot.slane %v2043, 1
        %v2095 = vsel %vm543, %v2091, 0.0
        %v2096 = vsel %vm543, %v2092, 0.0
        %v2097 = vrot.slane %v2028, 2
        %v2098 = vrot.slane %v2029, 2
        %vm2101 = vcmask 1045504
        %v2102 = vsel %vm2101, %v2097, 0.0
        %v2103 = vsel %vm2101, %v2098, 0.0
        %v2104 = vrot.slane %v2042, 2
        %v2105 = vrot.slane %v2043, 2
        %v2108 = vsel %vm2101, %v2104, 0.0
        %v2109 = vsel %vm2101, %v2105, 0.0
        %v2110 = vrot.slane %v2028, 3
        %v2111 = vrot.slane %v2029, 3
        %vm2114 = vcmask 1044480
        %v2115 = vsel %vm2114, %v2110, 0.0
        %v2116 = vsel %vm2114, %v2111, 0.0
        %v2117 = vrot.slane %v2042, 3
        %v2118 = vrot.slane %v2043, 3
        %v2121 = vsel %vm2114, %v2117, 0.0
        %v2122 = vsel %vm2114, %v2118, 0.0
        %2125 = vrot.lane.b32.xlu0 %v2059, 8
        %v2126 = vpop.permute.xlu0 %2125
        %2127 = vrot.lane.b32.xlu0 %v2060, 8
        %v2128 = vpop.permute.xlu0 %2127
        %2133 = vrot.lane.b32.xlu0 %v2065, 16
        %v2134 = vpop.permute.xlu0 %2133
        %2135 = vrot.lane.b32.xlu0 %v2066, 16
        %v2136 = vpop.permute.xlu0 %2135
        %2141 = vrot.lane.b32.xlu0 %v2071, 24
        %v2142 = vpop.permute.xlu0 %2141
        %2143 = vrot.lane.b32.xlu0 %v2072, 24
        %v2144 = vpop.permute.xlu0 %2143
        %2149 = vrot.lane.b32.xlu0 %v2077, 32
        %v2150 = vpop.permute.xlu0 %2149
        %2151 = vrot.lane.b32.xlu0 %v2078, 32
        %v2152 = vpop.permute.xlu0 %2151
        %2157 = vrot.lane.b32.xlu0 %v2083, 40
        %v2158 = vpop.permute.xlu0 %2157
        %2159 = vrot.lane.b32.xlu0 %v2084, 40
        %v2160 = vpop.permute.xlu0 %2159
        %2163 = vrot.lane.b32.xlu0 %v2028, 48
        %v2164 = vpop.permute.xlu0 %2163
        %2165 = vrot.lane.b32.xlu0 %v2029, 48
        %v2166 = vpop.permute.xlu0 %2165
        %2169 = vrot.lane.b32.xlu0 %v2042, 56
        %v2170 = vpop.permute.xlu0 %2169
        %2171 = vrot.lane.b32.xlu0 %v2043, 56
        %v2172 = vpop.permute.xlu0 %2171
        %2177 = vrot.lane.b32.xlu0 %v2089, 64
        %v2178 = vpop.permute.xlu0 %2177
        %2179 = vrot.lane.b32.xlu0 %v2090, 64
        %v2180 = vpop.permute.xlu0 %2179
        %2185 = vrot.lane.b32.xlu0 %v2095, 72
        %v2186 = vpop.permute.xlu0 %2185
        %2187 = vrot.lane.b32.xlu0 %v2096, 72
        %v2188 = vpop.permute.xlu0 %2187
        %2193 = vrot.lane.b32.xlu0 %v2102, 80
        %v2194 = vpop.permute.xlu0 %2193
        %2195 = vrot.lane.b32.xlu0 %v2103, 80
        %v2196 = vpop.permute.xlu0 %2195
        %2201 = vrot.lane.b32.xlu0 %v2108, 88
        %v2202 = vpop.permute.xlu0 %2201
        %2203 = vrot.lane.b32.xlu0 %v2109, 88
        %v2204 = vpop.permute.xlu0 %2203
        %2209 = vrot.lane.b32.xlu0 %v2115, 96
        %v2210 = vpop.permute.xlu0 %2209
        %2211 = vrot.lane.b32.xlu0 %v2116, 96
        %v2212 = vpop.permute.xlu0 %2211
        %2217 = vrot.lane.b32.xlu0 %v2121, 104
        %v2218 = vpop.permute.xlu0 %2217
        %2219 = vrot.lane.b32.xlu0 %v2122, 104
        %v2220 = vpop.permute.xlu0 %2219
        %vm2223 = vcmask 64512
        %v2224 = vsel %vm2223, %v2051, %v2126
        %v2225 = vsel %vm2223, %v2052, %v2128
        %vm2226 = vcmask 130048
        %v2227 = vsel %vm2226, %v2224, %v2134
        %v2228 = vsel %vm2226, %v2225, %v2136
        %vm2229 = vcmask 195584
        %v2230 = vsel %vm2229, %v2227, %v2142
        %v2231 = vsel %vm2229, %v2228, %v2144
        %v2232 = vsel %vm1737, %v2230, %v2150
        %v2233 = vsel %vm1737, %v2231, %v2152
        %vm2234 = vcmask 326656
        %v2235 = vsel %vm2234, %v2232, %v2158
        %v2236 = vsel %vm2234, %v2233, %v2160
        %vm2237 = vcmask 392192
        %v2238 = vsel %vm2237, %v2235, %v2164
        %v2239 = vsel %vm2237, %v2236, %v2166
        %vm2240 = vcmask 457728
        %v2241 = vsel %vm2240, %v2238, %v2170
        %v2242 = vsel %vm2240, %v2239, %v2172
        %v2243 = vsel %vm1827, %v2241, %v2178
        %v2244 = vsel %vm1827, %v2242, %v2180
        %vm2245 = vcmask 588800
        %v2246 = vsel %vm2245, %v2243, %v2186
        %v2247 = vsel %vm2245, %v2244, %v2188
        %vm2248 = vcmask 654336
        %v2249 = vsel %vm2248, %v2246, %v2194
        %v2250 = vsel %vm2248, %v2247, %v2196
        %vm2251 = vcmask 719872
        %v2252 = vsel %vm2251, %v2249, %v2202
        %v2253 = vsel %vm2251, %v2250, %v2204
        %v2254 = vsel %vm1829, %v2252, %v2210
        %v2255 = vsel %vm1829, %v2253, %v2212
        %vm2256 = vcmask 850944
        %v2257 = vsel %vm2256, %v2254, %v2218
        %v2258 = vsel %vm2256, %v2255, %v2220
        %v2259 = vld [vmem:[#allocation8] sm:$0xff]
        %v2260 = vld [vmem:[#allocation8 + $0x8] sm:$0xff]
        %v2261 = vld [vmem:[#allocation8 + $0x10] sm:$0xff]
        %v2262 = vld [vmem:[#allocation8 + $0x18] sm:$0xff]
        %v2263 = vld [vmem:[#allocation8 + $0x20] sm:$0xff]
        %v2264 = vld [vmem:[#allocation8 + $0x28] sm:$0xff]
        %v2265 = vld [vmem:[#allocation8 + $0x30] sm:$0xff]
        %v2266 = vld [vmem:[#allocation8 + $0x38] sm:$0xff]
        %v2267 = vld [vmem:[#allocation8 + $0x40] sm:$0xff]
        %v2268 = vld [vmem:[#allocation8 + $0x48] sm:$0xff]
        %v2269 = vld [vmem:[#allocation8 + $0x50] sm:$0xff]
        %v2270 = vld [vmem:[#allocation8 + $0x58] sm:$0xff]
        %v2271 = vld [vmem:[#allocation8 + $0x60] sm:$0xff]
        %v2272 = vld [vmem:[#allocation8 + $0x68] sm:$0xff]
        %v2273 = vld [vmem:[#allocation8 + $0x70] sm:$0xff]
        %v2274 = vld [vmem:[#allocation8 + $0x78] sm:$0xff]
        %v2275 = vld [vmem:[#allocation8 + $0x80] sm:$0xff]
        %v2276 = vld [vmem:[#allocation8 + $0x88] sm:$0xff]
        %v2277 = vld [vmem:[#allocation8 + $0x90] sm:$0xff]
        %v2278 = vld [vmem:[#allocation8 + $0x98] sm:$0xff]
        %v2279 = vld [vmem:[#allocation8 + $0xa0] sm:$0xff]
        %v2280 = vld [vmem:[#allocation8 + $0xa8] sm:$0xff]
        %v2281 = vld [vmem:[#allocation8 + $0xb0] sm:$0xff]
        %v2282 = vld [vmem:[#allocation8 + $0xb8] sm:$0xff]
        %v2283 = vld [vmem:[#allocation8 + $0xc0] sm:$0xff]
        %v2284 = vld [vmem:[#allocation8 + $0xc8] sm:$0xff]
        %v2285 = vld [vmem:[#allocation8 + $0xd0] sm:$0xff]
        %v2286 = vld [vmem:[#allocation8 + $0xd8] sm:$0xff]
        %v2287 = vld [vmem:[%s12] sm:$0x3]
        %v2289 = vperm.slane %v2287, 0
        %v2290 = vperm.slane %v2287, 1
        %vm2293 = vcmask 916480
        %v2295 = vsel %vm2293, %v2257, 0
        %v2298 = vsel %vm2293, %v2258, 0
        %2300 = vmatpush.msra.mxu0 0.0
        %2301 = vmatpush.msra.mxu0 0.0
        %2302 = vmatpush.msra.mxu0 %v2285
        %2303 = vmatpush.msra.mxu0 %v2283
        %2304 = vmatpush.msra.mxu0 %v2281
        %2305 = vmatpush.msra.mxu0 %v2279
        %2306 = vmatpush.msra.mxu0 %v2277
        %2307 = vmatpush.msra.mxu0 %v2275
        %2308 = vmatpush.msra.mxu0 %v2273
        %2309 = vmatpush.msra.mxu0 %v2271
        %2310 = vmatpush.msra.mxu0 %v2269
        %2311 = vmatpush.msra.mxu0 %v2267
        %2312 = vmatpush.msra.mxu0 %v2265
        %2313 = vmatpush.msra.mxu0 %v2263
        %2314 = vmatpush.msra.mxu0 %v2261
        %2315 = vmatpush.msra.mxu0 %v2259
        %2316 = vmatmul.f32.gmra.mxu0 %v2295
        %v2317 = vpop.f32.mrf.mxu0
        %v2318 = vadd.f32 %v2289, %v2317
        %2319 = vmatmul.f32.gmra.mxu0 %v2298
        %v2320 = vpop.f32.mrf.mxu0
        %v2321 = vadd.f32 %v2289, %v2320
        %2322 = vdwg.mxu0
        %2323 = vmatpush.msra.mxu0 0.0
        %2324 = vmatpush.msra.mxu0 0.0
        %2325 = vmatpush.msra.mxu0 %v2286
        %2326 = vmatpush.msra.mxu0 %v2284
        %2327 = vmatpush.msra.mxu0 %v2282
        %2328 = vmatpush.msra.mxu0 %v2280
        %2329 = vmatpush.msra.mxu0 %v2278
        %2330 = vmatpush.msra.mxu0 %v2276
        %2331 = vmatpush.msra.mxu0 %v2274
        %2332 = vmatpush.msra.mxu0 %v2272
        %2333 = vmatpush.msra.mxu0 %v2270
        %2334 = vmatpush.msra.mxu0 %v2268
        %2335 = vmatpush.msra.mxu0 %v2266
        %2336 = vmatpush.msra.mxu0 %v2264
        %2337 = vmatpush.msra.mxu0 %v2262
        %2338 = vmatpush.msra.mxu0 %v2260
        %2339 = vmatmul.f32.gmra.mxu0 %v2295
        %v2340 = vpop.f32.mrf.mxu0
        %v2341 = vadd.f32 %v2290, %v2340
        %2342 = vmatmul.f32.gmra.mxu0 %v2298
        %v2343 = vpop.f32.mrf.mxu0
        %v2344 = vadd.f32 %v2290, %v2343
        %2345 = vdwg.mxu0
        %v2346 = vsub.f32 0.0, %v2318
        %v2347 = vsub.f32 0.0, %v2341
        %v2348 = vsub.f32 0.0, %v2321
        %v2349 = vsub.f32 0.0, %v2344
        %v2350 = vmul.f32 %v2346, 1.442695
        %v2351 = vpow.pop %v2350
        %v2352 = vmul.f32 %v2347, 1.442695
        %v2353 = vpow.pop %v2352
        %v2354 = vmul.f32 %v2348, 1.442695
        %v2355 = vpow.pop %v2354
        %v2356 = vmul.f32 %v2349, 1.442695
        %v2357 = vpow.pop %v2356
        %v2358 = vadd.f32 %v2351, 1.0
        %v2359 = vadd.f32 %v2353, 1.0
        %v2360 = vadd.f32 %v2355, 1.0
        %v2361 = vadd.f32 %v2357, 1.0
        %v2362 = vrcp.pop %v2358
        %v2363 = vmul.f32 %v2358, %v2362
        %v2364 = vsub.f32 1.0, %v2363
        %v2365 = vmul.f32 %v2362, %v2364
        %v2366 = vadd.f32 %v2362, %v2365
        %vm2367 = vweird.f32 %v2358
        %vm2368 = vweird.f32 %v2362
        %vm2369 = vmor %vm2367, %vm2368
        %v2370 = vsel %vm2369, %v2362, %v2366
        %v2371 = vand.u32 2147483647, %v2358
        %vm2372 = vcmp.eq.f32.partialorder %v2371, 8.507059e+37
        %v2373 = vand.u32 %v2358, 2147483648
        %v2374 = vor.u32 1.1754944e-38, %v2373
        %v2375 = vsel %vm2372, %v2374, %v2370
        %v2376 = vrcp.pop %v2359
        %v2377 = vmul.f32 %v2359, %v2376
        %v2378 = vsub.f32 1.0, %v2377
        %v2379 = vmul.f32 %v2376, %v2378
        %v2380 = vadd.f32 %v2376, %v2379
        %vm2381 = vweird.f32 %v2359
        %vm2382 = vweird.f32 %v2376
        %vm2383 = vmor %vm2381, %vm2382
        %v2384 = vsel %vm2383, %v2376, %v2380
        %v2385 = vand.u32 2147483647, %v2359
        %vm2386 = vcmp.eq.f32.partialorder %v2385, 8.507059e+37
        %v2387 = vand.u32 %v2359, 2147483648
        %v2388 = vor.u32 1.1754944e-38, %v2387
        %v2389 = vsel %vm2386, %v2388, %v2384
        %v2390 = vrcp.pop %v2360
        %v2391 = vmul.f32 %v2360, %v2390
        %v2392 = vsub.f32 1.0, %v2391
        %v2393 = vmul.f32 %v2390, %v2392
        %v2394 = vadd.f32 %v2390, %v2393
        %vm2395 = vweird.f32 %v2360
        %vm2396 = vweird.f32 %v2390
        %vm2397 = vmor %vm2395, %vm2396
        %v2398 = vsel %vm2397, %v2390, %v2394
        %v2399 = vand.u32 2147483647, %v2360
        %vm2400 = vcmp.eq.f32.partialorder %v2399, 8.507059e+37
        %v2401 = vand.u32 %v2360, 2147483648
        %v2402 = vor.u32 1.1754944e-38, %v2401
        %v2403 = vsel %vm2400, %v2402, %v2398
        %v2404 = vrcp.pop %v2361
        %v2405 = vmul.f32 %v2361, %v2404
        %v2406 = vsub.f32 1.0, %v2405
        %v2407 = vmul.f32 %v2404, %v2406
        %v2408 = vadd.f32 %v2404, %v2407
        %vm2409 = vweird.f32 %v2361
        %vm2410 = vweird.f32 %v2404
        %vm2411 = vmor %vm2409, %vm2410
        %v2412 = vsel %vm2411, %v2404, %v2408
        %v2413 = vand.u32 2147483647, %v2361
        %vm2414 = vcmp.eq.f32.partialorder %v2413, 8.507059e+37
        %v2415 = vand.u32 %v2361, 2147483648
        %v2416 = vor.u32 1.1754944e-38, %v2415
        %v2417 = vsel %vm2414, %v2416, %v2412
        %v2418 = vmul.f32 %v1844, %v2375
        %v2419 = vmul.f32 %v1845, %v2389
        %v2420 = vmul.f32 %v1846, %v2403
        %v2421 = vmul.f32 %v1847, %v2417
        %v2422 = vadd.f32 %v2418, %v514
        %v2423 = vadd.f32 %v2419, %v515
        %v2424 = vadd.f32 %v2420, %v516
        %v2425 = vadd.f32 %v2421, %v517
        %v2426 = vmax.f32 %v2422, 0.0
        %v2427 = vmax.f32 %v2423, 0.0
        %v2428 = vmax.f32 %v2424, 0.0
        %v2429 = vmax.f32 %v2425, 0.0
        %2430 = vst [vmem:[%s511] sm:$0xff] %v2426
        %2431 = vst [vmem:[%s511 + $0x8] sm:$0xff] %v2427
        %2432 = vst [vmem:[%s511 + $0x10] sm:$0xff] %v2428
        %2433 = vst [vmem:[%s511 + $0x18] sm:$0xff] %v2429
        %s2434 = sand.u32 %s318, 1
        %s2435 = scalar_lea.sflag [#allocation4], %s2434
        %s2436 = sand.u32 %s318, 1
        %s2437 = smul.addr %s2436, 32
        %s2438 = scalar_lea.vmem [#allocation10], %s2437
        // Predicated region
        $region89: #{tpu_custom_call.1} parent=71 // pred_check
          %p2439 = pneg %p328
        $region90: #{tpu_custom_call.1} parent=71 // pred_check_branch
          %2441 = sbr.rel (%p2439) target = $region92
        $region91: #{tpu_custom_call.1} parent=71 // pred_region
          %s2442 = smul.u32 2, %s32
          %2444 = vsyncadd %s2435, 0
          %s2445 = smul.addr %s2442, 2
          %s2446 = smul.addr %s2445, 8
          %s2447 = scalar_lea.hbm %s13, %s2446
          %s2448 = sshll.u32 %s2438, 4
          %s2449 = int_to_ptr.vmem [resolvable:$true] %s2448
          %s2450 = sshll.u32 %s2447, 4
          %s2451 = int_to_ptr.hbm [resolvable:$true] %s2450
          %2456 = dma.vmem_to_hbm [thread:$0]  %s2449, 512, %s2451, %s2435, 256, 256, 16
        $region92: #{tpu_custom_call.1} parent=71 // pred_fallthru
          _
      $region72: #{tpu_custom_call.1} parent=5 // pred_fallthru
        _
      %p2457 = scmp.le.s32.totalorder 2, %s27
      // Predicated region
      $region93: #{tpu_custom_call.1} parent=5 // pred_check
        %p2458 = pneg %p2457
      $region94: #{tpu_custom_call.1} parent=5 // pred_check_branch
        %2460 = sbr.rel (%p2458) target = $region96
      $region95: #{tpu_custom_call.1} parent=5 // pred_region
        %s2461 = ssub.s32 %s27, 2
        // Predicated region
        $region97: #{tpu_custom_call.1} parent=95 // pred_check
          %p2462 = pneg %p334
        $region98: #{tpu_custom_call.1} parent=95 // pred_check_branch
          %2464 = sbr.rel (%p2462) target = $region100
        $region99: #{tpu_custom_call.1} parent=95 // pred_region
          %s2465 = sand.u32 %s319, 1
          %s2466 = scalar_lea.sflag [#allocation4], %s2465
          %s2467 = sand.u32 %s319, 1
          %s2468 = smul.addr %s2467, 32
          %s2469 = scalar_lea.vmem [#allocation10], %s2468
          %2471 = dma.done %s2466, 512
        $region100: #{tpu_custom_call.1} parent=95 // pred_fallthru
          _
      $region96: #{tpu_custom_call.1} parent=5 // pred_fallthru
        _
    $region6: #{tpu_custom_call.1} parent=1 // loop_footer
      %s31 = sadd.s32 1, %s27
    $region7: #{tpu_custom_call.1} parent=1 // loop_footer_branch
      %26 = sbr.rel target = $region3
    $region8: #{tpu_custom_call.1} parent=1 // loop_exit
      _
    %2472 = vsyncpa [#allocation3], 1
    %s2473 = scalar_lea.sflag [#allocation3], 1
    %2474 = vsyncpa %s2473, 1
    %2475 = vsyncpa [#allocation6], 1
    %2476 = vsyncpa [#allocation9], 1
    %2477 = vsyncpa [#allocation4], 1
    %s2478 = scalar_lea.sflag [#allocation4], 1
    %2479 = vsyncpa %s2478, 1

</llo_original>
